<compile_context>
chip_gen: v7x
topology: tpu7x:2x2x1
jax: 0.10.0
libtpu: 0.0.40
codegen_flags: <defaults>
</compile_context>

<pallas_src>
import jax
import jax.numpy as jnp
from jax import lax
from jax.experimental import pallas as pl
from jax.experimental.pallas import tpu as pltpu


def _gelu_exact(x):
    # PyTorch nn.GELU() default: exact erf-based GELU.  (Kept exact; the tanh
    # approximation would move work to the EUP but changes numerics.)
    return 0.5 * x * (1.0 + lax.erf(x * 0.7071067811865476))


def gmlp_block_kernel(
    x_ref,        # (1, S, D)  f32
    w1_ref,       # (D, tF)    bf16  ff1 weight (in x out)
    b1_ref,       # (1, tF)    f32
    w2_ref,       # (D, tF)    bf16  ff2 weight (in x out)
    b2_ref,       # (1, tF)    f32
    gamma_ref,    # (S, 1)     f32   SGU LayerNorm weight (per seq position)
    beta_ref,     # (S, 1)     f32   SGU LayerNorm bias
    wsgu_t_ref,   # (S, S)     bf16  SGU fc weight, pre-transposed
    bsgu_ref,     # (S, 1)     f32
    wout_ref,     # (tF, D)    bf16  final fc weight (in x out)
    bout_ref,     # (1, D)     f32
    y_ref,        # (1, S, D)  f32
    acc_ref,      # (S, D)     f32   output accumulator over d_ff tiles
):
    f = pl.program_id(1)
    nf = pl.num_programs(1)

    @pl.when(f == 0)
    def _init():
        acc_ref[...] = jnp.zeros_like(acc_ref)

    x = x_ref[0]                                   # (S, D) f32
    x_bf = x.astype(jnp.bfloat16)                  # bf16 MXU operands, f32 accum

    # ff1 / ff2: Linear(d_model -> d_ff slab) + exact GELU (f32).
    z1 = _gelu_exact(
        jnp.dot(x_bf, w1_ref[...], preferred_element_type=jnp.float32) + b1_ref[...]
    )                                              # (S, tF)
    z2 = _gelu_exact(
        jnp.dot(x_bf, w2_ref[...], preferred_element_type=jnp.float32) + b2_ref[...]
    )                                              # (S, tF)

    # SGU LayerNorm over the sequence axis (the sublane axis here).  The
    # mean / variance reductions are done as ones-row MXU matmuls so no
    # cross-sublane XLU reduction is needed.
    s = x.shape[0]
    inv_s = 1.0 / s
    ones_row = jnp.ones((1, s), jnp.float32)
    mu = jnp.dot(ones_row, z2, preferred_element_type=jnp.float32) * inv_s     # (1, tF)
    centered = z2 - mu
    var = jnp.dot(ones_row, centered * centered,
                  preferred_element_type=jnp.float32) * inv_s                   # (1, tF)
    z2n = centered * lax.rsqrt(var + 1e-5)
    z2n = z2n * gamma_ref[...] + beta_ref[...]                                   # (S, tF)

    # SGU spatial projection, computed in the (S, F) layout (no transposes):
    #   (z2n_{F,S} @ wsgu)^T == wsgu^T @ z2n_{S,F}
    spatial = (
        jnp.dot(wsgu_t_ref[...], z2n.astype(jnp.bfloat16),
                preferred_element_type=jnp.float32)
        + bsgu_ref[...]
    )                                              # (S, tF)
    gated = z1 * spatial                           # (S, tF)

    # Final Linear(d_ff -> d_model): accumulate this d_ff slab's contribution.
    acc_ref[...] += jnp.dot(gated.astype(jnp.bfloat16), wout_ref[...],
                            preferred_element_type=jnp.float32)

    @pl.when(f == nf - 1)
    def _finalize():
        y_ref[0] = (acc_ref[...] + bout_ref[...]).astype(y_ref.dtype)


def _pick_dff_tile(d_ff):
    # Largest lane-aligned d_ff tile (multiple of 128, capped at 512) that
    # divides d_ff; small / unaligned d_ff falls back to one full-size tile.
    for cand in (512, 256, 128):
        if d_ff % cand == 0:
            return cand
    return d_ff


def _vmem_limit_bytes(S, D, F, tF):
    bf, f4 = 2, 4
    est = 0
    est += 2 * (S * D * f4) * 2            # x block + y block, double buffered
    est += 2 * (D * tF * bf) * 2           # w1, w2 tiles, double buffered
    est += (tF * D * bf) * 2               # wout tile, double buffered
    est += (S * S * bf) * 2                # wsgu^T
    est += (2 * tF * f4) * 2               # b1, b2 tiles
    est += (3 * S + 2 * D) * f4 * 2        # gamma / beta / bsgu / bout
    est += S * D * f4                      # accumulator scratch
    est += 8 * S * tF * f4                 # live (S, tF) intermediates + slack
    est = 2 * est + (4 << 20)              # generous headroom
    return int(min(max(est, 16 << 20), 64 << 20))   # stay within v7x's 64 MiB


def gmlp_block(x, params):
    """x: (B, S, D) float32.  params: dict of weights (see init_params)."""
    B, S, D = x.shape
    F = params["w1"].shape[1]
    tF = _pick_dff_tile(F)
    nF = F // tF

    # Operand prep (outside the kernel, once per call):
    #   * big matmul operands as bf16 (f32 accumulation in-kernel)
    #   * SGU weight pre-transposed so the kernel never transposes activations
    #   * per-sequence LN/SGU params reshaped to (S, 1) for the (S, F) layout
    w1 = params["w1"].astype(jnp.bfloat16)
    w2 = params["w2"].astype(jnp.bfloat16)
    wout = params["wout"].astype(jnp.bfloat16)
    wsgu_t = params["wsgu"].T.astype(jnp.bfloat16)
    b1 = params["b1"].astype(jnp.float32)
    b2 = params["b2"].astype(jnp.float32)
    gamma = params["ln_gamma"].reshape(S, 1).astype(jnp.float32)
    beta = params["ln_beta"].reshape(S, 1).astype(jnp.float32)
    bsgu = params["bsgu"].reshape(S, 1).astype(jnp.float32)
    bout = params["bout"].astype(jnp.float32)

    def build(single_buffer_consts):
        # Blocks whose index never changes across the grid only need a single
        # VMEM buffer (default pipelining allocates two).
        const_kwargs = (
            {"pipeline_mode": pl.Buffered(buffer_count=1)}
            if single_buffer_consts
            else {}
        )

        def const_spec(shape):
            return pl.BlockSpec(shape, lambda b, f: (0,) * len(shape), **const_kwargs)

        grid_spec = pltpu.PrefetchScalarGridSpec(
            num_scalar_prefetch=0,
            grid=(B, nF),                  # batch parallel, d_ff reduction axis
            in_specs=[
                pl.BlockSpec((1, S, D), lambda b, f: (b, 0, 0)),   # x
                pl.BlockSpec((D, tF), lambda b, f: (0, f)),        # w1
                pl.BlockSpec((1, tF), lambda b, f: (0, f)),        # b1
                pl.BlockSpec((D, tF), lambda b, f: (0, f)),        # w2
                pl.BlockSpec((1, tF), lambda b, f: (0, f)),        # b2
                const_spec((S, 1)),                                # ln gamma
                const_spec((S, 1)),                                # ln beta
                const_spec((S, S)),                                # wsgu^T
                const_spec((S, 1)),                                # bsgu
                pl.BlockSpec((tF, D), lambda b, f: (f, 0)),        # wout
                const_spec((1, D)),                                # bout
            ],
            out_specs=pl.BlockSpec((1, S, D), lambda b, f: (b, 0, 0)),
            scratch_shapes=[pltpu.VMEM((S, D), jnp.float32)],
        )
        return pl.pallas_call(
            gmlp_block_kernel,
            out_shape=jax.ShapeDtypeStruct((B, S, D), x.dtype),
            grid_spec=grid_spec,
            compiler_params=pltpu.CompilerParams(
                dimension_semantics=("parallel", "arbitrary"),
                vmem_limit_bytes=_vmem_limit_bytes(S, D, F, tF),
            ),
        )

    args = (x, w1, b1, w2, b2, gamma, beta, wsgu_t, bsgu, wout, bout)
    try:
        return build(True)(*args)
    except Exception:
        # Fallback for JAX versions that reject single-buffered BlockSpecs.
        return build(False)(*args)


def init_params(key, d_model, d_ff, seq_length):
    ks = jax.random.split(key, 8)
    scale = 0.02
    # Weights stored as (in, out) — i.e. PyTorch weight transposed.
    return {
        "w1": scale * jax.random.normal(ks[0], (d_model, d_ff), jnp.float32),
        "b1": scale * jax.random.normal(ks[1], (1, d_ff), jnp.float32),
        "w2": scale * jax.random.normal(ks[2], (d_model, d_ff), jnp.float32),
        "b2": scale * jax.random.normal(ks[3], (1, d_ff), jnp.float32),
        "ln_gamma": jnp.ones((1, seq_length), jnp.float32),
        "ln_beta": jnp.zeros((1, seq_length), jnp.float32),
        "wsgu": scale * jax.random.normal(ks[4], (seq_length, seq_length), jnp.float32),
        "bsgu": scale * jax.random.normal(ks[5], (1, seq_length), jnp.float32),
        "wout": scale * jax.random.normal(ks[6], (d_ff, d_model), jnp.float32),
        "bout": scale * jax.random.normal(ks[7], (1, d_model), jnp.float32),
    }


def gmlp_block_reference(x, p):
    """Pure-JAX f32 reference of the PyTorch forward pass."""
    z1 = _gelu_exact(x @ p["w1"] + p["b1"])          # (B, S, F)
    z2 = _gelu_exact(x @ p["w2"] + p["b2"])          # (B, S, F)
    z1t = jnp.transpose(z1, (0, 2, 1))               # (B, F, S)
    z2t = jnp.transpose(z2, (0, 2, 1))               # (B, F, S)
    mu = jnp.mean(z2t, axis=-1, keepdims=True)
    var = jnp.mean((z2t - mu) ** 2, axis=-1, keepdims=True)
    z2n = (z2t - mu) * lax.rsqrt(var + 1e-5) * p["ln_gamma"] + p["ln_beta"]
    gated = z1t * (z2n @ p["wsgu"] + p["bsgu"])      # (B, F, S)
    z_prime = jnp.transpose(gated, (0, 2, 1))        # (B, S, F)
    return z_prime @ p["wout"] + p["bout"]           # (B, S, D)


if __name__ == "__main__":
    # Small but lane-aligned shapes: D is a multiple of 128 (lane-dense output)
    # and d_ff = 1024 splits into two 512-wide slabs, exercising the d_ff
    # accumulator path; B = 2 keeps both v7x TensorCores busy ("parallel" axis).
    B, S, D, F = 2, 8, 128, 1024

    key = jax.random.PRNGKey(0)
    kx, kp = jax.random.split(key)
    x = jax.random.normal(kx, (B, S, D), jnp.float32)
    params = init_params(kp, d_model=D, d_ff=F, seq_length=S)

    y = jax.block_until_ready(gmlp_block(x, params))
    y_ref = gmlp_block_reference(x, params)

    assert y.shape == (B, S, D)
    # bf16 MXU operands (f32 accumulation) => small, bounded deviation vs the
    # pure-f32 reference; a layout/transpose bug would blow far past this.
    max_err = float(jnp.max(jnp.abs(y - y_ref)))
    assert jnp.allclose(y, y_ref, atol=3e-3, rtol=3e-2), f"mismatch, max_err={max_err}"

    print("KERNEL_OK")
</pallas_src>

<mosaic_0001>
module attributes {stable_mosaic.version = 11 : i64} {
  func.func @gmlp_block_kernel(%arg0: i32, %arg1: i32, %arg2: memref<1x8x128xf32, #tpu.memory_space<vmem>>, %arg3: memref<128x512xbf16, #tpu.memory_space<vmem>>, %arg4: memref<1x512xf32, #tpu.memory_space<vmem>>, %arg5: memref<128x512xbf16, #tpu.memory_space<vmem>>, %arg6: memref<1x512xf32, #tpu.memory_space<vmem>>, %arg7: memref<8x1xf32, #tpu.memory_space<vmem>>, %arg8: memref<8x1xf32, #tpu.memory_space<vmem>>, %arg9: memref<8x8xbf16, #tpu.memory_space<vmem>>, %arg10: memref<8x1xf32, #tpu.memory_space<vmem>>, %arg11: memref<512x128xbf16, #tpu.memory_space<vmem>>, %arg12: memref<1x128xf32, #tpu.memory_space<vmem>>, %arg13: memref<1x8x128xf32, #tpu.memory_space<vmem>>, %arg14: memref<8x128xf32, #tpu.memory_space<vmem>>) attributes {dimension_semantics = [#tpu.dimension_semantics<parallel>, #tpu.dimension_semantics<arbitrary>], iteration_bounds = array<i64: 2, 2>, scalar_prefetch = 0 : i64, scratch_operands = 1 : i64, tpu.core_type = #tpu.core_type<tc>, window_params = [{transform_indices = @transform_0, window_bounds = array<i64: 1, 8, 128>}, {transform_indices = @transform_1, window_bounds = array<i64: 128, 512>}, {transform_indices = @transform_2, window_bounds = array<i64: 1, 512>}, {transform_indices = @transform_3, window_bounds = array<i64: 128, 512>}, {transform_indices = @transform_4, window_bounds = array<i64: 1, 512>}, {pipeline_mode = #tpu.pipeline_mode<synchronous>, transform_indices = @transform_5, window_bounds = array<i64: 8, 1>}, {pipeline_mode = #tpu.pipeline_mode<synchronous>, transform_indices = @transform_6, window_bounds = array<i64: 8, 1>}, {pipeline_mode = #tpu.pipeline_mode<synchronous>, transform_indices = @transform_7, window_bounds = array<i64: 8, 8>}, {pipeline_mode = #tpu.pipeline_mode<synchronous>, transform_indices = @transform_8, window_bounds = array<i64: 8, 1>}, {transform_indices = @transform_9, window_bounds = array<i64: 512, 128>}, {pipeline_mode = #tpu.pipeline_mode<synchronous>, transform_indices = @transform_10, window_bounds = array<i64: 1, 128>}, {transform_indices = @transform_11, window_bounds = array<i64: 1, 8, 128>}]} {
    %c0_i32 = arith.constant 0 : i32
    %0 = arith.cmpi eq, %arg1, %c0_i32 : i32
    %1 = arith.extui %0 : i1 to i32
    %c0_i32_0 = arith.constant 0 : i32
    %2 = arith.cmpi ne, %1, %c0_i32_0 : i32
    scf.if %2 {
      %cst_41 = arith.constant 0.000000e+00 : f32
      %69 = vector.broadcast %cst_41 : f32 to vector<8x128xf32>
      %c0_42 = arith.constant 0 : index
      %c0_43 = arith.constant 0 : index
      %70 = vector.load %arg14[%c0_42, %c0_43] : memref<8x128xf32, #tpu.memory_space<vmem>>, vector<8x128xf32>
      tpu.vector_store %arg14[%c0_42, %c0_43], %69 {strides = array<i32>} : memref<8x128xf32, #tpu.memory_space<vmem>>, vector<8x128xf32>,
    } else {
    }
    %c0 = arith.constant 0 : index
    %c0_1 = arith.constant 0 : index
    %c0_2 = arith.constant 0 : index
    %3 = vector.load %arg2[%c0, %c0_1, %c0_2] : memref<1x8x128xf32, #tpu.memory_space<vmem>>, vector<1x8x128xf32>
    %4 = vector.shape_cast %3 : vector<1x8x128xf32> to vector<8x128xf32>
    %5 = arith.truncf %4 : vector<8x128xf32> to vector<8x128xbf16>
    %c0_3 = arith.constant 0 : index
    %c0_4 = arith.constant 0 : index
    %6 = vector.load %arg3[%c0_3, %c0_4] : memref<128x512xbf16, #tpu.memory_space<vmem>>, vector<128x512xbf16>
    %cst = arith.constant dense<0.000000e+00> : vector<8x512xf32>
    %7 = tpu.matmul %5, %6, %cst {dimension_numbers = #tpu.dot_dimension_numbers<[1], [0], [0], [1], [0, 0, 1, 1], [], []>} : vector<8x128xbf16>, vector<128x512xbf16>, vector<8x512xf32> -> vector<8x512xf32>
    %c0_5 = arith.constant 0 : index
    %c0_6 = arith.constant 0 : index
    %8 = vector.load %arg4[%c0_5, %c0_6] : memref<1x512xf32, #tpu.memory_space<vmem>>, vector<1x512xf32>
    %9 = vector.broadcast %8 : vector<1x512xf32> to vector<8x512xf32>
    %10 = arith.addf %7, %9 : vector<8x512xf32>
    %cst_7 = arith.constant 5.000000e-01 : f32
    %11 = vector.broadcast %cst_7 : f32 to vector<8x512xf32>
    %12 = arith.mulf %11, %10 : vector<8x512xf32>
    %cst_8 = arith.constant 0.707106769 : f32
    %13 = vector.broadcast %cst_8 : f32 to vector<8x512xf32>
    %14 = arith.mulf %10, %13 : vector<8x512xf32>
    %15 = math.erf %14 : vector<8x512xf32>
    %cst_9 = arith.constant 1.000000e+00 : f32
    %16 = vector.broadcast %cst_9 : f32 to vector<8x512xf32>
    %17 = arith.addf %16, %15 : vector<8x512xf32>
    %18 = arith.mulf %12, %17 : vector<8x512xf32>
    %c0_10 = arith.constant 0 : index
    %c0_11 = arith.constant 0 : index
    %19 = vector.load %arg5[%c0_10, %c0_11] : memref<128x512xbf16, #tpu.memory_space<vmem>>, vector<128x512xbf16>
    %cst_12 = arith.constant dense<0.000000e+00> : vector<8x512xf32>
    %20 = tpu.matmul %5, %19, %cst_12 {dimension_numbers = #tpu.dot_dimension_numbers<[1], [0], [0], [1], [0, 0, 1, 1], [], []>} : vector<8x128xbf16>, vector<128x512xbf16>, vector<8x512xf32> -> vector<8x512xf32>
    %c0_13 = arith.constant 0 : index
    %c0_14 = arith.constant 0 : index
    %21 = vector.load %arg6[%c0_13, %c0_14] : memref<1x512xf32, #tpu.memory_space<vmem>>, vector<1x512xf32>
    %22 = vector.broadcast %21 : vector<1x512xf32> to vector<8x512xf32>
    %23 = arith.addf %20, %22 : vector<8x512xf32>
    %cst_15 = arith.constant 5.000000e-01 : f32
    %24 = vector.broadcast %cst_15 : f32 to vector<8x512xf32>
    %25 = arith.mulf %24, %23 : vector<8x512xf32>
    %cst_16 = arith.constant 0.707106769 : f32
    %26 = vector.broadcast %cst_16 : f32 to vector<8x512xf32>
    %27 = arith.mulf %23, %26 : vector<8x512xf32>
    %28 = math.erf %27 : vector<8x512xf32>
    %cst_17 = arith.constant 1.000000e+00 : f32
    %29 = vector.broadcast %cst_17 : f32 to vector<8x512xf32>
    %30 = arith.addf %29, %28 : vector<8x512xf32>
    %31 = arith.mulf %25, %30 : vector<8x512xf32>
    %cst_18 = arith.constant 1.000000e+00 : f32
    %32 = vector.broadcast %cst_18 : f32 to vector<1x8xf32>
    %cst_19 = arith.constant dense<0.000000e+00> : vector<1x512xf32>
    %33 = tpu.matmul %32, %31, %cst_19 {dimension_numbers = #tpu.dot_dimension_numbers<[1], [0], [0], [1], [0, 0, 1, 1], [], []>} : vector<1x8xf32>, vector<8x512xf32>, vector<1x512xf32> -> vector<1x512xf32>
    %cst_20 = arith.constant 1.250000e-01 : f32
    %34 = vector.broadcast %cst_20 : f32 to vector<1x512xf32>
    %35 = arith.mulf %33, %34 : vector<1x512xf32>
    %36 = vector.broadcast %35 : vector<1x512xf32> to vector<8x512xf32>
    %37 = arith.subf %31, %36 : vector<8x512xf32>
    %38 = arith.mulf %37, %37 : vector<8x512xf32>
    %cst_21 = arith.constant dense<0.000000e+00> : vector<1x512xf32>
    %39 = tpu.matmul %32, %38, %cst_21 {dimension_numbers = #tpu.dot_dimension_numbers<[1], [0], [0], [1], [0, 0, 1, 1], [], []>} : vector<1x8xf32>, vector<8x512xf32>, vector<1x512xf32> -> vector<1x512xf32>
    %cst_22 = arith.constant 1.250000e-01 : f32
    %40 = vector.broadcast %cst_22 : f32 to vector<1x512xf32>
    %41 = arith.mulf %39, %40 : vector<1x512xf32>
    %cst_23 = arith.constant 9.99999974E-6 : f32
    %42 = vector.broadcast %cst_23 : f32 to vector<1x512xf32>
    %43 = arith.addf %41, %42 : vector<1x512xf32>
    %44 = math.rsqrt %43 : vector<1x512xf32>
    %45 = vector.broadcast %44 : vector<1x512xf32> to vector<8x512xf32>
    %46 = arith.mulf %37, %45 : vector<8x512xf32>
    %c0_24 = arith.constant 0 : index
    %c0_25 = arith.constant 0 : index
    %47 = vector.load %arg7[%c0_24, %c0_25] : memref<8x1xf32, #tpu.memory_space<vmem>>, vector<8x1xf32>
    %48 = vector.broadcast %47 : vector<8x1xf32> to vector<8x512xf32>
    %49 = arith.mulf %46, %48 : vector<8x512xf32>
    %c0_26 = arith.constant 0 : index
    %c0_27 = arith.constant 0 : index
    %50 = vector.load %arg8[%c0_26, %c0_27] : memref<8x1xf32, #tpu.memory_space<vmem>>, vector<8x1xf32>
    %51 = vector.broadcast %50 : vector<8x1xf32> to vector<8x512xf32>
    %52 = arith.addf %49, %51 : vector<8x512xf32>
    %c0_28 = arith.constant 0 : index
    %c0_29 = arith.constant 0 : index
    %53 = vector.load %arg9[%c0_28, %c0_29] : memref<8x8xbf16, #tpu.memory_space<vmem>>, vector<8x8xbf16>
    %54 = arith.truncf %52 : vector<8x512xf32> to vector<8x512xbf16>
    %cst_30 = arith.constant dense<0.000000e+00> : vector<8x512xf32>
    %55 = tpu.matmul %53, %54, %cst_30 {dimension_numbers = #tpu.dot_dimension_numbers<[1], [0], [0], [1], [0, 0, 1, 1], [], []>} : vector<8x8xbf16>, vector<8x512xbf16>, vector<8x512xf32> -> vector<8x512xf32>
    %c0_31 = arith.constant 0 : index
    %c0_32 = arith.constant 0 : index
    %56 = vector.load %arg10[%c0_31, %c0_32] : memref<8x1xf32, #tpu.memory_space<vmem>>, vector<8x1xf32>
    %57 = vector.broadcast %56 : vector<8x1xf32> to vector<8x512xf32>
    %58 = arith.addf %55, %57 : vector<8x512xf32>
    %59 = arith.mulf %18, %58 : vector<8x512xf32>
    %c0_33 = arith.constant 0 : index
    %c0_34 = arith.constant 0 : index
    %60 = vector.load %arg14[%c0_33, %c0_34] : memref<8x128xf32, #tpu.memory_space<vmem>>, vector<8x128xf32>
    %61 = arith.truncf %59 : vector<8x512xf32> to vector<8x512xbf16>
    %c0_35 = arith.constant 0 : index
    %c0_36 = arith.constant 0 : index
    %62 = vector.load %arg11[%c0_35, %c0_36] : memref<512x128xbf16, #tpu.memory_space<vmem>>, vector<512x128xbf16>
    %cst_37 = arith.constant dense<0.000000e+00> : vector<8x128xf32>
    %63 = tpu.matmul %61, %62, %cst_37 {dimension_numbers = #tpu.dot_dimension_numbers<[1], [0], [0], [1], [0, 0, 1, 1], [], []>} : vector<8x512xbf16>, vector<512x128xbf16>, vector<8x128xf32> -> vector<8x128xf32>
    %64 = arith.addf %60, %63 : vector<8x128xf32>
    %c0_38 = arith.constant 0 : index
    %c0_39 = arith.constant 0 : index
    %65 = vector.load %arg14[%c0_38, %c0_39] : memref<8x128xf32, #tpu.memory_space<vmem>>, vector<8x128xf32>
    tpu.vector_store %arg14[%c0_38, %c0_39], %64 {strides = array<i32>} : memref<8x128xf32, #tpu.memory_space<vmem>>, vector<8x128xf32>,
    %c1_i32 = arith.constant 1 : i32
    %66 = arith.cmpi eq, %arg1, %c1_i32 : i32
    %67 = arith.extui %66 : i1 to i32
    %c0_i32_40 = arith.constant 0 : i32
    %68 = arith.cmpi ne, %67, %c0_i32_40 : i32
    scf.if %68 {
      %c0_41 = arith.constant 0 : index
      %c0_42 = arith.constant 0 : index
      %69 = vector.load %arg14[%c0_41, %c0_42] : memref<8x128xf32, #tpu.memory_space<vmem>>, vector<8x128xf32>
      %c0_43 = arith.constant 0 : index
      %c0_44 = arith.constant 0 : index
      %70 = vector.load %arg12[%c0_43, %c0_44] : memref<1x128xf32, #tpu.memory_space<vmem>>, vector<1x128xf32>
      %71 = vector.broadcast %70 : vector<1x128xf32> to vector<8x128xf32>
      %72 = arith.addf %69, %71 : vector<8x128xf32>
      %c0_45 = arith.constant 0 : index
      %c0_46 = arith.constant 0 : index
      %c0_47 = arith.constant 0 : index
      %73 = vector.load %arg13[%c0_45, %c0_46, %c0_47] : memref<1x8x128xf32, #tpu.memory_space<vmem>>, vector<1x8x128xf32>
      %74 = vector.shape_cast %73 : vector<1x8x128xf32> to vector<8x128xf32>
      %75 = vector.shape_cast %72 : vector<8x128xf32> to vector<1x8x128xf32>
      tpu.vector_store %arg13[%c0_45, %c0_46, %c0_47], %75 {strides = array<i32>} : memref<1x8x128xf32, #tpu.memory_space<vmem>>, vector<1x8x128xf32>,
    } else {
    }
    return
  }
  func.func @transform_0(%arg0: i32, %arg1: i32) -> (i32, i32, i32) {
    %c0_i32 = arith.constant 0 : i32
    %c0_i32_0 = arith.constant 0 : i32
    %c0_i32_1 = arith.constant 0 : i32
    return %arg0, %c0_i32, %c0_i32_0 : i32, i32, i32
  }
  func.func @transform_1(%arg0: i32, %arg1: i32) -> (i32, i32) {
    %c0_i32 = arith.constant 0 : i32
    %c0_i32_0 = arith.constant 0 : i32
    return %c0_i32, %arg1 : i32, i32
  }
  func.func @transform_2(%arg0: i32, %arg1: i32) -> (i32, i32) {
    %c0_i32 = arith.constant 0 : i32
    %c0_i32_0 = arith.constant 0 : i32
    return %c0_i32, %arg1 : i32, i32
  }
  func.func @transform_3(%arg0: i32, %arg1: i32) -> (i32, i32) {
    %c0_i32 = arith.constant 0 : i32
    %c0_i32_0 = arith.constant 0 : i32
    return %c0_i32, %arg1 : i32, i32
  }
  func.func @transform_4(%arg0: i32, %arg1: i32) -> (i32, i32) {
    %c0_i32 = arith.constant 0 : i32
    %c0_i32_0 = arith.constant 0 : i32
    return %c0_i32, %arg1 : i32, i32
  }
  func.func @transform_5(%arg0: i32, %arg1: i32) -> (i32, i32) {
    %c0_i32 = arith.constant 0 : i32
    %c0_i32_0 = arith.constant 0 : i32
    %c0_i32_1 = arith.constant 0 : i32
    return %c0_i32, %c0_i32_0 : i32, i32
  }
  func.func @transform_6(%arg0: i32, %arg1: i32) -> (i32, i32) {
    %c0_i32 = arith.constant 0 : i32
    %c0_i32_0 = arith.constant 0 : i32
    %c0_i32_1 = arith.constant 0 : i32
    return %c0_i32, %c0_i32_0 : i32, i32
  }
  func.func @transform_7(%arg0: i32, %arg1: i32) -> (i32, i32) {
    %c0_i32 = arith.constant 0 : i32
    %c0_i32_0 = arith.constant 0 : i32
    %c0_i32_1 = arith.constant 0 : i32
    return %c0_i32, %c0_i32_0 : i32, i32
  }
  func.func @transform_8(%arg0: i32, %arg1: i32) -> (i32, i32) {
    %c0_i32 = arith.constant 0 : i32
    %c0_i32_0 = arith.constant 0 : i32
    %c0_i32_1 = arith.constant 0 : i32
    return %c0_i32, %c0_i32_0 : i32, i32
  }
  func.func @transform_9(%arg0: i32, %arg1: i32) -> (i32, i32) {
    %c0_i32 = arith.constant 0 : i32
    %c0_i32_0 = arith.constant 0 : i32
    return %arg1, %c0_i32 : i32, i32
  }
  func.func @transform_10(%arg0: i32, %arg1: i32) -> (i32, i32) {
    %c0_i32 = arith.constant 0 : i32
    %c0_i32_0 = arith.constant 0 : i32
    %c0_i32_1 = arith.constant 0 : i32
    return %c0_i32, %c0_i32_0 : i32, i32
  }
  func.func @transform_11(%arg0: i32, %arg1: i32) -> (i32, i32, i32) {
    %c0_i32 = arith.constant 0 : i32
    %c0_i32_0 = arith.constant 0 : i32
    %c0_i32_1 = arith.constant 0 : i32
    return %arg0, %c0_i32, %c0_i32_0 : i32, i32, i32
  }
}

module attributes {stable_mosaic.version = 11 : i64} {
  func.func @gmlp_block_kernel(%arg0: i32, %arg1: i32, %arg2: memref<1x8x128xf32, #tpu.memory_space<vmem>>, %arg3: memref<128x512xbf16, #tpu.memory_space<vmem>>, %arg4: memref<1x512xf32, #tpu.memory_space<vmem>>, %arg5: memref<128x512xbf16, #tpu.memory_space<vmem>>, %arg6: memref<1x512xf32, #tpu.memory_space<vmem>>, %arg7: memref<8x1xf32, #tpu.memory_space<vmem>>, %arg8: memref<8x1xf32, #tpu.memory_space<vmem>>, %arg9: memref<8x8xbf16, #tpu.memory_space<vmem>>, %arg10: memref<8x1xf32, #tpu.memory_space<vmem>>, %arg11: memref<512x128xbf16, #tpu.memory_space<vmem>>, %arg12: memref<1x128xf32, #tpu.memory_space<vmem>>, %arg13: memref<1x8x128xf32, #tpu.memory_space<vmem>>, %arg14: memref<8x128xf32, #tpu.memory_space<vmem>>) attributes {dimension_semantics = [#tpu.dimension_semantics<parallel>, #tpu.dimension_semantics<arbitrary>], iteration_bounds = array<i64: 2, 2>, scalar_prefetch = 0 : i64, scratch_operands = 1 : i64, tpu.core_type = #tpu.core_type<tc>, window_params = [{transform_indices = @transform_0, window_bounds = array<i64: 1, 8, 128>}, {transform_indices = @transform_1, window_bounds = array<i64: 128, 512>}, {transform_indices = @transform_2, window_bounds = array<i64: 1, 512>}, {transform_indices = @transform_3, window_bounds = array<i64: 128, 512>}, {transform_indices = @transform_4, window_bounds = array<i64: 1, 512>}, {pipeline_mode = #tpu.pipeline_mode<synchronous>, transform_indices = @transform_5, window_bounds = array<i64: 8, 1>}, {pipeline_mode = #tpu.pipeline_mode<synchronous>, transform_indices = @transform_6, window_bounds = array<i64: 8, 1>}, {pipeline_mode = #tpu.pipeline_mode<synchronous>, transform_indices = @transform_7, window_bounds = array<i64: 8, 8>}, {pipeline_mode = #tpu.pipeline_mode<synchronous>, transform_indices = @transform_8, window_bounds = array<i64: 8, 1>}, {transform_indices = @transform_9, window_bounds = array<i64: 512, 128>}, {pipeline_mode = #tpu.pipeline_mode<synchronous>, transform_indices = @transform_10, window_bounds = array<i64: 1, 128>}, {transform_indices = @transform_11, window_bounds = array<i64: 1, 8, 128>}]} {
    %c0_i32 = arith.constant 0 : i32
    %0 = arith.cmpi eq, %arg1, %c0_i32 : i32
    %1 = arith.extui %0 : i1 to i32
    %c0_i32_0 = arith.constant 0 : i32
    %2 = arith.cmpi ne, %1, %c0_i32_0 : i32
    scf.if %2 {
      %cst_41 = arith.constant 0.000000e+00 : f32
      %69 = vector.broadcast %cst_41 : f32 to vector<8x128xf32>
      %c0_42 = arith.constant 0 : index
      %c0_43 = arith.constant 0 : index
      %70 = vector.load %arg14[%c0_42, %c0_43] : memref<8x128xf32, #tpu.memory_space<vmem>>, vector<8x128xf32>
      tpu.vector_store %arg14[%c0_42, %c0_43], %69 {strides = array<i32>} : memref<8x128xf32, #tpu.memory_space<vmem>>, vector<8x128xf32>,
    } else {
    }
    %c0 = arith.constant 0 : index
    %c0_1 = arith.constant 0 : index
    %c0_2 = arith.constant 0 : index
    %3 = vector.load %arg2[%c0, %c0_1, %c0_2] : memref<1x8x128xf32, #tpu.memory_space<vmem>>, vector<1x8x128xf32>
    %4 = vector.shape_cast %3 : vector<1x8x128xf32> to vector<8x128xf32>
    %5 = arith.truncf %4 : vector<8x128xf32> to vector<8x128xbf16>
    %c0_3 = arith.constant 0 : index
    %c0_4 = arith.constant 0 : index
    %6 = vector.load %arg3[%c0_3, %c0_4] : memref<128x512xbf16, #tpu.memory_space<vmem>>, vector<128x512xbf16>
    %cst = arith.constant dense<0.000000e+00> : vector<8x512xf32>
    %7 = tpu.matmul %5, %6, %cst {dimension_numbers = #tpu.dot_dimension_numbers<[1], [0], [0], [1], [0, 0, 1, 1], [], []>} : vector<8x128xbf16>, vector<128x512xbf16>, vector<8x512xf32> -> vector<8x512xf32>
    %c0_5 = arith.constant 0 : index
    %c0_6 = arith.constant 0 : index
    %8 = vector.load %arg4[%c0_5, %c0_6] : memref<1x512xf32, #tpu.memory_space<vmem>>, vector<1x512xf32>
    %9 = vector.broadcast %8 : vector<1x512xf32> to vector<8x512xf32>
    %10 = arith.addf %7, %9 : vector<8x512xf32>
    %cst_7 = arith.constant 5.000000e-01 : f32
    %11 = vector.broadcast %cst_7 : f32 to vector<8x512xf32>
    %12 = arith.mulf %11, %10 : vector<8x512xf32>
    %cst_8 = arith.constant 0.707106769 : f32
    %13 = vector.broadcast %cst_8 : f32 to vector<8x512xf32>
    %14 = arith.mulf %10, %13 : vector<8x512xf32>
    %15 = math.erf %14 : vector<8x512xf32>
    %cst_9 = arith.constant 1.000000e+00 : f32
    %16 = vector.broadcast %cst_9 : f32 to vector<8x512xf32>
    %17 = arith.addf %16, %15 : vector<8x512xf32>
    %18 = arith.mulf %12, %17 : vector<8x512xf32>
    %c0_10 = arith.constant 0 : index
    %c0_11 = arith.constant 0 : index
    %19 = vector.load %arg5[%c0_10, %c0_11] : memref<128x512xbf16, #tpu.memory_space<vmem>>, vector<128x512xbf16>
    %cst_12 = arith.constant dense<0.000000e+00> : vector<8x512xf32>
    %20 = tpu.matmul %5, %19, %cst_12 {dimension_numbers = #tpu.dot_dimension_numbers<[1], [0], [0], [1], [0, 0, 1, 1], [], []>} : vector<8x128xbf16>, vector<128x512xbf16>, vector<8x512xf32> -> vector<8x512xf32>
    %c0_13 = arith.constant 0 : index
    %c0_14 = arith.constant 0 : index
    %21 = vector.load %arg6[%c0_13, %c0_14] : memref<1x512xf32, #tpu.memory_space<vmem>>, vector<1x512xf32>
    %22 = vector.broadcast %21 : vector<1x512xf32> to vector<8x512xf32>
    %23 = arith.addf %20, %22 : vector<8x512xf32>
    %cst_15 = arith.constant 5.000000e-01 : f32
    %24 = vector.broadcast %cst_15 : f32 to vector<8x512xf32>
    %25 = arith.mulf %24, %23 : vector<8x512xf32>
    %cst_16 = arith.constant 0.707106769 : f32
    %26 = vector.broadcast %cst_16 : f32 to vector<8x512xf32>
    %27 = arith.mulf %23, %26 : vector<8x512xf32>
    %28 = math.erf %27 : vector<8x512xf32>
    %cst_17 = arith.constant 1.000000e+00 : f32
    %29 = vector.broadcast %cst_17 : f32 to vector<8x512xf32>
    %30 = arith.addf %29, %28 : vector<8x512xf32>
    %31 = arith.mulf %25, %30 : vector<8x512xf32>
    %cst_18 = arith.constant 1.000000e+00 : f32
    %32 = vector.broadcast %cst_18 : f32 to vector<1x8xf32>
    %cst_19 = arith.constant dense<0.000000e+00> : vector<1x512xf32>
    %33 = tpu.matmul %32, %31, %cst_19 {dimension_numbers = #tpu.dot_dimension_numbers<[1], [0], [0], [1], [0, 0, 1, 1], [], []>} : vector<1x8xf32>, vector<8x512xf32>, vector<1x512xf32> -> vector<1x512xf32>
    %cst_20 = arith.constant 1.250000e-01 : f32
    %34 = vector.broadcast %cst_20 : f32 to vector<1x512xf32>
    %35 = arith.mulf %33, %34 : vector<1x512xf32>
    %36 = vector.broadcast %35 : vector<1x512xf32> to vector<8x512xf32>
    %37 = arith.subf %31, %36 : vector<8x512xf32>
    %38 = arith.mulf %37, %37 : vector<8x512xf32>
    %cst_21 = arith.constant dense<0.000000e+00> : vector<1x512xf32>
    %39 = tpu.matmul %32, %38, %cst_21 {dimension_numbers = #tpu.dot_dimension_numbers<[1], [0], [0], [1], [0, 0, 1, 1], [], []>} : vector<1x8xf32>, vector<8x512xf32>, vector<1x512xf32> -> vector<1x512xf32>
    %cst_22 = arith.constant 1.250000e-01 : f32
    %40 = vector.broadcast %cst_22 : f32 to vector<1x512xf32>
    %41 = arith.mulf %39, %40 : vector<1x512xf32>
    %cst_23 = arith.constant 9.99999974E-6 : f32
    %42 = vector.broadcast %cst_23 : f32 to vector<1x512xf32>
    %43 = arith.addf %41, %42 : vector<1x512xf32>
    %44 = math.rsqrt %43 : vector<1x512xf32>
    %45 = vector.broadcast %44 : vector<1x512xf32> to vector<8x512xf32>
    %46 = arith.mulf %37, %45 : vector<8x512xf32>
    %c0_24 = arith.constant 0 : index
    %c0_25 = arith.constant 0 : index
    %47 = vector.load %arg7[%c0_24, %c0_25] : memref<8x1xf32, #tpu.memory_space<vmem>>, vector<8x1xf32>
    %48 = vector.broadcast %47 : vector<8x1xf32> to vector<8x512xf32>
    %49 = arith.mulf %46, %48 : vector<8x512xf32>
    %c0_26 = arith.constant 0 : index
    %c0_27 = arith.constant 0 : index
    %50 = vector.load %arg8[%c0_26, %c0_27] : memref<8x1xf32, #tpu.memory_space<vmem>>, vector<8x1xf32>
    %51 = vector.broadcast %50 : vector<8x1xf32> to vector<8x512xf32>
    %52 = arith.addf %49, %51 : vector<8x512xf32>
    %c0_28 = arith.constant 0 : index
    %c0_29 = arith.constant 0 : index
    %53 = vector.load %arg9[%c0_28, %c0_29] : memref<8x8xbf16, #tpu.memory_space<vmem>>, vector<8x8xbf16>
    %54 = arith.truncf %52 : vector<8x512xf32> to vector<8x512xbf16>
    %cst_30 = arith.constant dense<0.000000e+00> : vector<8x512xf32>
    %55 = tpu.matmul %53, %54, %cst_30 {dimension_numbers = #tpu.dot_dimension_numbers<[1], [0], [0], [1], [0, 0, 1, 1], [], []>} : vector<8x8xbf16>, vector<8x512xbf16>, vector<8x512xf32> -> vector<8x512xf32>
    %c0_31 = arith.constant 0 : index
    %c0_32 = arith.constant 0 : index
    %56 = vector.load %arg10[%c0_31, %c0_32] : memref<8x1xf32, #tpu.memory_space<vmem>>, vector<8x1xf32>
    %57 = vector.broadcast %56 : vector<8x1xf32> to vector<8x512xf32>
    %58 = arith.addf %55, %57 : vector<8x512xf32>
    %59 = arith.mulf %18, %58 : vector<8x512xf32>
    %c0_33 = arith.constant 0 : index
    %c0_34 = arith.constant 0 : index
    %60 = vector.load %arg14[%c0_33, %c0_34] : memref<8x128xf32, #tpu.memory_space<vmem>>, vector<8x128xf32>
    %61 = arith.truncf %59 : vector<8x512xf32> to vector<8x512xbf16>
    %c0_35 = arith.constant 0 : index
    %c0_36 = arith.constant 0 : index
    %62 = vector.load %arg11[%c0_35, %c0_36] : memref<512x128xbf16, #tpu.memory_space<vmem>>, vector<512x128xbf16>
    %cst_37 = arith.constant dense<0.000000e+00> : vector<8x128xf32>
    %63 = tpu.matmul %61, %62, %cst_37 {dimension_numbers = #tpu.dot_dimension_numbers<[1], [0], [0], [1], [0, 0, 1, 1], [], []>} : vector<8x512xbf16>, vector<512x128xbf16>, vector<8x128xf32> -> vector<8x128xf32>
    %64 = arith.addf %60, %63 : vector<8x128xf32>
    %c0_38 = arith.constant 0 : index
    %c0_39 = arith.constant 0 : index
    %65 = vector.load %arg14[%c0_38, %c0_39] : memref<8x128xf32, #tpu.memory_space<vmem>>, vector<8x128xf32>
    tpu.vector_store %arg14[%c0_38, %c0_39], %64 {strides = array<i32>} : memref<8x128xf32, #tpu.memory_space<vmem>>, vector<8x128xf32>,
    %c1_i32 = arith.constant 1 : i32
    %66 = arith.cmpi eq, %arg1, %c1_i32 : i32
    %67 = arith.extui %66 : i1 to i32
    %c0_i32_40 = arith.constant 0 : i32
    %68 = arith.cmpi ne, %67, %c0_i32_40 : i32
    scf.if %68 {
      %c0_41 = arith.constant 0 : index
      %c0_42 = arith.constant 0 : index
      %69 = vector.load %arg14[%c0_41, %c0_42] : memref<8x128xf32, #tpu.memory_space<vmem>>, vector<8x128xf32>
      %c0_43 = arith.constant 0 : index
      %c0_44 = arith.constant 0 : index
      %70 = vector.load %arg12[%c0_43, %c0_44] : memref<1x128xf32, #tpu.memory_space<vmem>>, vector<1x128xf32>
      %71 = vector.broadcast %70 : vector<1x128xf32> to vector<8x128xf32>
      %72 = arith.addf %69, %71 : vector<8x128xf32>
      %c0_45 = arith.constant 0 : index
      %c0_46 = arith.constant 0 : index
      %c0_47 = arith.constant 0 : index
      %73 = vector.load %arg13[%c0_45, %c0_46, %c0_47] : memref<1x8x128xf32, #tpu.memory_space<vmem>>, vector<1x8x128xf32>
      %74 = vector.shape_cast %73 : vector<1x8x128xf32> to vector<8x128xf32>
      %75 = vector.shape_cast %72 : vector<8x128xf32> to vector<1x8x128xf32>
      tpu.vector_store %arg13[%c0_45, %c0_46, %c0_47], %75 {strides = array<i32>} : memref<1x8x128xf32, #tpu.memory_space<vmem>>, vector<1x8x128xf32>,
    } else {
    }
    return
  }
  func.func @transform_0(%arg0: i32, %arg1: i32) -> (i32, i32, i32) {
    %c0_i32 = arith.constant 0 : i32
    %c0_i32_0 = arith.constant 0 : i32
    %c0_i32_1 = arith.constant 0 : i32
    return %arg0, %c0_i32, %c0_i32_0 : i32, i32, i32
  }
  func.func @transform_1(%arg0: i32, %arg1: i32) -> (i32, i32) {
    %c0_i32 = arith.constant 0 : i32
    %c0_i32_0 = arith.constant 0 : i32
    return %c0_i32, %arg1 : i32, i32
  }
  func.func @transform_2(%arg0: i32, %arg1: i32) -> (i32, i32) {
    %c0_i32 = arith.constant 0 : i32
    %c0_i32_0 = arith.constant 0 : i32
    return %c0_i32, %arg1 : i32, i32
  }
  func.func @transform_3(%arg0: i32, %arg1: i32) -> (i32, i32) {
    %c0_i32 = arith.constant 0 : i32
    %c0_i32_0 = arith.constant 0 : i32
    return %c0_i32, %arg1 : i32, i32
  }
  func.func @transform_4(%arg0: i32, %arg1: i32) -> (i32, i32) {
    %c0_i32 = arith.constant 0 : i32
    %c0_i32_0 = arith.constant 0 : i32
    return %c0_i32, %arg1 : i32, i32
  }
  func.func @transform_5(%arg0: i32, %arg1: i32) -> (i32, i32) {
    %c0_i32 = arith.constant 0 : i32
    %c0_i32_0 = arith.constant 0 : i32
    %c0_i32_1 = arith.constant 0 : i32
    return %c0_i32, %c0_i32_0 : i32, i32
  }
  func.func @transform_6(%arg0: i32, %arg1: i32) -> (i32, i32) {
    %c0_i32 = arith.constant 0 : i32
    %c0_i32_0 = arith.constant 0 : i32
    %c0_i32_1 = arith.constant 0 : i32
    return %c0_i32, %c0_i32_0 : i32, i32
  }
  func.func @transform_7(%arg0: i32, %arg1: i32) -> (i32, i32) {
    %c0_i32 = arith.constant 0 : i32
    %c0_i32_0 = arith.constant 0 : i32
    %c0_i32_1 = arith.constant 0 : i32
    return %c0_i32, %c0_i32_0 : i32, i32
  }
  func.func @transform_8(%arg0: i32, %arg1: i32) -> (i32, i32) {
    %c0_i32 = arith.constant 0 : i32
    %c0_i32_0 = arith.constant 0 : i32
    %c0_i32_1 = arith.constant 0 : i32
    return %c0_i32, %c0_i32_0 : i32, i32
  }
  func.func @transform_9(%arg0: i32, %arg1: i32) -> (i32, i32) {
    %c0_i32 = arith.constant 0 : i32
    %c0_i32_0 = arith.constant 0 : i32
    return %arg1, %c0_i32 : i32, i32
  }
  func.func @transform_10(%arg0: i32, %arg1: i32) -> (i32, i32) {
    %c0_i32 = arith.constant 0 : i32
    %c0_i32_0 = arith.constant 0 : i32
    %c0_i32_1 = arith.constant 0 : i32
    return %c0_i32, %c0_i32_0 : i32, i32
  }
  func.func @transform_11(%arg0: i32, %arg1: i32) -> (i32, i32, i32) {
    %c0_i32 = arith.constant 0 : i32
    %c0_i32_0 = arith.constant 0 : i32
    %c0_i32_1 = arith.constant 0 : i32
    return %arg0, %c0_i32, %c0_i32_0 : i32, i32, i32
  }
}

</mosaic_0001>

<llo_original>
// kernel: tpu_custom_call.1
$region0: #{tpu_custom_call.1}
  #allocation0 [shape = 'u32[]', space=smem, size = 0x4, offset = 0x4, fixed_abs, tag = 'smem constant byte address 0x4 - core index']
  #allocation1 [shape = 'u32[144,128]{1,0:T(1,128)}', space=vmem, size = 0x12000, scoped, tag = 'internal scratch']
  #allocation2 [shape = 'f32[8,128]{1,0:T(8,128)}', space=vmem, size = 0x1000, scoped, tag = 'scratch operand']
  %s0 = inlined_call_operand.vmem [shape: f32[2,8,128], index: 0, kind: input, shape index: {}]
  %s1 = inlined_call_operand.hbm [shape: bf16[128,1024], index: 1, kind: input, shape index: {}]
  %s2 = inlined_call_operand.vmem [shape: f32[1,1024], index: 2, kind: input, shape index: {}]
  %s3 = inlined_call_operand.hbm [shape: bf16[128,1024], index: 3, kind: input, shape index: {}]
  %s4 = inlined_call_operand.vmem [shape: f32[1,1024], index: 4, kind: input, shape index: {}]
  %s5 = inlined_call_operand.vmem [shape: f32[8,1], index: 5, kind: input, shape index: {}]
  %s6 = inlined_call_operand.vmem [shape: f32[8,1], index: 6, kind: input, shape index: {}]
  %s7 = inlined_call_operand.vmem [shape: bf16[8,8], index: 7, kind: input, shape index: {}]
  %s8 = inlined_call_operand.vmem [shape: f32[8,1], index: 8, kind: input, shape index: {}]
  %s9 = inlined_call_operand.hbm [shape: bf16[1024,128], index: 9, kind: input, shape index: {}]
  %s10 = inlined_call_operand.vmem [shape: f32[1,128], index: 10, kind: input, shape index: {}]
  %s11 = inlined_call_operand.hbm [shape: f32[2,8,128], index: 11, kind: output, shape index: {}]
  %s12 = sld [smem:[#allocation0]]
  $region97: #{tpu_custom_call.1} parent=0
    _
  %s14 = ssub.s32 1, %s12
  %s15 = scalar_select 0, %s14, %s12
  $region1: #{tpu_custom_call.1} parent=0
    #allocation3 [shape = 'u8[262144]{0}', space=vmem, size = 0x40000, scoped, tag = 'input window, operand 1']
    #allocation4 [shape = 's32[2]{0}', space=sflag, size = 0x8, scoped, tag = 'scoped memory for tpu_custom_call.1']
    #allocation5 [shape = 's32[2]{0}', space=sflag, size = 0x8, scoped, tag = 'scoped memory for tpu_custom_call.1']
    #allocation6 [shape = 'u8[262144]{0}', space=vmem, size = 0x40000, scoped, tag = 'input window, operand 3']
    #allocation7 [shape = 's32[2]{0}', space=sflag, size = 0x8, scoped, tag = 'scoped memory for tpu_custom_call.1']
    #allocation8 [shape = 'u8[262144]{0}', space=vmem, size = 0x40000, scoped, tag = 'input window, operand 9']
    #allocation9 [shape = 'u8[8192]{0}', space=vmem, size = 0x2000, scoped, tag = 'output window, operand 0']
    %16 = vsyncpa [#allocation4], 0
    %s17 = scalar_lea.sflag [#allocation4], 1
    %18 = vsyncpa %s17, 0
    %19 = vsyncpa [#allocation7], 0
    %s20 = scalar_lea.sflag [#allocation7], 1
    %21 = vsyncpa %s20, 0
    %22 = vsyncpa [#allocation5], 0
    %s23 = scalar_lea.sflag [#allocation5], 1
    %24 = vsyncpa %s23, 0
    loop: start=0, step=1, limit=6
    $region2: #{tpu_custom_call.1} parent=1 // loop_pre_header
      _
    $region3: #{tpu_custom_call.1} parent=1 // loop_header
      %s26 = sphi 0, %s30
      %p27 = scmp.ge.s32.totalorder %s26, 6
      %s33 = sphi 0, %s45
      %s34 = sphi 0, %s41
      %s35 = sphi 0, %s33
      %s36 = sphi 0, %s34
      %s37 = sphi 0, %s35
      %s38 = sphi 0, %s36
      %s48 = sphi 0, %s50
      %s51 = sphi 0, %s48
      %s52 = sphi 0, %s51
      %s68 = sphi 0, %s52
      %s74 = sphi 0, %s76
      %s77 = sphi 0, %s74
      %s78 = sphi 0, %s77
      %s94 = sphi 0, %s78
      %s100 = sphi 0, %s102
      %s103 = sphi 0, %s100
      %s104 = sphi 0, %s103
      %s120 = sphi 0, %s104
      %s126 = sphi 0, %s128
      %s129 = sphi 0, %s126
      %s130 = sphi 0, %s129
      %s146 = sphi 0, %s130
      %s152 = sphi 0, %s154
      %s155 = sphi 0, %s152
      %s156 = sphi 0, %s155
      %s172 = sphi 0, %s156
      %s176 = sphi 0, %s176
      %s178 = sphi 0, %s176
      %s179 = sphi 0, %s178
      %s193 = sphi 0, %s179
      %s197 = sphi 0, %s197
      %s199 = sphi 0, %s197
      %s200 = sphi 0, %s199
      %s214 = sphi 0, %s200
      %s218 = sphi 0, %s218
      %s220 = sphi 0, %s218
      %s221 = sphi 0, %s220
      %s235 = sphi 0, %s221
      %s239 = sphi 0, %s239
      %s241 = sphi 0, %s239
      %s242 = sphi 0, %s241
      %s256 = sphi 0, %s242
      %s262 = sphi 0, %s264
      %s265 = sphi 0, %s262
      %s266 = sphi 0, %s265
      %s282 = sphi 0, %s266
      %s286 = sphi 0, %s286
      %s288 = sphi 0, %s286
      %s289 = sphi 0, %s288
      %s303 = sphi 0, %s289
      %s309 = sphi 0, %s311
      %s312 = sphi 0, %s309
      %s313 = sphi 0, %s312
      %s329 = sphi 0, %s313
    $region4: #{tpu_custom_call.1} parent=1 // loop_header_branch
      %29 = sbr.rel (%p27) target = $region8
    $region5: #{tpu_custom_call.1} parent=1 // loop_body
      %s31 = ssub.s32 %s26, 1
      %s32 = ssub.s32 %s26, 2
      %s39 = sadd.s32 1, %s34
      %p40 = scmp.ge.s32.totalorder %s39, 2
      %s41 = scalar_select %p40, 0, %s39
      %s42 = sadd.s32 1, %s33
      %s43 = scalar_select %p40, %s42, %s33
      %p44 = scmp.ge.s32.totalorder %s43, 2
      %s45 = scalar_select %p44, 0, %s43
      %s46 = ssub.s32 %s33, %s45
      %p47 = scmp.eq.s32.totalorder %s46, 0
      %s49 = sadd.s32 %s48, 1
      %s50 = scalar_select %p47, %s48, %s49
      %p53 = pneg %p47
      %p54 = scmp.eq.s32.totalorder %s26, 3
      %p55 = por %p53, %p54
      %p56 = scmp.ne.s32.totalorder %s48, %s51
      %p57 = scmp.eq.s32.totalorder %s26, 0
      %p58 = por %p56, %p57
      %p59 = scmp.ne.s32.totalorder %s48, %s51
      %p60 = scmp.eq.s32.totalorder %s31, 3
      %p61 = por %p59, %p60
      %p62 = scmp.ne.s32.totalorder %s51, %s52
      %p63 = scmp.eq.s32.totalorder %s31, 0
      %p64 = por %p62, %p63
      %p65 = scmp.ne.s32.totalorder %s51, %s52
      %p66 = scmp.eq.s32.totalorder %s32, 3
      %p67 = por %p65, %p66
      %p69 = scmp.ne.s32.totalorder %s52, %s68
      %p70 = scmp.eq.s32.totalorder %s32, 0
      %p71 = por %p69, %p70
      %s72 = ssub.s32 %s34, %s41
      %p73 = scmp.eq.s32.totalorder %s72, 0
      %s75 = sadd.s32 %s74, 1
      %s76 = scalar_select %p73, %s74, %s75
      %p79 = pneg %p73
      %p80 = scmp.eq.s32.totalorder %s26, 3
      %p81 = por %p79, %p80
      %p82 = scmp.ne.s32.totalorder %s74, %s77
      %p83 = scmp.eq.s32.totalorder %s26, 0
      %p84 = por %p82, %p83
      %p85 = scmp.ne.s32.totalorder %s74, %s77
      %p86 = scmp.eq.s32.totalorder %s31, 3
      %p87 = por %p85, %p86
      %p88 = scmp.ne.s32.totalorder %s77, %s78
      %p89 = scmp.eq.s32.totalorder %s31, 0
      %p90 = por %p88, %p89
      %p91 = scmp.ne.s32.totalorder %s77, %s78
      %p92 = scmp.eq.s32.totalorder %s32, 3
      %p93 = por %p91, %p92
      %p95 = scmp.ne.s32.totalorder %s78, %s94
      %p96 = scmp.eq.s32.totalorder %s32, 0
      %p97 = por %p95, %p96
      %s98 = ssub.s32 %s34, %s41
      %p99 = scmp.eq.s32.totalorder %s98, 0
      %s101 = sadd.s32 %s100, 1
      %s102 = scalar_select %p99, %s100, %s101
      %p105 = pneg %p99
      %p106 = scmp.eq.s32.totalorder %s26, 3
      %p107 = por %p105, %p106
      %p108 = scmp.ne.s32.totalorder %s100, %s103
      %p109 = scmp.eq.s32.totalorder %s26, 0
      %p110 = por %p108, %p109
      %p111 = scmp.ne.s32.totalorder %s100, %s103
      %p112 = scmp.eq.s32.totalorder %s31, 3
      %p113 = por %p111, %p112
      %p114 = scmp.ne.s32.totalorder %s103, %s104
      %p115 = scmp.eq.s32.totalorder %s31, 0
      %p116 = por %p114, %p115
      %p117 = scmp.ne.s32.totalorder %s103, %s104
      %p118 = scmp.eq.s32.totalorder %s32, 3
      %p119 = por %p117, %p118
      %p121 = scmp.ne.s32.totalorder %s104, %s120
      %p122 = scmp.eq.s32.totalorder %s32, 0
      %p123 = por %p121, %p122
      %s124 = ssub.s32 %s34, %s41
      %p125 = scmp.eq.s32.totalorder %s124, 0
      %s127 = sadd.s32 %s126, 1
      %s128 = scalar_select %p125, %s126, %s127
      %p131 = pneg %p125
      %p132 = scmp.eq.s32.totalorder %s26, 3
      %p133 = por %p131, %p132
      %p134 = scmp.ne.s32.totalorder %s126, %s129
      %p135 = scmp.eq.s32.totalorder %s26, 0
      %p136 = por %p134, %p135
      %p137 = scmp.ne.s32.totalorder %s126, %s129
      %p138 = scmp.eq.s32.totalorder %s31, 3
      %p139 = por %p137, %p138
      %p140 = scmp.ne.s32.totalorder %s129, %s130
      %p141 = scmp.eq.s32.totalorder %s31, 0
      %p142 = por %p140, %p141
      %p143 = scmp.ne.s32.totalorder %s129, %s130
      %p144 = scmp.eq.s32.totalorder %s32, 3
      %p145 = por %p143, %p144
      %p147 = scmp.ne.s32.totalorder %s130, %s146
      %p148 = scmp.eq.s32.totalorder %s32, 0
      %p149 = por %p147, %p148
      %s150 = ssub.s32 %s34, %s41
      %p151 = scmp.eq.s32.totalorder %s150, 0
      %s153 = sadd.s32 %s152, 1
      %s154 = scalar_select %p151, %s152, %s153
      %p157 = pneg %p151
      %p158 = scmp.eq.s32.totalorder %s26, 3
      %p159 = por %p157, %p158
      %p160 = scmp.ne.s32.totalorder %s152, %s155
      %p161 = scmp.eq.s32.totalorder %s26, 0
      %p162 = por %p160, %p161
      %p163 = scmp.ne.s32.totalorder %s152, %s155
      %p164 = scmp.eq.s32.totalorder %s31, 3
      %p165 = por %p163, %p164
      %p166 = scmp.ne.s32.totalorder %s155, %s156
      %p167 = scmp.eq.s32.totalorder %s31, 0
      %p168 = por %p166, %p167
      %p169 = scmp.ne.s32.totalorder %s155, %s156
      %p170 = scmp.eq.s32.totalorder %s32, 3
      %p171 = por %p169, %p170
      %p173 = scmp.ne.s32.totalorder %s156, %s172
      %p174 = scmp.eq.s32.totalorder %s32, 0
      %p175 = por %p173, %p174
      %s177 = sadd.s32 %s176, 1
      %p180 = scmp.eq.s32.totalorder %s26, 3
      %p181 = scmp.ne.s32.totalorder %s176, %s178
      %p182 = scmp.eq.s32.totalorder %s26, 0
      %p183 = por %p181, %p182
      %p184 = scmp.ne.s32.totalorder %s176, %s178
      %p185 = scmp.eq.s32.totalorder %s31, 3
      %p186 = por %p184, %p185
      %p187 = scmp.ne.s32.totalorder %s178, %s179
      %p188 = scmp.eq.s32.totalorder %s31, 0
      %p189 = por %p187, %p188
      %p190 = scmp.ne.s32.totalorder %s178, %s179
      %p191 = scmp.eq.s32.totalorder %s32, 3
      %p192 = por %p190, %p191
      %p194 = scmp.ne.s32.totalorder %s179, %s193
      %p195 = scmp.eq.s32.totalorder %s32, 0
      %p196 = por %p194, %p195
      %s198 = sadd.s32 %s197, 1
      %p201 = scmp.eq.s32.totalorder %s26, 3
      %p202 = scmp.ne.s32.totalorder %s197, %s199
      %p203 = scmp.eq.s32.totalorder %s26, 0
      %p204 = por %p202, %p203
      %p205 = scmp.ne.s32.totalorder %s197, %s199
      %p206 = scmp.eq.s32.totalorder %s31, 3
      %p207 = por %p205, %p206
      %p208 = scmp.ne.s32.totalorder %s199, %s200
      %p209 = scmp.eq.s32.totalorder %s31, 0
      %p210 = por %p208, %p209
      %p211 = scmp.ne.s32.totalorder %s199, %s200
      %p212 = scmp.eq.s32.totalorder %s32, 3
      %p213 = por %p211, %p212
      %p215 = scmp.ne.s32.totalorder %s200, %s214
      %p216 = scmp.eq.s32.totalorder %s32, 0
      %p217 = por %p215, %p216
      %s219 = sadd.s32 %s218, 1
      %p222 = scmp.eq.s32.totalorder %s26, 3
      %p223 = scmp.ne.s32.totalorder %s218, %s220
      %p224 = scmp.eq.s32.totalorder %s26, 0
      %p225 = por %p223, %p224
      %p226 = scmp.ne.s32.totalorder %s218, %s220
      %p227 = scmp.eq.s32.totalorder %s31, 3
      %p228 = por %p226, %p227
      %p229 = scmp.ne.s32.totalorder %s220, %s221
      %p230 = scmp.eq.s32.totalorder %s31, 0
      %p231 = por %p229, %p230
      %p232 = scmp.ne.s32.totalorder %s220, %s221
      %p233 = scmp.eq.s32.totalorder %s32, 3
      %p234 = por %p232, %p233
      %p236 = scmp.ne.s32.totalorder %s221, %s235
      %p237 = scmp.eq.s32.totalorder %s32, 0
      %p238 = por %p236, %p237
      %s240 = sadd.s32 %s239, 1
      %p243 = scmp.eq.s32.totalorder %s26, 3
      %p244 = scmp.ne.s32.totalorder %s239, %s241
      %p245 = scmp.eq.s32.totalorder %s26, 0
      %p246 = por %p244, %p245
      %p247 = scmp.ne.s32.totalorder %s239, %s241
      %p248 = scmp.eq.s32.totalorder %s31, 3
      %p249 = por %p247, %p248
      %p250 = scmp.ne.s32.totalorder %s241, %s242
      %p251 = scmp.eq.s32.totalorder %s31, 0
      %p252 = por %p250, %p251
      %p253 = scmp.ne.s32.totalorder %s241, %s242
      %p254 = scmp.eq.s32.totalorder %s32, 3
      %p255 = por %p253, %p254
      %p257 = scmp.ne.s32.totalorder %s242, %s256
      %p258 = scmp.eq.s32.totalorder %s32, 0
      %p259 = por %p257, %p258
      %s260 = ssub.s32 %s34, %s41
      %p261 = scmp.eq.s32.totalorder %s260, 0
      %s263 = sadd.s32 %s262, 1
      %s264 = scalar_select %p261, %s262, %s263
      %p267 = pneg %p261
      %p268 = scmp.eq.s32.totalorder %s26, 3
      %p269 = por %p267, %p268
      %p270 = scmp.ne.s32.totalorder %s262, %s265
      %p271 = scmp.eq.s32.totalorder %s26, 0
      %p272 = por %p270, %p271
      %p273 = scmp.ne.s32.totalorder %s262, %s265
      %p274 = scmp.eq.s32.totalorder %s31, 3
      %p275 = por %p273, %p274
      %p276 = scmp.ne.s32.totalorder %s265, %s266
      %p277 = scmp.eq.s32.totalorder %s31, 0
      %p278 = por %p276, %p277
      %p279 = scmp.ne.s32.totalorder %s265, %s266
      %p280 = scmp.eq.s32.totalorder %s32, 3
      %p281 = por %p279, %p280
      %p283 = scmp.ne.s32.totalorder %s266, %s282
      %p284 = scmp.eq.s32.totalorder %s32, 0
      %p285 = por %p283, %p284
      %s287 = sadd.s32 %s286, 1
      %p290 = scmp.eq.s32.totalorder %s26, 3
      %p291 = scmp.ne.s32.totalorder %s286, %s288
      %p292 = scmp.eq.s32.totalorder %s26, 0
      %p293 = por %p291, %p292
      %p294 = scmp.ne.s32.totalorder %s286, %s288
      %p295 = scmp.eq.s32.totalorder %s31, 3
      %p296 = por %p294, %p295
      %p297 = scmp.ne.s32.totalorder %s288, %s289
      %p298 = scmp.eq.s32.totalorder %s31, 0
      %p299 = por %p297, %p298
      %p300 = scmp.ne.s32.totalorder %s288, %s289
      %p301 = scmp.eq.s32.totalorder %s32, 3
      %p302 = por %p300, %p301
      %p304 = scmp.ne.s32.totalorder %s289, %s303
      %p305 = scmp.eq.s32.totalorder %s32, 0
      %p306 = por %p304, %p305
      %s307 = ssub.s32 %s33, %s45
      %p308 = scmp.eq.s32.totalorder %s307, 0
      %s310 = sadd.s32 %s309, 1
      %s311 = scalar_select %p308, %s309, %s310
      %p314 = pneg %p308
      %p315 = scmp.eq.s32.totalorder %s26, 3
      %p316 = por %p314, %p315
      %p317 = scmp.ne.s32.totalorder %s309, %s312
      %p318 = scmp.eq.s32.totalorder %s26, 0
      %p319 = por %p317, %p318
      %p320 = scmp.ne.s32.totalorder %s309, %s312
      %p321 = scmp.eq.s32.totalorder %s31, 3
      %p322 = por %p320, %p321
      %p323 = scmp.ne.s32.totalorder %s312, %s313
      %p324 = scmp.eq.s32.totalorder %s31, 0
      %p325 = por %p323, %p324
      %p326 = scmp.ne.s32.totalorder %s312, %s313
      %p327 = scmp.eq.s32.totalorder %s32, 3
      %p328 = por %p326, %p327
      %p330 = scmp.ne.s32.totalorder %s313, %s329
      %p331 = scmp.eq.s32.totalorder %s32, 0
      %p332 = por %p330, %p331
      %p333 = scmp.le.s32.totalorder 1, %s26
      %p334 = scmp.lt.s32.totalorder %s26, 5
      %p335 = pnand %p333, %p334
      %p336 = pneg %p335
      // Predicated region
      $region9: #{tpu_custom_call.1} parent=5 // pred_check
        _
      $region10: #{tpu_custom_call.1} parent=5 // pred_check_branch
        %338 = sbr.rel (%p335) target = $region12
      $region11: #{tpu_custom_call.1} parent=5 // pred_region
        %s339 = ssub.s32 %s26, 1
        // Predicated region
        $region13: #{tpu_custom_call.1} parent=11 // pred_check
          %p340 = pneg %p189
        $region14: #{tpu_custom_call.1} parent=11 // pred_check_branch
          %342 = sbr.rel (%p340) target = $region16
        $region15: #{tpu_custom_call.1} parent=11 // pred_region
          _
        $region16: #{tpu_custom_call.1} parent=11 // pred_fallthru
          _
        // Predicated region
        $region17: #{tpu_custom_call.1} parent=11 // pred_check
          %p343 = pneg %p210
        $region18: #{tpu_custom_call.1} parent=11 // pred_check_branch
          %345 = sbr.rel (%p343) target = $region20
        $region19: #{tpu_custom_call.1} parent=11 // pred_region
          _
        $region20: #{tpu_custom_call.1} parent=11 // pred_fallthru
          _
        // Predicated region
        $region21: #{tpu_custom_call.1} parent=11 // pred_check
          %p346 = pneg %p231
        $region22: #{tpu_custom_call.1} parent=11 // pred_check_branch
          %348 = sbr.rel (%p346) target = $region24
        $region23: #{tpu_custom_call.1} parent=11 // pred_region
          _
        $region24: #{tpu_custom_call.1} parent=11 // pred_fallthru
          _
        // Predicated region
        $region25: #{tpu_custom_call.1} parent=11 // pred_check
          %p349 = pneg %p252
        $region26: #{tpu_custom_call.1} parent=11 // pred_check_branch
          %351 = sbr.rel (%p349) target = $region28
        $region27: #{tpu_custom_call.1} parent=11 // pred_region
          _
        $region28: #{tpu_custom_call.1} parent=11 // pred_fallthru
          _
        // Predicated region
        $region29: #{tpu_custom_call.1} parent=11 // pred_check
          %p352 = pneg %p299
        $region30: #{tpu_custom_call.1} parent=11 // pred_check_branch
          %354 = sbr.rel (%p352) target = $region32
        $region31: #{tpu_custom_call.1} parent=11 // pred_region
          _
        $region32: #{tpu_custom_call.1} parent=11 // pred_fallthru
          _
      $region12: #{tpu_custom_call.1} parent=5 // pred_fallthru
        _
      %p355 = scmp.lt.s32.totalorder %s26, 4
      // Predicated region
      $region33: #{tpu_custom_call.1} parent=5 // pred_check
        %p356 = pneg %p355
      $region34: #{tpu_custom_call.1} parent=5 // pred_check_branch
        %358 = sbr.rel (%p356) target = $region36
      $region35: #{tpu_custom_call.1} parent=5 // pred_region
        // Predicated region
        $region37: #{tpu_custom_call.1} parent=35 // pred_check
          %p359 = pneg %p58
        $region38: #{tpu_custom_call.1} parent=35 // pred_check_branch
          %361 = sbr.rel (%p359) target = $region40
        $region39: #{tpu_custom_call.1} parent=35 // pred_region
          %p362 = scmp.lt.s32.totalorder %s33, 1
          %s363 = scalar_select %p362, %s33, 1
          %s364 = smul.addr %s363, 8
          %s365 = scalar_lea.vmem %s0, %s364
        $region40: #{tpu_custom_call.1} parent=35 // pred_fallthru
          _
        // Predicated region
        $region41: #{tpu_custom_call.1} parent=35 // pred_check
          %p366 = pneg %p84
        $region42: #{tpu_custom_call.1} parent=35 // pred_check_branch
          %368 = sbr.rel (%p366) target = $region44
        $region43: #{tpu_custom_call.1} parent=35 // pred_region
          %s369 = sand.u32 %s74, 1
          %s370 = scalar_lea.sflag [#allocation4], %s369
          %s371 = sand.u32 %s74, 1
          %s372 = smul.addr %s371, 256
          %s373 = scalar_lea.vmem [#allocation3], %s372
          %s374 = smul.u32 4, %s34
          %s376 = ssub.s32 4096, 4096
          %377 = vsyncadd %s370, %s376
          %s378 = smul.addr %s374, 64
          %s379 = scalar_lea.hbm %s1, %s378
          %s380 = sshll.u32 %s373, 4
          %s381 = int_to_ptr.vmem [resolvable:$true] %s380
          %386 = dma.hbm_to_vmem [thread:$0]  %s379, 4096, %s381, %s370, 512, 256, 16
        $region44: #{tpu_custom_call.1} parent=35 // pred_fallthru
          _
        // Predicated region
        $region45: #{tpu_custom_call.1} parent=35 // pred_check
          %p387 = pneg %p110
        $region46: #{tpu_custom_call.1} parent=35 // pred_check_branch
          %389 = sbr.rel (%p387) target = $region48
        $region47: #{tpu_custom_call.1} parent=35 // pred_region
          %s390 = smul.u32 4, %s34
          %p391 = scmp.lt.s32.totalorder %s390, 7
          %s392 = scalar_select %p391, %s390, 7
          %s393 = scalar_lea.vmem %s2, %s392
          %s394 = smul.u32 4, %s34
        $region48: #{tpu_custom_call.1} parent=35 // pred_fallthru
          _
        // Predicated region
        $region49: #{tpu_custom_call.1} parent=35 // pred_check
          %p395 = pneg %p136
        $region50: #{tpu_custom_call.1} parent=35 // pred_check_branch
          %397 = sbr.rel (%p395) target = $region52
        $region51: #{tpu_custom_call.1} parent=35 // pred_region
          %s398 = sand.u32 %s26, 1
          %s399 = scalar_lea.sflag [#allocation7], %s398
          %s400 = sand.u32 %s126, 1
          %s401 = smul.addr %s400, 256
          %s402 = scalar_lea.vmem [#allocation6], %s401
          %s403 = smul.u32 4, %s34
          %s405 = ssub.s32 4096, 4096
          %406 = vsyncadd %s399, %s405
          %s407 = smul.addr %s403, 64
          %s408 = scalar_lea.hbm %s3, %s407
          %s409 = sshll.u32 %s402, 4
          %s410 = int_to_ptr.vmem [resolvable:$true] %s409
          %415 = dma.hbm_to_vmem [thread:$0]  %s408, 4096, %s410, %s399, 512, 256, 16
        $region52: #{tpu_custom_call.1} parent=35 // pred_fallthru
          _
        // Predicated region
        $region53: #{tpu_custom_call.1} parent=35 // pred_check
          %p416 = pneg %p162
        $region54: #{tpu_custom_call.1} parent=35 // pred_check_branch
          %418 = sbr.rel (%p416) target = $region56
        $region55: #{tpu_custom_call.1} parent=35 // pred_region
          %s419 = smul.u32 4, %s34
          %p420 = scmp.lt.s32.totalorder %s419, 7
          %s421 = scalar_select %p420, %s419, 7
          %s422 = scalar_lea.vmem %s4, %s421
          %s423 = smul.u32 4, %s34
        $region56: #{tpu_custom_call.1} parent=35 // pred_fallthru
          _
        // Predicated region
        $region57: #{tpu_custom_call.1} parent=35 // pred_check
          %p424 = pneg %p272
        $region58: #{tpu_custom_call.1} parent=35 // pred_check_branch
          %426 = sbr.rel (%p424) target = $region60
        $region59: #{tpu_custom_call.1} parent=35 // pred_region
          %s427 = sand.u32 %s26, 1
          %s428 = scalar_lea.sflag [#allocation7], %s427
          %s429 = sand.u32 %s262, 1
          %s430 = smul.addr %s429, 256
          %s431 = scalar_lea.vmem [#allocation8], %s430
          %s432 = smul.u32 64, %s34
          %s434 = ssub.s32 4096, 4096
          %435 = vsyncadd %s428, %s434
          %s436 = smul.addr %s432, 64
          %s437 = scalar_lea.hbm %s9, %s436
          %s438 = sshll.u32 %s431, 4
          %s439 = int_to_ptr.vmem [resolvable:$true] %s438
          %444 = dma.hbm_to_vmem [thread:$0]  %s437, 4096, %s439, %s428, 64, 64, 4
        $region60: #{tpu_custom_call.1} parent=35 // pred_fallthru
          _
      $region36: #{tpu_custom_call.1} parent=5 // pred_fallthru
        _
      %p445 = scmp.le.s32.totalorder 1, %s26
      %p446 = scmp.lt.s32.totalorder %s26, 5
      %p447 = pnand %p445, %p446
      %p448 = pneg %p447
      // Predicated region
      $region61: #{tpu_custom_call.1} parent=5 // pred_check
        _
      $region62: #{tpu_custom_call.1} parent=5 // pred_check_branch
        %450 = sbr.rel (%p447) target = $region64
      $region63: #{tpu_custom_call.1} parent=5 // pred_region
        %s451 = ssub.s32 %s26, 1
        %s452 = sand.u32 %s77, 1
        %s453 = scalar_lea.sflag [#allocation4], %s452
        %s454 = sand.u32 %s77, 1
        %s455 = smul.addr %s454, 256
        %s456 = scalar_lea.vmem [#allocation3], %s455
        // Predicated region
        $region65: #{tpu_custom_call.1} parent=63 // pred_check
          %p457 = pneg %p90
        $region66: #{tpu_custom_call.1} parent=63 // pred_check_branch
          %459 = sbr.rel (%p457) target = $region68
        $region67: #{tpu_custom_call.1} parent=63 // pred_region
          %460 = dma.done %s453, 4096
        $region68: #{tpu_custom_call.1} parent=63 // pred_fallthru
          _
        %s461 = sand.u32 %s31, 1
        %s462 = scalar_lea.sflag [#allocation7], %s461
        %s463 = sand.u32 %s129, 1
        %s464 = smul.addr %s463, 256
        %s465 = scalar_lea.vmem [#allocation6], %s464
        // Predicated region
        $region69: #{tpu_custom_call.1} parent=63 // pred_check
          %p466 = pneg %p142
        $region70: #{tpu_custom_call.1} parent=63 // pred_check_branch
          %468 = sbr.rel (%p466) target = $region72
        $region71: #{tpu_custom_call.1} parent=63 // pred_region
          %469 = dma.done %s462, 4096
        $region72: #{tpu_custom_call.1} parent=63 // pred_fallthru
          _
        %s470 = sand.u32 %s31, 1
        %s471 = scalar_lea.sflag [#allocation7], %s470
        %s472 = sand.u32 %s265, 1
        %s473 = smul.addr %s472, 256
        %s474 = scalar_lea.vmem [#allocation8], %s473
        // Predicated region
        $region73: #{tpu_custom_call.1} parent=63 // pred_check
          %p475 = pneg %p278
        $region74: #{tpu_custom_call.1} parent=63 // pred_check_branch
          %477 = sbr.rel (%p475) target = $region76
        $region75: #{tpu_custom_call.1} parent=63 // pred_region
          %478 = dma.done %s471, 4096
        $region76: #{tpu_custom_call.1} parent=63 // pred_fallthru
          _
        %p479 = scmp.lt.s32.totalorder %s35, 1
        %s480 = scalar_select %p479, %s35, 1
        %s481 = smul.addr %s480, 8
        %s482 = scalar_lea.vmem %s0, %s481
        %p483 = pneg %p64
        %p484 = pneg %p61
        %s485 = sand.u32 %s77, 1
        %s486 = scalar_lea.sflag [#allocation4], %s485
        %s487 = sand.u32 %s77, 1
        %s488 = smul.addr %s487, 256
        %s489 = scalar_lea.vmem [#allocation3], %s488
        %p490 = pneg %p90
        %p491 = pneg %p87
        %s492 = smul.u32 4, %s36
        %p493 = scmp.lt.s32.totalorder %s492, 7
        %s494 = scalar_select %p493, %s492, 7
        %s495 = scalar_lea.vmem %s2, %s494
        %p496 = pneg %p116
        %p497 = pneg %p113
        %s498 = sand.u32 %s31, 1
        %s499 = scalar_lea.sflag [#allocation7], %s498
        %s500 = sand.u32 %s129, 1
        %s501 = smul.addr %s500, 256
        %s502 = scalar_lea.vmem [#allocation6], %s501
        %p503 = pneg %p142
        %p504 = pneg %p139
        %s505 = smul.u32 4, %s36
        %p506 = scmp.lt.s32.totalorder %s505, 7
        %s507 = scalar_select %p506, %s505, 7
        %s508 = scalar_lea.vmem %s4, %s507
        %p509 = pneg %p168
        %p510 = pneg %p165
        %p511 = pneg %p189
        %p512 = pneg %p186
        %p513 = pneg %p210
        %p514 = pneg %p207
        %p515 = pneg %p231
        %p516 = pneg %p228
        %p517 = pneg %p252
        %p518 = pneg %p249
        %s519 = sand.u32 %s31, 1
        %s520 = scalar_lea.sflag [#allocation7], %s519
        %s521 = sand.u32 %s265, 1
        %s522 = smul.addr %s521, 256
        %s523 = scalar_lea.vmem [#allocation8], %s522
        %p524 = pneg %p278
        %p525 = pneg %p275
        %p526 = pneg %p299
        %p527 = pneg %p296
        %p528 = pneg %p325
        %p529 = pneg %p322
        %s530 = sand.u32 %s312, 1
        %s531 = scalar_lea.sflag [#allocation5], %s530
        %s532 = sand.u32 %s312, 1
        %s533 = smul.addr %s532, 8
        %s534 = scalar_lea.vmem [#allocation9], %s533
        %p535 = scmp.lt.s32.totalorder %s35, 1
        %s536 = scalar_select %p535, %s35, 1
        %s537 = smul.addr %s536, 8
        %s538 = scalar_lea.vmem %s0, %s537
        %s539 = smul.u32 4, %s36
        %s540 = smul.u32 4, %s36
        %p541 = scmp.lt.s32.totalorder %s540, 7
        %s542 = scalar_select %p541, %s540, 7
        %s543 = scalar_lea.vmem %s2, %s542
        %s544 = smul.u32 4, %s36
        %s545 = smul.u32 4, %s36
        %s546 = smul.u32 4, %s36
        %p547 = scmp.lt.s32.totalorder %s546, 7
        %s548 = scalar_select %p547, %s546, 7
        %s549 = scalar_lea.vmem %s4, %s548
        %s550 = smul.u32 4, %s36
        %s551 = smul.u32 64, %s36
        %p553 = scmp.eq.s32.totalorder %s36, 0
        // Predicated region
        $region77: #{tpu_custom_call.1} parent=63 // pred_check
          %p554 = pneg %p553
        $region78: #{tpu_custom_call.1} parent=63 // pred_check_branch
          %556 = sbr.rel (%p554) target = $region80
        $region79: #{tpu_custom_call.1} parent=63 // pred_region
          %557 = vst [vmem:[#allocation2] sm:$0xff] 0.0
        $region80: #{tpu_custom_call.1} parent=63 // pred_fallthru
          _
        %v558 = vld [vmem:[%s538] sm:$0xff]
        %v559 = vpack.c.bf16 %v558, %v558
        %v560 = vld [vmem:[%s456] sm:$0xff]
        %v561 = vld [vmem:[%s456 + $0x8] sm:$0xff]
        %v562 = vld [vmem:[%s456 + $0x10] sm:$0xff]
        %v563 = vld [vmem:[%s456 + $0x18] sm:$0xff]
        %v564 = vld [vmem:[%s456 + $0x20] sm:$0xff]
        %v565 = vld [vmem:[%s456 + $0x28] sm:$0xff]
        %v566 = vld [vmem:[%s456 + $0x30] sm:$0xff]
        %v567 = vld [vmem:[%s456 + $0x38] sm:$0xff]
        %v568 = vld [vmem:[%s456 + $0x40] sm:$0xff]
        %v569 = vld [vmem:[%s456 + $0x48] sm:$0xff]
        %v570 = vld [vmem:[%s456 + $0x50] sm:$0xff]
        %v571 = vld [vmem:[%s456 + $0x58] sm:$0xff]
        %v572 = vld [vmem:[%s456 + $0x60] sm:$0xff]
        %v573 = vld [vmem:[%s456 + $0x68] sm:$0xff]
        %v574 = vld [vmem:[%s456 + $0x70] sm:$0xff]
        %v575 = vld [vmem:[%s456 + $0x78] sm:$0xff]
        %v576 = vld [vmem:[%s456 + $0x80] sm:$0xff]
        %v577 = vld [vmem:[%s456 + $0x88] sm:$0xff]
        %v578 = vld [vmem:[%s456 + $0x90] sm:$0xff]
        %v579 = vld [vmem:[%s456 + $0x98] sm:$0xff]
        %v580 = vld [vmem:[%s456 + $0xa0] sm:$0xff]
        %v581 = vld [vmem:[%s456 + $0xa8] sm:$0xff]
        %v582 = vld [vmem:[%s456 + $0xb0] sm:$0xff]
        %v583 = vld [vmem:[%s456 + $0xb8] sm:$0xff]
        %v584 = vld [vmem:[%s456 + $0xc0] sm:$0xff]
        %v585 = vld [vmem:[%s456 + $0xc8] sm:$0xff]
        %v586 = vld [vmem:[%s456 + $0xd0] sm:$0xff]
        %v587 = vld [vmem:[%s456 + $0xd8] sm:$0xff]
        %v588 = vld [vmem:[%s456 + $0xe0] sm:$0xff]
        %v589 = vld [vmem:[%s456 + $0xe8] sm:$0xff]
        %v590 = vld [vmem:[%s456 + $0xf0] sm:$0xff]
        %v591 = vld [vmem:[%s456 + $0xf8] sm:$0xff]
        %v592 = vld [vmem:[%s543] sm:$0xf]
        %v594 = vlaneseq
        %v595 = vshrl.u32 %v594, 7
        %v596 = vsub.s32 0, %v595
        %v597 = vrot.slane %v592, %v596
        %v598 = vlaneseq
        %v599 = vshrl.u32 %v598, 7
        %v600 = vsub.s32 1, %v599
        %v601 = vrot.slane %v592, %v600
        %v602 = vlaneseq
        %v603 = vshrl.u32 %v602, 7
        %v604 = vsub.s32 2, %v603
        %v605 = vrot.slane %v592, %v604
        %v606 = vlaneseq
        %v607 = vshrl.u32 %v606, 7
        %v608 = vsub.s32 3, %v607
        %v609 = vrot.slane %v592, %v608
        %v646 = vunpack.c.l.b16 %v560
        %v647 = vunpack.c.h.b16 %v560
        %v648 = vunpack.c.l.b16 %v561
        %v649 = vunpack.c.h.b16 %v561
        %v650 = vunpack.c.l.b16 %v562
        %v651 = vunpack.c.h.b16 %v562
        %v652 = vunpack.c.l.b16 %v563
        %v653 = vunpack.c.h.b16 %v563
        %v654 = vunpack.c.l.b16 %v564
        %v655 = vunpack.c.h.b16 %v564
        %v656 = vunpack.c.l.b16 %v565
        %v657 = vunpack.c.h.b16 %v565
        %v658 = vunpack.c.l.b16 %v566
        %v659 = vunpack.c.h.b16 %v566
        %v660 = vunpack.c.l.b16 %v567
        %v661 = vunpack.c.h.b16 %v567
        %v662 = vunpack.c.l.b16 %v568
        %v663 = vunpack.c.h.b16 %v568
        %v664 = vunpack.c.l.b16 %v569
        %v665 = vunpack.c.h.b16 %v569
        %v666 = vunpack.c.l.b16 %v570
        %v667 = vunpack.c.h.b16 %v570
        %v668 = vunpack.c.l.b16 %v571
        %v669 = vunpack.c.h.b16 %v571
        %v670 = vunpack.c.l.b16 %v572
        %v671 = vunpack.c.h.b16 %v572
        %v672 = vunpack.c.l.b16 %v573
        %v673 = vunpack.c.h.b16 %v573
        %v674 = vunpack.c.l.b16 %v574
        %v675 = vunpack.c.h.b16 %v574
        %v676 = vunpack.c.l.b16 %v575
        %v677 = vunpack.c.h.b16 %v575
        %v678 = vunpack.c.l.b16 %v576
        %v679 = vunpack.c.h.b16 %v576
        %v680 = vunpack.c.l.b16 %v577
        %v681 = vunpack.c.h.b16 %v577
        %v682 = vunpack.c.l.b16 %v578
        %v683 = vunpack.c.h.b16 %v578
        %v684 = vunpack.c.l.b16 %v579
        %v685 = vunpack.c.h.b16 %v579
        %v686 = vunpack.c.l.b16 %v580
        %v687 = vunpack.c.h.b16 %v580
        %v688 = vunpack.c.l.b16 %v581
        %v689 = vunpack.c.h.b16 %v581
        %v690 = vunpack.c.l.b16 %v582
        %v691 = vunpack.c.h.b16 %v582
        %v692 = vunpack.c.l.b16 %v583
        %v693 = vunpack.c.h.b16 %v583
        %v694 = vunpack.c.l.b16 %v584
        %v695 = vunpack.c.h.b16 %v584
        %v696 = vunpack.c.l.b16 %v585
        %v697 = vunpack.c.h.b16 %v585
        %v698 = vunpack.c.l.b16 %v586
        %v699 = vunpack.c.h.b16 %v586
        %v700 = vunpack.c.l.b16 %v587
        %v701 = vunpack.c.h.b16 %v587
        %v702 = vunpack.c.l.b16 %v588
        %v703 = vunpack.c.h.b16 %v588
        %v704 = vunpack.c.l.b16 %v589
        %v705 = vunpack.c.h.b16 %v589
        %v706 = vunpack.c.l.b16 %v590
        %v707 = vunpack.c.h.b16 %v590
        %v708 = vunpack.c.l.b16 %v591
        %v709 = vunpack.c.h.b16 %v591
        %v710 = vpack.c.b16 %v650, %v646
        %v711 = vpack.c.b16 %v651, %v647
        %v712 = vpack.c.b16 %v652, %v648
        %v713 = vpack.c.b16 %v653, %v649
        %v714 = vpack.c.b16 %v658, %v654
        %v715 = vpack.c.b16 %v659, %v655
        %v716 = vpack.c.b16 %v660, %v656
        %v717 = vpack.c.b16 %v661, %v657
        %v718 = vpack.c.b16 %v666, %v662
        %v719 = vpack.c.b16 %v667, %v663
        %v720 = vpack.c.b16 %v668, %v664
        %v721 = vpack.c.b16 %v669, %v665
        %v722 = vpack.c.b16 %v674, %v670
        %v723 = vpack.c.b16 %v675, %v671
        %v724 = vpack.c.b16 %v676, %v672
        %v725 = vpack.c.b16 %v677, %v673
        %v726 = vpack.c.b16 %v682, %v678
        %v727 = vpack.c.b16 %v683, %v679
        %v728 = vpack.c.b16 %v684, %v680
        %v729 = vpack.c.b16 %v685, %v681
        %v730 = vpack.c.b16 %v690, %v686
        %v731 = vpack.c.b16 %v691, %v687
        %v732 = vpack.c.b16 %v692, %v688
        %v733 = vpack.c.b16 %v693, %v689
        %v734 = vpack.c.b16 %v698, %v694
        %v735 = vpack.c.b16 %v699, %v695
        %v736 = vpack.c.b16 %v700, %v696
        %v737 = vpack.c.b16 %v701, %v697
        %v738 = vpack.c.b16 %v706, %v702
        %v739 = vpack.c.b16 %v707, %v703
        %v740 = vpack.c.b16 %v708, %v704
        %v741 = vpack.c.b16 %v709, %v705
        %774 = vmatprep.subr.bf16.mxu0 %v711
        %775 = vmatpush1.bf16.msra.mxu0 %v710
        %776 = vmatprep.subr.bf16.mxu0 %v715
        %777 = vmatpush1.bf16.msra.mxu0 %v714
        %778 = vmatprep.subr.bf16.mxu0 %v719
        %779 = vmatpush1.bf16.msra.mxu0 %v718
        %780 = vmatprep.subr.bf16.mxu0 %v723
        %781 = vmatpush1.bf16.msra.mxu0 %v722
        %782 = vmatprep.subr.bf16.mxu0 %v727
        %783 = vmatpush1.bf16.msra.mxu0 %v726
        %784 = vmatprep.subr.bf16.mxu0 %v731
        %785 = vmatpush1.bf16.msra.mxu0 %v730
        %786 = vmatprep.subr.bf16.mxu0 %v735
        %787 = vmatpush1.bf16.msra.mxu0 %v734
        %788 = vmatprep.subr.bf16.mxu0 %v739
        %789 = vmatpush1.bf16.msra.mxu0 %v738
        %790 = vmatprep.subr.bf16.mxu0 0
        %791 = vmatpush1.bf16.msra.mxu0 0
        %792 = vmatprep.subr.bf16.mxu0 0
        %793 = vmatpush1.bf16.msra.mxu0 0
        %794 = vmatprep.subr.bf16.mxu0 0
        %795 = vmatpush1.bf16.msra.mxu0 0
        %796 = vmatprep.subr.bf16.mxu0 0
        %797 = vmatpush1.bf16.msra.mxu0 0
        %798 = vmatprep.subr.bf16.mxu0 0
        %799 = vmatpush1.bf16.msra.mxu0 0
        %800 = vmatprep.subr.bf16.mxu0 0
        %801 = vmatpush1.bf16.msra.mxu0 0
        %802 = vmatprep.subr.bf16.mxu0 0
        %803 = vmatpush1.bf16.msra.mxu0 0
        %804 = vmatprep.subr.bf16.mxu0 0
        %805 = vmatpush1.bf16.msra.mxu0 0
        %806 = vmatprep.mubr.bf16.mxu0 0
        %807 = vmatmul.mubr.bf16.gmra.mrb[0].mxu0 %v559
        %v808 = vpop.f32.mrb[0].mxu0
        %v809 = vadd.f32 %v597, %v808
        %v810 = vpop.f32.mrb[0].mxu0
        %v811 = vadd.f32 %v601, %v810
        %v812 = vpop.f32.mrb[0].mxu0
        %v813 = vpop.f32.mrb[0].mxu0
        %814 = vdwg.mxu0
        %815 = vmatprep.subr.bf16.mxu0 %v713
        %816 = vmatpush1.bf16.msra.mxu0 %v712
        %817 = vmatprep.subr.bf16.mxu0 %v717
        %818 = vmatpush1.bf16.msra.mxu0 %v716
        %819 = vmatprep.subr.bf16.mxu0 %v721
        %820 = vmatpush1.bf16.msra.mxu0 %v720
        %821 = vmatprep.subr.bf16.mxu0 %v725
        %822 = vmatpush1.bf16.msra.mxu0 %v724
        %823 = vmatprep.subr.bf16.mxu0 %v729
        %824 = vmatpush1.bf16.msra.mxu0 %v728
        %825 = vmatprep.subr.bf16.mxu0 %v733
        %826 = vmatpush1.bf16.msra.mxu0 %v732
        %827 = vmatprep.subr.bf16.mxu0 %v737
        %828 = vmatpush1.bf16.msra.mxu0 %v736
        %829 = vmatprep.subr.bf16.mxu0 %v741
        %830 = vmatpush1.bf16.msra.mxu0 %v740
        %831 = vmatprep.subr.bf16.mxu0 0
        %832 = vmatpush1.bf16.msra.mxu0 0
        %833 = vmatprep.subr.bf16.mxu0 0
        %834 = vmatpush1.bf16.msra.mxu0 0
        %835 = vmatprep.subr.bf16.mxu0 0
        %836 = vmatpush1.bf16.msra.mxu0 0
        %837 = vmatprep.subr.bf16.mxu0 0
        %838 = vmatpush1.bf16.msra.mxu0 0
        %839 = vmatprep.subr.bf16.mxu0 0
        %840 = vmatpush1.bf16.msra.mxu0 0
        %841 = vmatprep.subr.bf16.mxu0 0
        %842 = vmatpush1.bf16.msra.mxu0 0
        %843 = vmatprep.subr.bf16.mxu0 0
        %844 = vmatpush1.bf16.msra.mxu0 0
        %845 = vmatprep.subr.bf16.mxu0 0
        %846 = vmatpush1.bf16.msra.mxu0 0
        %847 = vmatprep.mubr.bf16.mxu0 0
        %848 = vmatmul.mubr.bf16.gmra.mrb[0].mxu0 %v559
        %v849 = vpop.f32.mrb[0].mxu0
        %v850 = vadd.f32 %v605, %v849
        %v851 = vpop.f32.mrb[0].mxu0
        %v852 = vadd.f32 %v609, %v851
        %v853 = vpop.f32.mrb[0].mxu0
        %v854 = vpop.f32.mrb[0].mxu0
        %855 = vdwg.mxu0
        %v856 = vmul.f32 %v809, 0.5
        %v857 = vmul.f32 %v811, 0.5
        %v858 = vmul.f32 %v850, 0.5
        %v859 = vmul.f32 %v852, 0.5
        %v860 = vmul.f32 %v809, 0.70710677
        %v861 = vmul.f32 %v811, 0.70710677
        %v862 = vmul.f32 %v850, 0.70710677
        %v863 = vmul.f32 %v852, 0.70710677
        %v864 = verf.f32.pop %v860
        %v865 = verf.f32.pop %v861
        %v866 = verf.f32.pop %v862
        %v867 = verf.f32.pop %v863
        %v868 = vadd.f32 %v864, 1.0
        %v869 = vadd.f32 %v865, 1.0
        %v870 = vadd.f32 %v866, 1.0
        %v871 = vadd.f32 %v867, 1.0
        %v872 = vmul.f32 %v856, %v868
        %v873 = vmul.f32 %v857, %v869
        %v874 = vmul.f32 %v858, %v870
        %v875 = vmul.f32 %v859, %v871
        %v876 = vld [vmem:[%s465] sm:$0xff]
        %v877 = vld [vmem:[%s465 + $0x8] sm:$0xff]
        %v878 = vld [vmem:[%s465 + $0x10] sm:$0xff]
        %v879 = vld [vmem:[%s465 + $0x18] sm:$0xff]
        %v880 = vld [vmem:[%s465 + $0x20] sm:$0xff]
        %v881 = vld [vmem:[%s465 + $0x28] sm:$0xff]
        %v882 = vld [vmem:[%s465 + $0x30] sm:$0xff]
        %v883 = vld [vmem:[%s465 + $0x38] sm:$0xff]
        %v884 = vld [vmem:[%s465 + $0x40] sm:$0xff]
        %v885 = vld [vmem:[%s465 + $0x48] sm:$0xff]
        %v886 = vld [vmem:[%s465 + $0x50] sm:$0xff]
        %v887 = vld [vmem:[%s465 + $0x58] sm:$0xff]
        %v888 = vld [vmem:[%s465 + $0x60] sm:$0xff]
        %v889 = vld [vmem:[%s465 + $0x68] sm:$0xff]
        %v890 = vld [vmem:[%s465 + $0x70] sm:$0xff]
        %v891 = vld [vmem:[%s465 + $0x78] sm:$0xff]
        %v892 = vld [vmem:[%s465 + $0x80] sm:$0xff]
        %v893 = vld [vmem:[%s465 + $0x88] sm:$0xff]
        %v894 = vld [vmem:[%s465 + $0x90] sm:$0xff]
        %v895 = vld [vmem:[%s465 + $0x98] sm:$0xff]
        %v896 = vld [vmem:[%s465 + $0xa0] sm:$0xff]
        %v897 = vld [vmem:[%s465 + $0xa8] sm:$0xff]
        %v898 = vld [vmem:[%s465 + $0xb0] sm:$0xff]
        %v899 = vld [vmem:[%s465 + $0xb8] sm:$0xff]
        %v900 = vld [vmem:[%s465 + $0xc0] sm:$0xff]
        %v901 = vld [vmem:[%s465 + $0xc8] sm:$0xff]
        %v902 = vld [vmem:[%s465 + $0xd0] sm:$0xff]
        %v903 = vld [vmem:[%s465 + $0xd8] sm:$0xff]
        %v904 = vld [vmem:[%s465 + $0xe0] sm:$0xff]
        %v905 = vld [vmem:[%s465 + $0xe8] sm:$0xff]
        %v906 = vld [vmem:[%s465 + $0xf0] sm:$0xff]
        %v907 = vld [vmem:[%s465 + $0xf8] sm:$0xff]
        %v908 = vld [vmem:[%s549] sm:$0xf]
        %v910 = vlaneseq
        %v911 = vshrl.u32 %v910, 7
        %v912 = vsub.s32 0, %v911
        %v913 = vrot.slane %v908, %v912
        %v914 = vlaneseq
        %v915 = vshrl.u32 %v914, 7
        %v916 = vsub.s32 1, %v915
        %v917 = vrot.slane %v908, %v916
        %v918 = vlaneseq
        %v919 = vshrl.u32 %v918, 7
        %v920 = vsub.s32 2, %v919
        %v921 = vrot.slane %v908, %v920
        %v922 = vlaneseq
        %v923 = vshrl.u32 %v922, 7
        %v924 = vsub.s32 3, %v923
        %v925 = vrot.slane %v908, %v924
        %v962 = vunpack.c.l.b16 %v876
        %v963 = vunpack.c.h.b16 %v876
        %v964 = vunpack.c.l.b16 %v877
        %v965 = vunpack.c.h.b16 %v877
        %v966 = vunpack.c.l.b16 %v878
        %v967 = vunpack.c.h.b16 %v878
        %v968 = vunpack.c.l.b16 %v879
        %v969 = vunpack.c.h.b16 %v879
        %v970 = vunpack.c.l.b16 %v880
        %v971 = vunpack.c.h.b16 %v880
        %v972 = vunpack.c.l.b16 %v881
        %v973 = vunpack.c.h.b16 %v881
        %v974 = vunpack.c.l.b16 %v882
        %v975 = vunpack.c.h.b16 %v882
        %v976 = vunpack.c.l.b16 %v883
        %v977 = vunpack.c.h.b16 %v883
        %v978 = vunpack.c.l.b16 %v884
        %v979 = vunpack.c.h.b16 %v884
        %v980 = vunpack.c.l.b16 %v885
        %v981 = vunpack.c.h.b16 %v885
        %v982 = vunpack.c.l.b16 %v886
        %v983 = vunpack.c.h.b16 %v886
        %v984 = vunpack.c.l.b16 %v887
        %v985 = vunpack.c.h.b16 %v887
        %v986 = vunpack.c.l.b16 %v888
        %v987 = vunpack.c.h.b16 %v888
        %v988 = vunpack.c.l.b16 %v889
        %v989 = vunpack.c.h.b16 %v889
        %v990 = vunpack.c.l.b16 %v890
        %v991 = vunpack.c.h.b16 %v890
        %v992 = vunpack.c.l.b16 %v891
        %v993 = vunpack.c.h.b16 %v891
        %v994 = vunpack.c.l.b16 %v892
        %v995 = vunpack.c.h.b16 %v892
        %v996 = vunpack.c.l.b16 %v893
        %v997 = vunpack.c.h.b16 %v893
        %v998 = vunpack.c.l.b16 %v894
        %v999 = vunpack.c.h.b16 %v894
        %v1000 = vunpack.c.l.b16 %v895
        %v1001 = vunpack.c.h.b16 %v895
        %v1002 = vunpack.c.l.b16 %v896
        %v1003 = vunpack.c.h.b16 %v896
        %v1004 = vunpack.c.l.b16 %v897
        %v1005 = vunpack.c.h.b16 %v897
        %v1006 = vunpack.c.l.b16 %v898
        %v1007 = vunpack.c.h.b16 %v898
        %v1008 = vunpack.c.l.b16 %v899
        %v1009 = vunpack.c.h.b16 %v899
        %v1010 = vunpack.c.l.b16 %v900
        %v1011 = vunpack.c.h.b16 %v900
        %v1012 = vunpack.c.l.b16 %v901
        %v1013 = vunpack.c.h.b16 %v901
        %v1014 = vunpack.c.l.b16 %v902
        %v1015 = vunpack.c.h.b16 %v902
        %v1016 = vunpack.c.l.b16 %v903
        %v1017 = vunpack.c.h.b16 %v903
        %v1018 = vunpack.c.l.b16 %v904
        %v1019 = vunpack.c.h.b16 %v904
        %v1020 = vunpack.c.l.b16 %v905
        %v1021 = vunpack.c.h.b16 %v905
        %v1022 = vunpack.c.l.b16 %v906
        %v1023 = vunpack.c.h.b16 %v906
        %v1024 = vunpack.c.l.b16 %v907
        %v1025 = vunpack.c.h.b16 %v907
        %v1026 = vpack.c.b16 %v966, %v962
        %v1027 = vpack.c.b16 %v967, %v963
        %v1028 = vpack.c.b16 %v968, %v964
        %v1029 = vpack.c.b16 %v969, %v965
        %v1030 = vpack.c.b16 %v974, %v970
        %v1031 = vpack.c.b16 %v975, %v971
        %v1032 = vpack.c.b16 %v976, %v972
        %v1033 = vpack.c.b16 %v977, %v973
        %v1034 = vpack.c.b16 %v982, %v978
        %v1035 = vpack.c.b16 %v983, %v979
        %v1036 = vpack.c.b16 %v984, %v980
        %v1037 = vpack.c.b16 %v985, %v981
        %v1038 = vpack.c.b16 %v990, %v986
        %v1039 = vpack.c.b16 %v991, %v987
        %v1040 = vpack.c.b16 %v992, %v988
        %v1041 = vpack.c.b16 %v993, %v989
        %v1042 = vpack.c.b16 %v998, %v994
        %v1043 = vpack.c.b16 %v999, %v995
        %v1044 = vpack.c.b16 %v1000, %v996
        %v1045 = vpack.c.b16 %v1001, %v997
        %v1046 = vpack.c.b16 %v1006, %v1002
        %v1047 = vpack.c.b16 %v1007, %v1003
        %v1048 = vpack.c.b16 %v1008, %v1004
        %v1049 = vpack.c.b16 %v1009, %v1005
        %v1050 = vpack.c.b16 %v1014, %v1010
        %v1051 = vpack.c.b16 %v1015, %v1011
        %v1052 = vpack.c.b16 %v1016, %v1012
        %v1053 = vpack.c.b16 %v1017, %v1013
        %v1054 = vpack.c.b16 %v1022, %v1018
        %v1055 = vpack.c.b16 %v1023, %v1019
        %v1056 = vpack.c.b16 %v1024, %v1020
        %v1057 = vpack.c.b16 %v1025, %v1021
        %1090 = vmatprep.subr.bf16.mxu0 %v1027
        %1091 = vmatpush1.bf16.msra.mxu0 %v1026
        %1092 = vmatprep.subr.bf16.mxu0 %v1031
        %1093 = vmatpush1.bf16.msra.mxu0 %v1030
        %1094 = vmatprep.subr.bf16.mxu0 %v1035
        %1095 = vmatpush1.bf16.msra.mxu0 %v1034
        %1096 = vmatprep.subr.bf16.mxu0 %v1039
        %1097 = vmatpush1.bf16.msra.mxu0 %v1038
        %1098 = vmatprep.subr.bf16.mxu0 %v1043
        %1099 = vmatpush1.bf16.msra.mxu0 %v1042
        %1100 = vmatprep.subr.bf16.mxu0 %v1047
        %1101 = vmatpush1.bf16.msra.mxu0 %v1046
        %1102 = vmatprep.subr.bf16.mxu0 %v1051
        %1103 = vmatpush1.bf16.msra.mxu0 %v1050
        %1104 = vmatprep.subr.bf16.mxu0 %v1055
        %1105 = vmatpush1.bf16.msra.mxu0 %v1054
        %1106 = vmatprep.subr.bf16.mxu0 0
        %1107 = vmatpush1.bf16.msra.mxu0 0
        %1108 = vmatprep.subr.bf16.mxu0 0
        %1109 = vmatpush1.bf16.msra.mxu0 0
        %1110 = vmatprep.subr.bf16.mxu0 0
        %1111 = vmatpush1.bf16.msra.mxu0 0
        %1112 = vmatprep.subr.bf16.mxu0 0
        %1113 = vmatpush1.bf16.msra.mxu0 0
        %1114 = vmatprep.subr.bf16.mxu0 0
        %1115 = vmatpush1.bf16.msra.mxu0 0
        %1116 = vmatprep.subr.bf16.mxu0 0
        %1117 = vmatpush1.bf16.msra.mxu0 0
        %1118 = vmatprep.subr.bf16.mxu0 0
        %1119 = vmatpush1.bf16.msra.mxu0 0
        %1120 = vmatprep.subr.bf16.mxu0 0
        %1121 = vmatpush1.bf16.msra.mxu0 0
        %1122 = vmatprep.mubr.bf16.mxu0 0
        %1123 = vmatmul.mubr.bf16.gmra.mrb[0].mxu0 %v559
        %v1124 = vpop.f32.mrb[0].mxu0
        %v1125 = vadd.f32 %v913, %v1124
        %v1126 = vpop.f32.mrb[0].mxu0
        %v1127 = vadd.f32 %v917, %v1126
        %v1128 = vpop.f32.mrb[0].mxu0
        %v1129 = vpop.f32.mrb[0].mxu0
        %1130 = vdwg.mxu0
        %1131 = vmatprep.subr.bf16.mxu0 %v1029
        %1132 = vmatpush1.bf16.msra.mxu0 %v1028
        %1133 = vmatprep.subr.bf16.mxu0 %v1033
        %1134 = vmatpush1.bf16.msra.mxu0 %v1032
        %1135 = vmatprep.subr.bf16.mxu0 %v1037
        %1136 = vmatpush1.bf16.msra.mxu0 %v1036
        %1137 = vmatprep.subr.bf16.mxu0 %v1041
        %1138 = vmatpush1.bf16.msra.mxu0 %v1040
        %1139 = vmatprep.subr.bf16.mxu0 %v1045
        %1140 = vmatpush1.bf16.msra.mxu0 %v1044
        %1141 = vmatprep.subr.bf16.mxu0 %v1049
        %1142 = vmatpush1.bf16.msra.mxu0 %v1048
        %1143 = vmatprep.subr.bf16.mxu0 %v1053
        %1144 = vmatpush1.bf16.msra.mxu0 %v1052
        %1145 = vmatprep.subr.bf16.mxu0 %v1057
        %1146 = vmatpush1.bf16.msra.mxu0 %v1056
        %1147 = vmatprep.subr.bf16.mxu0 0
        %1148 = vmatpush1.bf16.msra.mxu0 0
        %1149 = vmatprep.subr.bf16.mxu0 0
        %1150 = vmatpush1.bf16.msra.mxu0 0
        %1151 = vmatprep.subr.bf16.mxu0 0
        %1152 = vmatpush1.bf16.msra.mxu0 0
        %1153 = vmatprep.subr.bf16.mxu0 0
        %1154 = vmatpush1.bf16.msra.mxu0 0
        %1155 = vmatprep.subr.bf16.mxu0 0
        %1156 = vmatpush1.bf16.msra.mxu0 0
        %1157 = vmatprep.subr.bf16.mxu0 0
        %1158 = vmatpush1.bf16.msra.mxu0 0
        %1159 = vmatprep.subr.bf16.mxu0 0
        %1160 = vmatpush1.bf16.msra.mxu0 0
        %1161 = vmatprep.subr.bf16.mxu0 0
        %1162 = vmatpush1.bf16.msra.mxu0 0
        %1163 = vmatprep.mubr.bf16.mxu0 0
        %1164 = vmatmul.mubr.bf16.gmra.mrb[0].mxu0 %v559
        %v1165 = vpop.f32.mrb[0].mxu0
        %v1166 = vadd.f32 %v921, %v1165
        %v1167 = vpop.f32.mrb[0].mxu0
        %v1168 = vadd.f32 %v925, %v1167
        %v1169 = vpop.f32.mrb[0].mxu0
        %v1170 = vpop.f32.mrb[0].mxu0
        %1171 = vdwg.mxu0
        %v1172 = vmul.f32 %v1125, 0.5
        %v1173 = vmul.f32 %v1127, 0.5
        %v1174 = vmul.f32 %v1166, 0.5
        %v1175 = vmul.f32 %v1168, 0.5
        %v1176 = vmul.f32 %v1125, 0.70710677
        %v1177 = vmul.f32 %v1127, 0.70710677
        %v1178 = vmul.f32 %v1166, 0.70710677
        %v1179 = vmul.f32 %v1168, 0.70710677
        %v1180 = verf.f32.pop %v1176
        %v1181 = verf.f32.pop %v1177
        %v1182 = verf.f32.pop %v1178
        %v1183 = verf.f32.pop %v1179
        %v1184 = vadd.f32 %v1180, 1.0
        %v1185 = vadd.f32 %v1181, 1.0
        %v1186 = vadd.f32 %v1182, 1.0
        %v1187 = vadd.f32 %v1183, 1.0
        %v1188 = vmul.f32 %v1172, %v1184
        %v1189 = vmul.f32 %v1173, %v1185
        %v1190 = vmul.f32 %v1174, %v1186
        %v1191 = vmul.f32 %v1175, %v1187
        %vm1192 = vcmask 64512
        %v1194 = vsel %vm1192, 1.0, 0
        %1196 = vmatprep.subr.mxu0 %v1189
        %1197 = vmatpush1.msra.mxu0 %v1188
        %1198 = vmatprep.subr.mxu0 0.0
        %1199 = vmatpush1.msra.mxu0 0.0
        %1200 = vmatprep.subr.mxu0 0.0
        %1201 = vmatpush1.msra.mxu0 0.0
        %1202 = vmatprep.subr.mxu0 0.0
        %1203 = vmatpush1.msra.mxu0 0.0
        %1204 = vmatprep.subr.mxu0 0.0
        %1205 = vmatpush1.msra.mxu0 0.0
        %1206 = vmatprep.subr.mxu0 0.0
        %1207 = vmatpush1.msra.mxu0 0.0
        %1208 = vmatprep.subr.mxu0 0.0
        %1209 = vmatpush1.msra.mxu0 0.0
        %1210 = vmatprep.subr.mxu0 0.0
        %1211 = vmatpush1.msra.mxu0 0.0
        %1212 = vmatprep.subr.mxu0 0.0
        %1213 = vmatpush1.msra.mxu0 0.0
        %1214 = vmatprep.subr.mxu0 0.0
        %1215 = vmatpush1.msra.mxu0 0.0
        %1216 = vmatprep.subr.mxu0 0.0
        %1217 = vmatpush1.msra.mxu0 0.0
        %1218 = vmatprep.subr.mxu0 0.0
        %1219 = vmatpush1.msra.mxu0 0.0
        %1220 = vmatprep.subr.mxu0 0.0
        %1221 = vmatpush1.msra.mxu0 0.0
        %1222 = vmatprep.subr.mxu0 0.0
        %1223 = vmatpush1.msra.mxu0 0.0
        %1224 = vmatprep.subr.mxu0 0.0
        %1225 = vmatpush1.msra.mxu0 0.0
        %1226 = vmatprep.subr.mxu0 0.0
        %1227 = vmatpush1.msra.mxu0 0.0
        %1228 = vmatprep.subr.mxu0 0.0
        %1229 = vmatpush1.msra.mxu0 0.0
        %1230 = vmatprep.subr.mxu0 0.0
        %1231 = vmatpush1.msra.mxu0 0.0
        %1232 = vmatprep.subr.mxu0 0.0
        %1233 = vmatpush1.msra.mxu0 0.0
        %1234 = vmatprep.subr.mxu0 0.0
        %1235 = vmatpush1.msra.mxu0 0.0
        %1236 = vmatprep.subr.mxu0 0.0
        %1237 = vmatpush1.msra.mxu0 0.0
        %1238 = vmatprep.subr.mxu0 0.0
        %1239 = vmatpush1.msra.mxu0 0.0
        %1240 = vmatprep.subr.mxu0 0.0
        %1241 = vmatpush1.msra.mxu0 0.0
        %1242 = vmatprep.subr.mxu0 0.0
        %1243 = vmatpush1.msra.mxu0 0.0
        %1244 = vmatprep.subr.mxu0 0.0
        %1245 = vmatpush1.msra.mxu0 0.0
        %1246 = vmatprep.subr.mxu0 0.0
        %1247 = vmatpush1.msra.mxu0 0.0
        %1248 = vmatprep.subr.mxu0 0.0
        %1249 = vmatpush1.msra.mxu0 0.0
        %1250 = vmatprep.subr.mxu0 0.0
        %1251 = vmatpush1.msra.mxu0 0.0
        %1252 = vmatprep.subr.mxu0 0.0
        %1253 = vmatpush1.msra.mxu0 0.0
        %1254 = vmatprep.subr.mxu0 0.0
        %1255 = vmatpush1.msra.mxu0 0.0
        %1256 = vmatprep.subr.mxu0 0.0
        %1257 = vmatpush1.msra.mxu0 0.0
        %1258 = vmatprep.subr.mxu0 0.0
        %1259 = vmatpush1.msra.mxu0 0.0
        %1260 = vmatprep.mubr.f32.mxu0 0.0
        %1261 = vmatmul.mubr.f32.gmra.mrb[0].mxu0 %v1194
        %v1262 = vpop.f32.mrb[0].mxu0
        %v1263 = vadd.f32 0.0, %v1262
        %v1264 = vpop.f32.mrb[0].mxu0
        %v1265 = vadd.f32 0.0, %v1264
        %1266 = vdwg.mxu0
        %1267 = vmatprep.subr.mxu0 %v1191
        %1268 = vmatpush1.msra.mxu0 %v1190
        %1269 = vmatprep.subr.mxu0 0.0
        %1270 = vmatpush1.msra.mxu0 0.0
        %1271 = vmatprep.subr.mxu0 0.0
        %1272 = vmatpush1.msra.mxu0 0.0
        %1273 = vmatprep.subr.mxu0 0.0
        %1274 = vmatpush1.msra.mxu0 0.0
        %1275 = vmatprep.subr.mxu0 0.0
        %1276 = vmatpush1.msra.mxu0 0.0
        %1277 = vmatprep.subr.mxu0 0.0
        %1278 = vmatpush1.msra.mxu0 0.0
        %1279 = vmatprep.subr.mxu0 0.0
        %1280 = vmatpush1.msra.mxu0 0.0
        %1281 = vmatprep.subr.mxu0 0.0
        %1282 = vmatpush1.msra.mxu0 0.0
        %1283 = vmatprep.subr.mxu0 0.0
        %1284 = vmatpush1.msra.mxu0 0.0
        %1285 = vmatprep.subr.mxu0 0.0
        %1286 = vmatpush1.msra.mxu0 0.0
        %1287 = vmatprep.subr.mxu0 0.0
        %1288 = vmatpush1.msra.mxu0 0.0
        %1289 = vmatprep.subr.mxu0 0.0
        %1290 = vmatpush1.msra.mxu0 0.0
        %1291 = vmatprep.subr.mxu0 0.0
        %1292 = vmatpush1.msra.mxu0 0.0
        %1293 = vmatprep.subr.mxu0 0.0
        %1294 = vmatpush1.msra.mxu0 0.0
        %1295 = vmatprep.subr.mxu0 0.0
        %1296 = vmatpush1.msra.mxu0 0.0
        %1297 = vmatprep.subr.mxu0 0.0
        %1298 = vmatpush1.msra.mxu0 0.0
        %1299 = vmatprep.subr.mxu0 0.0
        %1300 = vmatpush1.msra.mxu0 0.0
        %1301 = vmatprep.subr.mxu0 0.0
        %1302 = vmatpush1.msra.mxu0 0.0
        %1303 = vmatprep.subr.mxu0 0.0
        %1304 = vmatpush1.msra.mxu0 0.0
        %1305 = vmatprep.subr.mxu0 0.0
        %1306 = vmatpush1.msra.mxu0 0.0
        %1307 = vmatprep.subr.mxu0 0.0
        %1308 = vmatpush1.msra.mxu0 0.0
        %1309 = vmatprep.subr.mxu0 0.0
        %1310 = vmatpush1.msra.mxu0 0.0
        %1311 = vmatprep.subr.mxu0 0.0
        %1312 = vmatpush1.msra.mxu0 0.0
        %1313 = vmatprep.subr.mxu0 0.0
        %1314 = vmatpush1.msra.mxu0 0.0
        %1315 = vmatprep.subr.mxu0 0.0
        %1316 = vmatpush1.msra.mxu0 0.0
        %1317 = vmatprep.subr.mxu0 0.0
        %1318 = vmatpush1.msra.mxu0 0.0
        %1319 = vmatprep.subr.mxu0 0.0
        %1320 = vmatpush1.msra.mxu0 0.0
        %1321 = vmatprep.subr.mxu0 0.0
        %1322 = vmatpush1.msra.mxu0 0.0
        %1323 = vmatprep.subr.mxu0 0.0
        %1324 = vmatpush1.msra.mxu0 0.0
        %1325 = vmatprep.subr.mxu0 0.0
        %1326 = vmatpush1.msra.mxu0 0.0
        %1327 = vmatprep.subr.mxu0 0.0
        %1328 = vmatpush1.msra.mxu0 0.0
        %1329 = vmatprep.subr.mxu0 0.0
        %1330 = vmatpush1.msra.mxu0 0.0
        %1331 = vmatprep.mubr.f32.mxu0 0.0
        %1332 = vmatmul.mubr.f32.gmra.mrb[0].mxu0 %v1194
        %v1333 = vpop.f32.mrb[0].mxu0
        %v1334 = vadd.f32 0.0, %v1333
        %v1335 = vpop.f32.mrb[0].mxu0
        %v1336 = vadd.f32 0.0, %v1335
        %1337 = vdwg.mxu0
        %v1338 = vmul.f32 %v1263, 0.125
        %v1339 = vmul.f32 %v1265, 0.125
        %v1340 = vmul.f32 %v1334, 0.125
        %v1341 = vmul.f32 %v1336, 0.125
        %v1342 = vlaneseq
        %v1343 = vshrl.u32 %v1342, 7
        %v1344 = vsub.s32 0, %v1343
        %v1345 = vrot.slane %v1338, %v1344
        %v1346 = vlaneseq
        %v1347 = vshrl.u32 %v1346, 7
        %v1348 = vsub.s32 0, %v1347
        %v1349 = vrot.slane %v1339, %v1348
        %v1350 = vlaneseq
        %v1351 = vshrl.u32 %v1350, 7
        %v1352 = vsub.s32 0, %v1351
        %v1353 = vrot.slane %v1340, %v1352
        %v1354 = vlaneseq
        %v1355 = vshrl.u32 %v1354, 7
        %v1356 = vsub.s32 0, %v1355
        %v1357 = vrot.slane %v1341, %v1356
        %v1358 = vsub.f32 %v1188, %v1345
        %v1359 = vsub.f32 %v1189, %v1349
        %v1360 = vsub.f32 %v1190, %v1353
        %v1361 = vsub.f32 %v1191, %v1357
        %v1362 = vmul.f32 %v1358, %v1358
        %v1363 = vmul.f32 %v1359, %v1359
        %v1364 = vmul.f32 %v1360, %v1360
        %v1365 = vmul.f32 %v1361, %v1361
        %1366 = vmatprep.subr.mxu0 %v1363
        %1367 = vmatpush1.msra.mxu0 %v1362
        %1368 = vmatprep.subr.mxu0 0.0
        %1369 = vmatpush1.msra.mxu0 0.0
        %1370 = vmatprep.subr.mxu0 0.0
        %1371 = vmatpush1.msra.mxu0 0.0
        %1372 = vmatprep.subr.mxu0 0.0
        %1373 = vmatpush1.msra.mxu0 0.0
        %1374 = vmatprep.subr.mxu0 0.0
        %1375 = vmatpush1.msra.mxu0 0.0
        %1376 = vmatprep.subr.mxu0 0.0
        %1377 = vmatpush1.msra.mxu0 0.0
        %1378 = vmatprep.subr.mxu0 0.0
        %1379 = vmatpush1.msra.mxu0 0.0
        %1380 = vmatprep.subr.mxu0 0.0
        %1381 = vmatpush1.msra.mxu0 0.0
        %1382 = vmatprep.subr.mxu0 0.0
        %1383 = vmatpush1.msra.mxu0 0.0
        %1384 = vmatprep.subr.mxu0 0.0
        %1385 = vmatpush1.msra.mxu0 0.0
        %1386 = vmatprep.subr.mxu0 0.0
        %1387 = vmatpush1.msra.mxu0 0.0
        %1388 = vmatprep.subr.mxu0 0.0
        %1389 = vmatpush1.msra.mxu0 0.0
        %1390 = vmatprep.subr.mxu0 0.0
        %1391 = vmatpush1.msra.mxu0 0.0
        %1392 = vmatprep.subr.mxu0 0.0
        %1393 = vmatpush1.msra.mxu0 0.0
        %1394 = vmatprep.subr.mxu0 0.0
        %1395 = vmatpush1.msra.mxu0 0.0
        %1396 = vmatprep.subr.mxu0 0.0
        %1397 = vmatpush1.msra.mxu0 0.0
        %1398 = vmatprep.subr.mxu0 0.0
        %1399 = vmatpush1.msra.mxu0 0.0
        %1400 = vmatprep.subr.mxu0 0.0
        %1401 = vmatpush1.msra.mxu0 0.0
        %1402 = vmatprep.subr.mxu0 0.0
        %1403 = vmatpush1.msra.mxu0 0.0
        %1404 = vmatprep.subr.mxu0 0.0
        %1405 = vmatpush1.msra.mxu0 0.0
        %1406 = vmatprep.subr.mxu0 0.0
        %1407 = vmatpush1.msra.mxu0 0.0
        %1408 = vmatprep.subr.mxu0 0.0
        %1409 = vmatpush1.msra.mxu0 0.0
        %1410 = vmatprep.subr.mxu0 0.0
        %1411 = vmatpush1.msra.mxu0 0.0
        %1412 = vmatprep.subr.mxu0 0.0
        %1413 = vmatpush1.msra.mxu0 0.0
        %1414 = vmatprep.subr.mxu0 0.0
        %1415 = vmatpush1.msra.mxu0 0.0
        %1416 = vmatprep.subr.mxu0 0.0
        %1417 = vmatpush1.msra.mxu0 0.0
        %1418 = vmatprep.subr.mxu0 0.0
        %1419 = vmatpush1.msra.mxu0 0.0
        %1420 = vmatprep.subr.mxu0 0.0
        %1421 = vmatpush1.msra.mxu0 0.0
        %1422 = vmatprep.subr.mxu0 0.0
        %1423 = vmatpush1.msra.mxu0 0.0
        %1424 = vmatprep.subr.mxu0 0.0
        %1425 = vmatpush1.msra.mxu0 0.0
        %1426 = vmatprep.subr.mxu0 0.0
        %1427 = vmatpush1.msra.mxu0 0.0
        %1428 = vmatprep.subr.mxu0 0.0
        %1429 = vmatpush1.msra.mxu0 0.0
        %1430 = vmatprep.mubr.f32.mxu0 0.0
        %1431 = vmatmul.mubr.f32.gmra.mrb[0].mxu0 %v1194
        %v1432 = vpop.f32.mrb[0].mxu0
        %v1433 = vadd.f32 0.0, %v1432
        %v1434 = vpop.f32.mrb[0].mxu0
        %v1435 = vadd.f32 0.0, %v1434
        %1436 = vdwg.mxu0
        %1437 = vmatprep.subr.mxu0 %v1365
        %1438 = vmatpush1.msra.mxu0 %v1364
        %1439 = vmatprep.subr.mxu0 0.0
        %1440 = vmatpush1.msra.mxu0 0.0
        %1441 = vmatprep.subr.mxu0 0.0
        %1442 = vmatpush1.msra.mxu0 0.0
        %1443 = vmatprep.subr.mxu0 0.0
        %1444 = vmatpush1.msra.mxu0 0.0
        %1445 = vmatprep.subr.mxu0 0.0
        %1446 = vmatpush1.msra.mxu0 0.0
        %1447 = vmatprep.subr.mxu0 0.0
        %1448 = vmatpush1.msra.mxu0 0.0
        %1449 = vmatprep.subr.mxu0 0.0
        %1450 = vmatpush1.msra.mxu0 0.0
        %1451 = vmatprep.subr.mxu0 0.0
        %1452 = vmatpush1.msra.mxu0 0.0
        %1453 = vmatprep.subr.mxu0 0.0
        %1454 = vmatpush1.msra.mxu0 0.0
        %1455 = vmatprep.subr.mxu0 0.0
        %1456 = vmatpush1.msra.mxu0 0.0
        %1457 = vmatprep.subr.mxu0 0.0
        %1458 = vmatpush1.msra.mxu0 0.0
        %1459 = vmatprep.subr.mxu0 0.0
        %1460 = vmatpush1.msra.mxu0 0.0
        %1461 = vmatprep.subr.mxu0 0.0
        %1462 = vmatpush1.msra.mxu0 0.0
        %1463 = vmatprep.subr.mxu0 0.0
        %1464 = vmatpush1.msra.mxu0 0.0
        %1465 = vmatprep.subr.mxu0 0.0
        %1466 = vmatpush1.msra.mxu0 0.0
        %1467 = vmatprep.subr.mxu0 0.0
        %1468 = vmatpush1.msra.mxu0 0.0
        %1469 = vmatprep.subr.mxu0 0.0
        %1470 = vmatpush1.msra.mxu0 0.0
        %1471 = vmatprep.subr.mxu0 0.0
        %1472 = vmatpush1.msra.mxu0 0.0
        %1473 = vmatprep.subr.mxu0 0.0
        %1474 = vmatpush1.msra.mxu0 0.0
        %1475 = vmatprep.subr.mxu0 0.0
        %1476 = vmatpush1.msra.mxu0 0.0
        %1477 = vmatprep.subr.mxu0 0.0
        %1478 = vmatpush1.msra.mxu0 0.0
        %1479 = vmatprep.subr.mxu0 0.0
        %1480 = vmatpush1.msra.mxu0 0.0
        %1481 = vmatprep.subr.mxu0 0.0
        %1482 = vmatpush1.msra.mxu0 0.0
        %1483 = vmatprep.subr.mxu0 0.0
        %1484 = vmatpush1.msra.mxu0 0.0
        %1485 = vmatprep.subr.mxu0 0.0
        %1486 = vmatpush1.msra.mxu0 0.0
        %1487 = vmatprep.subr.mxu0 0.0
        %1488 = vmatpush1.msra.mxu0 0.0
        %1489 = vmatprep.subr.mxu0 0.0
        %1490 = vmatpush1.msra.mxu0 0.0
        %1491 = vmatprep.subr.mxu0 0.0
        %1492 = vmatpush1.msra.mxu0 0.0
        %1493 = vmatprep.subr.mxu0 0.0
        %1494 = vmatpush1.msra.mxu0 0.0
        %1495 = vmatprep.subr.mxu0 0.0
        %1496 = vmatpush1.msra.mxu0 0.0
        %1497 = vmatprep.subr.mxu0 0.0
        %1498 = vmatpush1.msra.mxu0 0.0
        %1499 = vmatprep.subr.mxu0 0.0
        %1500 = vmatpush1.msra.mxu0 0.0
        %1501 = vmatprep.mubr.f32.mxu0 0.0
        %1502 = vmatmul.mubr.f32.gmra.mrb[0].mxu0 %v1194
        %v1503 = vpop.f32.mrb[0].mxu0
        %v1504 = vadd.f32 0.0, %v1503
        %v1505 = vpop.f32.mrb[0].mxu0
        %v1506 = vadd.f32 0.0, %v1505
        %1507 = vdwg.mxu0
        %v1508 = vmul.f32 %v1433, 0.125
        %v1509 = vmul.f32 %v1435, 0.125
        %v1510 = vmul.f32 %v1504, 0.125
        %v1511 = vmul.f32 %v1506, 0.125
        %v1512 = vadd.f32 %v1508, 1e-05
        %v1513 = vadd.f32 %v1509, 1e-05
        %v1514 = vadd.f32 %v1510, 1e-05
        %v1515 = vadd.f32 %v1511, 1e-05
        %v1516 = vrsqrt.pop %v1512
        %v1517 = vrsqrt.pop %v1513
        %v1518 = vrsqrt.pop %v1514
        %v1519 = vrsqrt.pop %v1515
        %v1520 = vlaneseq
        %v1521 = vshrl.u32 %v1520, 7
        %v1522 = vsub.s32 0, %v1521
        %v1523 = vrot.slane %v1516, %v1522
        %v1524 = vlaneseq
        %v1525 = vshrl.u32 %v1524, 7
        %v1526 = vsub.s32 0, %v1525
        %v1527 = vrot.slane %v1517, %v1526
        %v1528 = vlaneseq
        %v1529 = vshrl.u32 %v1528, 7
        %v1530 = vsub.s32 0, %v1529
        %v1531 = vrot.slane %v1518, %v1530
        %v1532 = vlaneseq
        %v1533 = vshrl.u32 %v1532, 7
        %v1534 = vsub.s32 0, %v1533
        %v1535 = vrot.slane %v1519, %v1534
        %v1536 = vmul.f32 %v1358, %v1523
        %v1537 = vmul.f32 %v1359, %v1527
        %v1538 = vmul.f32 %v1360, %v1531
        %v1539 = vmul.f32 %v1361, %v1535
        %v1540 = vld [vmem:[%s5] sm:$0xff]
        %1542 = vset.pattern.permute.xlu0 0
        %1543 = vperm.xlu0 %1542, %v1540
        %v1544 = vpop.permute.xlu0 %1543
        %v1546 = vmul.f32 %v1536, %v1544
        %v1547 = vmul.f32 %v1537, %v1544
        %v1548 = vmul.f32 %v1538, %v1544
        %v1549 = vmul.f32 %v1539, %v1544
        %v1550 = vld [vmem:[%s6] sm:$0xff]
        %1552 = vset.pattern.permute.xlu0 0
        %1553 = vperm.xlu0 %1552, %v1550
        %v1554 = vpop.permute.xlu0 %1553
        %v1556 = vadd.f32 %v1546, %v1554
        %v1557 = vadd.f32 %v1547, %v1554
        %v1558 = vadd.f32 %v1548, %v1554
        %v1559 = vadd.f32 %v1549, %v1554
        %v1560 = vld [vmem:[%s7] sm:$0xf]
        %v1561 = vpack.c.bf16 %v1556, %v1556
        %v1562 = vpack.c.bf16 %v1557, %v1557
        %v1563 = vpack.c.bf16 %v1558, %v1558
        %v1564 = vpack.c.bf16 %v1559, %v1559
        %v1565 = vld [vmem:[%s8] sm:$0xff]
        %1567 = vset.pattern.permute.xlu0 0
        %1568 = vperm.xlu0 %1567, %v1565
        %v1569 = vpop.permute.xlu0 %1568
        %v1572 = vsel %vm1192, %v1560, 0
        %vm1574 = vcmask 1043456
        %v1576 = vsel %vm1574, %v1561, 0
        %v1579 = vsel %vm1574, %v1562, 0
        %v1582 = vsel %vm1574, %v1563, 0
        %v1585 = vsel %vm1574, %v1564, 0
        %1587 = vmatprep.subr.bf16.mxu0 %v1579
        %1588 = vmatpush1.bf16.msra.mxu0 %v1576
        %1589 = vmatprep.subr.bf16.mxu0 0
        %1590 = vmatpush1.bf16.msra.mxu0 0
        %1591 = vmatprep.subr.bf16.mxu0 0
        %1592 = vmatpush1.bf16.msra.mxu0 0
        %1593 = vmatprep.subr.bf16.mxu0 0
        %1594 = vmatpush1.bf16.msra.mxu0 0
        %1595 = vmatprep.subr.bf16.mxu0 0
        %1596 = vmatpush1.bf16.msra.mxu0 0
        %1597 = vmatprep.subr.bf16.mxu0 0
        %1598 = vmatpush1.bf16.msra.mxu0 0
        %1599 = vmatprep.subr.bf16.mxu0 0
        %1600 = vmatpush1.bf16.msra.mxu0 0
        %1601 = vmatprep.subr.bf16.mxu0 0
        %1602 = vmatpush1.bf16.msra.mxu0 0
        %1603 = vmatprep.subr.bf16.mxu0 0
        %1604 = vmatpush1.bf16.msra.mxu0 0
        %1605 = vmatprep.subr.bf16.mxu0 0
        %1606 = vmatpush1.bf16.msra.mxu0 0
        %1607 = vmatprep.subr.bf16.mxu0 0
        %1608 = vmatpush1.bf16.msra.mxu0 0
        %1609 = vmatprep.subr.bf16.mxu0 0
        %1610 = vmatpush1.bf16.msra.mxu0 0
        %1611 = vmatprep.subr.bf16.mxu0 0
        %1612 = vmatpush1.bf16.msra.mxu0 0
        %1613 = vmatprep.subr.bf16.mxu0 0
        %1614 = vmatpush1.bf16.msra.mxu0 0
        %1615 = vmatprep.subr.bf16.mxu0 0
        %1616 = vmatpush1.bf16.msra.mxu0 0
        %1617 = vmatprep.subr.bf16.mxu0 0
        %1618 = vmatpush1.bf16.msra.mxu0 0
        %1619 = vmatprep.mubr.bf16.mxu0 0
        %1620 = vmatmul.mubr.bf16.gmra.mrb[0].mxu0 %v1572
        %v1621 = vpop.f32.mrb[0].mxu0
        %v1622 = vadd.f32 %v1569, %v1621
        %v1623 = vpop.f32.mrb[0].mxu0
        %v1624 = vadd.f32 %v1569, %v1623
        %v1625 = vpop.f32.mrb[0].mxu0
        %v1626 = vpop.f32.mrb[0].mxu0
        %1627 = vdwg.mxu0
        %1628 = vmatprep.subr.bf16.mxu0 %v1585
        %1629 = vmatpush1.bf16.msra.mxu0 %v1582
        %1630 = vmatprep.subr.bf16.mxu0 0
        %1631 = vmatpush1.bf16.msra.mxu0 0
        %1632 = vmatprep.subr.bf16.mxu0 0
        %1633 = vmatpush1.bf16.msra.mxu0 0
        %1634 = vmatprep.subr.bf16.mxu0 0
        %1635 = vmatpush1.bf16.msra.mxu0 0
        %1636 = vmatprep.subr.bf16.mxu0 0
        %1637 = vmatpush1.bf16.msra.mxu0 0
        %1638 = vmatprep.subr.bf16.mxu0 0
        %1639 = vmatpush1.bf16.msra.mxu0 0
        %1640 = vmatprep.subr.bf16.mxu0 0
        %1641 = vmatpush1.bf16.msra.mxu0 0
        %1642 = vmatprep.subr.bf16.mxu0 0
        %1643 = vmatpush1.bf16.msra.mxu0 0
        %1644 = vmatprep.subr.bf16.mxu0 0
        %1645 = vmatpush1.bf16.msra.mxu0 0
        %1646 = vmatprep.subr.bf16.mxu0 0
        %1647 = vmatpush1.bf16.msra.mxu0 0
        %1648 = vmatprep.subr.bf16.mxu0 0
        %1649 = vmatpush1.bf16.msra.mxu0 0
        %1650 = vmatprep.subr.bf16.mxu0 0
        %1651 = vmatpush1.bf16.msra.mxu0 0
        %1652 = vmatprep.subr.bf16.mxu0 0
        %1653 = vmatpush1.bf16.msra.mxu0 0
        %1654 = vmatprep.subr.bf16.mxu0 0
        %1655 = vmatpush1.bf16.msra.mxu0 0
        %1656 = vmatprep.subr.bf16.mxu0 0
        %1657 = vmatpush1.bf16.msra.mxu0 0
        %1658 = vmatprep.subr.bf16.mxu0 0
        %1659 = vmatpush1.bf16.msra.mxu0 0
        %1660 = vmatprep.mubr.bf16.mxu0 0
        %1661 = vmatmul.mubr.bf16.gmra.mrb[0].mxu0 %v1572
        %v1662 = vpop.f32.mrb[0].mxu0
        %v1663 = vadd.f32 %v1569, %v1662
        %v1664 = vpop.f32.mrb[0].mxu0
        %v1665 = vadd.f32 %v1569, %v1664
        %v1666 = vpop.f32.mrb[0].mxu0
        %v1667 = vpop.f32.mrb[0].mxu0
        %1668 = vdwg.mxu0
        %v1669 = vmul.f32 %v872, %v1622
        %v1670 = vmul.f32 %v873, %v1624
        %v1671 = vmul.f32 %v874, %v1663
        %v1672 = vmul.f32 %v875, %v1665
        %v1673 = vld [vmem:[#allocation2] sm:$0xff]
        %v1674 = vpack.c.bf16 %v1669, %v1669
        %v1675 = vpack.c.bf16 %v1670, %v1670
        %v1676 = vpack.c.bf16 %v1671, %v1671
        %v1677 = vpack.c.bf16 %v1672, %v1672
        %v1678 = vld [vmem:[%s474] sm:$0xf]
        %v1679 = vld [vmem:[%s474 + $0x4] sm:$0xf]
        %v1680 = vld [vmem:[%s474 + $0x8] sm:$0xf]
        %v1681 = vld [vmem:[%s474 + $0xc] sm:$0xf]
        %v1682 = vld [vmem:[%s474 + $0x10] sm:$0xf]
        %v1683 = vld [vmem:[%s474 + $0x14] sm:$0xf]
        %v1684 = vld [vmem:[%s474 + $0x18] sm:$0xf]
        %v1685 = vld [vmem:[%s474 + $0x1c] sm:$0xf]
        %v1686 = vld [vmem:[%s474 + $0x20] sm:$0xf]
        %v1687 = vld [vmem:[%s474 + $0x24] sm:$0xf]
        %v1688 = vld [vmem:[%s474 + $0x28] sm:$0xf]
        %v1689 = vld [vmem:[%s474 + $0x2c] sm:$0xf]
        %v1690 = vld [vmem:[%s474 + $0x30] sm:$0xf]
        %v1691 = vld [vmem:[%s474 + $0x34] sm:$0xf]
        %v1692 = vld [vmem:[%s474 + $0x38] sm:$0xf]
        %v1693 = vld [vmem:[%s474 + $0x3c] sm:$0xf]
        %v1694 = vld [vmem:[%s474 + $0x40] sm:$0xf]
        %v1695 = vld [vmem:[%s474 + $0x44] sm:$0xf]
        %v1696 = vld [vmem:[%s474 + $0x48] sm:$0xf]
        %v1697 = vld [vmem:[%s474 + $0x4c] sm:$0xf]
        %v1698 = vld [vmem:[%s474 + $0x50] sm:$0xf]
        %v1699 = vld [vmem:[%s474 + $0x54] sm:$0xf]
        %v1700 = vld [vmem:[%s474 + $0x58] sm:$0xf]
        %v1701 = vld [vmem:[%s474 + $0x5c] sm:$0xf]
        %v1702 = vld [vmem:[%s474 + $0x60] sm:$0xf]
        %v1703 = vld [vmem:[%s474 + $0x64] sm:$0xf]
        %v1704 = vld [vmem:[%s474 + $0x68] sm:$0xf]
        %v1705 = vld [vmem:[%s474 + $0x6c] sm:$0xf]
        %v1706 = vld [vmem:[%s474 + $0x70] sm:$0xf]
        %v1707 = vld [vmem:[%s474 + $0x74] sm:$0xf]
        %v1708 = vld [vmem:[%s474 + $0x78] sm:$0xf]
        %v1709 = vld [vmem:[%s474 + $0x7c] sm:$0xf]
        %v1710 = vld [vmem:[%s474 + $0x80] sm:$0xf]
        %v1711 = vld [vmem:[%s474 + $0x84] sm:$0xf]
        %v1712 = vld [vmem:[%s474 + $0x88] sm:$0xf]
        %v1713 = vld [vmem:[%s474 + $0x8c] sm:$0xf]
        %v1714 = vld [vmem:[%s474 + $0x90] sm:$0xf]
        %v1715 = vld [vmem:[%s474 + $0x94] sm:$0xf]
        %v1716 = vld [vmem:[%s474 + $0x98] sm:$0xf]
        %v1717 = vld [vmem:[%s474 + $0x9c] sm:$0xf]
        %v1718 = vld [vmem:[%s474 + $0xa0] sm:$0xf]
        %v1719 = vld [vmem:[%s474 + $0xa4] sm:$0xf]
        %v1720 = vld [vmem:[%s474 + $0xa8] sm:$0xf]
        %v1721 = vld [vmem:[%s474 + $0xac] sm:$0xf]
        %v1722 = vld [vmem:[%s474 + $0xb0] sm:$0xf]
        %v1723 = vld [vmem:[%s474 + $0xb4] sm:$0xf]
        %v1724 = vld [vmem:[%s474 + $0xb8] sm:$0xf]
        %v1725 = vld [vmem:[%s474 + $0xbc] sm:$0xf]
        %v1726 = vld [vmem:[%s474 + $0xc0] sm:$0xf]
        %v1727 = vld [vmem:[%s474 + $0xc4] sm:$0xf]
        %v1728 = vld [vmem:[%s474 + $0xc8] sm:$0xf]
        %v1729 = vld [vmem:[%s474 + $0xcc] sm:$0xf]
        %v1730 = vld [vmem:[%s474 + $0xd0] sm:$0xf]
        %v1731 = vld [vmem:[%s474 + $0xd4] sm:$0xf]
        %v1732 = vld [vmem:[%s474 + $0xd8] sm:$0xf]
        %v1733 = vld [vmem:[%s474 + $0xdc] sm:$0xf]
        %v1734 = vld [vmem:[%s474 + $0xe0] sm:$0xf]
        %v1735 = vld [vmem:[%s474 + $0xe4] sm:$0xf]
        %v1736 = vld [vmem:[%s474 + $0xe8] sm:$0xf]
        %v1737 = vld [vmem:[%s474 + $0xec] sm:$0xf]
        %v1738 = vld [vmem:[%s474 + $0xf0] sm:$0xf]
        %v1739 = vld [vmem:[%s474 + $0xf4] sm:$0xf]
        %v1740 = vld [vmem:[%s474 + $0xf8] sm:$0xf]
        %v1741 = vld [vmem:[%s474 + $0xfc] sm:$0xf]
        %v1806 = vunpack.c.l.b16 %v1678
        %v1807 = vunpack.c.l.b16 %v1679
        %v1808 = vunpack.c.l.b16 %v1680
        %v1809 = vunpack.c.l.b16 %v1681
        %v1810 = vunpack.c.l.b16 %v1682
        %v1811 = vunpack.c.l.b16 %v1683
        %v1812 = vunpack.c.l.b16 %v1684
        %v1813 = vunpack.c.l.b16 %v1685
        %v1814 = vunpack.c.l.b16 %v1686
        %v1815 = vunpack.c.l.b16 %v1687
        %v1816 = vunpack.c.l.b16 %v1688
        %v1817 = vunpack.c.l.b16 %v1689
        %v1818 = vunpack.c.l.b16 %v1690
        %v1819 = vunpack.c.l.b16 %v1691
        %v1820 = vunpack.c.l.b16 %v1692
        %v1821 = vunpack.c.l.b16 %v1693
        %v1822 = vunpack.c.l.b16 %v1694
        %v1823 = vunpack.c.l.b16 %v1695
        %v1824 = vunpack.c.l.b16 %v1696
        %v1825 = vunpack.c.l.b16 %v1697
        %v1826 = vunpack.c.l.b16 %v1698
        %v1827 = vunpack.c.l.b16 %v1699
        %v1828 = vunpack.c.l.b16 %v1700
        %v1829 = vunpack.c.l.b16 %v1701
        %v1830 = vunpack.c.l.b16 %v1702
        %v1831 = vunpack.c.l.b16 %v1703
        %v1832 = vunpack.c.l.b16 %v1704
        %v1833 = vunpack.c.l.b16 %v1705
        %v1834 = vunpack.c.l.b16 %v1706
        %v1835 = vunpack.c.l.b16 %v1707
        %v1836 = vunpack.c.l.b16 %v1708
        %v1837 = vunpack.c.l.b16 %v1709
        %v1838 = vunpack.c.l.b16 %v1710
        %v1839 = vunpack.c.l.b16 %v1711
        %v1840 = vunpack.c.l.b16 %v1712
        %v1841 = vunpack.c.l.b16 %v1713
        %v1842 = vunpack.c.l.b16 %v1714
        %v1843 = vunpack.c.l.b16 %v1715
        %v1844 = vunpack.c.l.b16 %v1716
        %v1845 = vunpack.c.l.b16 %v1717
        %v1846 = vunpack.c.l.b16 %v1718
        %v1847 = vunpack.c.l.b16 %v1719
        %v1848 = vunpack.c.l.b16 %v1720
        %v1849 = vunpack.c.l.b16 %v1721
        %v1850 = vunpack.c.l.b16 %v1722
        %v1851 = vunpack.c.l.b16 %v1723
        %v1852 = vunpack.c.l.b16 %v1724
        %v1853 = vunpack.c.l.b16 %v1725
        %v1854 = vunpack.c.l.b16 %v1726
        %v1855 = vunpack.c.l.b16 %v1727
        %v1856 = vunpack.c.l.b16 %v1728
        %v1857 = vunpack.c.l.b16 %v1729
        %v1858 = vunpack.c.l.b16 %v1730
        %v1859 = vunpack.c.l.b16 %v1731
        %v1860 = vunpack.c.l.b16 %v1732
        %v1861 = vunpack.c.l.b16 %v1733
        %v1862 = vunpack.c.l.b16 %v1734
        %v1863 = vunpack.c.l.b16 %v1735
        %v1864 = vunpack.c.l.b16 %v1736
        %v1865 = vunpack.c.l.b16 %v1737
        %v1866 = vunpack.c.l.b16 %v1738
        %v1867 = vunpack.c.l.b16 %v1739
        %v1868 = vunpack.c.l.b16 %v1740
        %v1869 = vunpack.c.l.b16 %v1741
        %v1870 = vpack.c.b16 %v1807, %v1806
        %v1871 = vpack.c.b16 %v1809, %v1808
        %v1872 = vpack.c.b16 %v1811, %v1810
        %v1873 = vpack.c.b16 %v1813, %v1812
        %v1874 = vpack.c.b16 %v1815, %v1814
        %v1875 = vpack.c.b16 %v1817, %v1816
        %v1876 = vpack.c.b16 %v1819, %v1818
        %v1877 = vpack.c.b16 %v1821, %v1820
        %v1878 = vpack.c.b16 %v1823, %v1822
        %v1879 = vpack.c.b16 %v1825, %v1824
        %v1880 = vpack.c.b16 %v1827, %v1826
        %v1881 = vpack.c.b16 %v1829, %v1828
        %v1882 = vpack.c.b16 %v1831, %v1830
        %v1883 = vpack.c.b16 %v1833, %v1832
        %v1884 = vpack.c.b16 %v1835, %v1834
        %v1885 = vpack.c.b16 %v1837, %v1836
        %v1886 = vpack.c.b16 %v1839, %v1838
        %v1887 = vpack.c.b16 %v1841, %v1840
        %v1888 = vpack.c.b16 %v1843, %v1842
        %v1889 = vpack.c.b16 %v1845, %v1844
        %v1890 = vpack.c.b16 %v1847, %v1846
        %v1891 = vpack.c.b16 %v1849, %v1848
        %v1892 = vpack.c.b16 %v1851, %v1850
        %v1893 = vpack.c.b16 %v1853, %v1852
        %v1894 = vpack.c.b16 %v1855, %v1854
        %v1895 = vpack.c.b16 %v1857, %v1856
        %v1896 = vpack.c.b16 %v1859, %v1858
        %v1897 = vpack.c.b16 %v1861, %v1860
        %v1898 = vpack.c.b16 %v1863, %v1862
        %v1899 = vpack.c.b16 %v1865, %v1864
        %v1900 = vpack.c.b16 %v1867, %v1866
        %v1901 = vpack.c.b16 %v1869, %v1868
        %1934 = vmatprep.subr.bf16.mxu0 0
        %1935 = vmatpush1.bf16.msra.mxu0 %v1870
        %1936 = vmatprep.subr.bf16.mxu0 0
        %1937 = vmatpush1.bf16.msra.mxu0 %v1871
        %1938 = vmatprep.subr.bf16.mxu0 0
        %1939 = vmatpush1.bf16.msra.mxu0 %v1872
        %1940 = vmatprep.subr.bf16.mxu0 0
        %1941 = vmatpush1.bf16.msra.mxu0 %v1873
        %1942 = vmatprep.subr.bf16.mxu0 0
        %1943 = vmatpush1.bf16.msra.mxu0 %v1874
        %1944 = vmatprep.subr.bf16.mxu0 0
        %1945 = vmatpush1.bf16.msra.mxu0 %v1875
        %1946 = vmatprep.subr.bf16.mxu0 0
        %1947 = vmatpush1.bf16.msra.mxu0 %v1876
        %1948 = vmatprep.subr.bf16.mxu0 0
        %1949 = vmatpush1.bf16.msra.mxu0 %v1877
        %1950 = vmatprep.subr.bf16.mxu0 0
        %1951 = vmatpush1.bf16.msra.mxu0 %v1878
        %1952 = vmatprep.subr.bf16.mxu0 0
        %1953 = vmatpush1.bf16.msra.mxu0 %v1879
        %1954 = vmatprep.subr.bf16.mxu0 0
        %1955 = vmatpush1.bf16.msra.mxu0 %v1880
        %1956 = vmatprep.subr.bf16.mxu0 0
        %1957 = vmatpush1.bf16.msra.mxu0 %v1881
        %1958 = vmatprep.subr.bf16.mxu0 0
        %1959 = vmatpush1.bf16.msra.mxu0 %v1882
        %1960 = vmatprep.subr.bf16.mxu0 0
        %1961 = vmatpush1.bf16.msra.mxu0 %v1883
        %1962 = vmatprep.subr.bf16.mxu0 0
        %1963 = vmatpush1.bf16.msra.mxu0 %v1884
        %1964 = vmatprep.subr.bf16.mxu0 0
        %1965 = vmatpush1.bf16.msra.mxu0 %v1885
        %1966 = vmatprep.mubr.bf16.mxu0 %v1675
        %1967 = vmatmul.mubr.bf16.gmra.mrb[0].mxu0 %v1674
        %v1968 = vpop.f32.mrb[0].mxu0
        %v1969 = vadd.f32 0.0, %v1968
        %v1970 = vpop.f32.mrb[0].mxu0
        %v1971 = vpop.f32.mrb[0].mxu0
        %v1972 = vpop.f32.mrb[0].mxu0
        %1973 = vdwg.mxu0
        %1974 = vmatprep.subr.bf16.mxu0 0
        %1975 = vmatpush1.bf16.msra.mxu0 %v1886
        %1976 = vmatprep.subr.bf16.mxu0 0
        %1977 = vmatpush1.bf16.msra.mxu0 %v1887
        %1978 = vmatprep.subr.bf16.mxu0 0
        %1979 = vmatpush1.bf16.msra.mxu0 %v1888
        %1980 = vmatprep.subr.bf16.mxu0 0
        %1981 = vmatpush1.bf16.msra.mxu0 %v1889
        %1982 = vmatprep.subr.bf16.mxu0 0
        %1983 = vmatpush1.bf16.msra.mxu0 %v1890
        %1984 = vmatprep.subr.bf16.mxu0 0
        %1985 = vmatpush1.bf16.msra.mxu0 %v1891
        %1986 = vmatprep.subr.bf16.mxu0 0
        %1987 = vmatpush1.bf16.msra.mxu0 %v1892
        %1988 = vmatprep.subr.bf16.mxu0 0
        %1989 = vmatpush1.bf16.msra.mxu0 %v1893
        %1990 = vmatprep.subr.bf16.mxu0 0
        %1991 = vmatpush1.bf16.msra.mxu0 %v1894
        %1992 = vmatprep.subr.bf16.mxu0 0
        %1993 = vmatpush1.bf16.msra.mxu0 %v1895
        %1994 = vmatprep.subr.bf16.mxu0 0
        %1995 = vmatpush1.bf16.msra.mxu0 %v1896
        %1996 = vmatprep.subr.bf16.mxu0 0
        %1997 = vmatpush1.bf16.msra.mxu0 %v1897
        %1998 = vmatprep.subr.bf16.mxu0 0
        %1999 = vmatpush1.bf16.msra.mxu0 %v1898
        %2000 = vmatprep.subr.bf16.mxu0 0
        %2001 = vmatpush1.bf16.msra.mxu0 %v1899
        %2002 = vmatprep.subr.bf16.mxu0 0
        %2003 = vmatpush1.bf16.msra.mxu0 %v1900
        %2004 = vmatprep.subr.bf16.mxu0 0
        %2005 = vmatpush1.bf16.msra.mxu0 %v1901
        %2006 = vmatprep.mubr.bf16.mxu0 %v1677
        %2007 = vmatmul.mubr.bf16.gmra.mrb[0].mxu0 %v1676
        %v2008 = vpop.f32.mrb[0].mxu0
        %v2009 = vadd.f32 %v1969, %v2008
        %v2010 = vpop.f32.mrb[0].mxu0
        %v2011 = vpop.f32.mrb[0].mxu0
        %v2012 = vpop.f32.mrb[0].mxu0
        %2013 = vdwg.mxu0
        %v2014 = vadd.f32 %v1673, %v2009
        %2015 = vst [vmem:[#allocation2] sm:$0xff] %v2014
        %p2016 = scmp.eq.s32.totalorder %s36, 1
        // Predicated region
        $region81: #{tpu_custom_call.1} parent=63 // pred_check
          %p2017 = pneg %p2016
        $region82: #{tpu_custom_call.1} parent=63 // pred_check_branch
          %2019 = sbr.rel (%p2017) target = $region84
        $region83: #{tpu_custom_call.1} parent=63 // pred_region
          %v2020 = vld [vmem:[#allocation2] sm:$0xff]
          %v2021 = vld [vmem:[%s10] sm:$0x1]
          %v2023 = vlaneseq
          %v2024 = vshrl.u32 %v2023, 7
          %v2025 = vsub.s32 0, %v2024
          %v2026 = vrot.slane %v2021, %v2025
          %v2028 = vadd.f32 %v2020, %v2026
          %2029 = vst [vmem:[%s534] sm:$0xff] %v2028
        $region84: #{tpu_custom_call.1} parent=63 // pred_fallthru
          _
        %s2030 = sand.u32 %s312, 1
        %s2031 = scalar_lea.sflag [#allocation5], %s2030
        %s2032 = sand.u32 %s312, 1
        %s2033 = smul.addr %s2032, 8
        %s2034 = scalar_lea.vmem [#allocation9], %s2033
        // Predicated region
        $region85: #{tpu_custom_call.1} parent=63 // pred_check
          %p2035 = pneg %p322
        $region86: #{tpu_custom_call.1} parent=63 // pred_check_branch
          %2037 = sbr.rel (%p2035) target = $region88
        $region87: #{tpu_custom_call.1} parent=63 // pred_region
          %s2039 = ssub.s32 128, 128
          %2040 = vsyncadd %s2031, %s2039
          %s2041 = smul.addr %s35, 128
          %s2042 = scalar_lea.hbm %s11, %s2041
          %s2044 = sshll.u32 %s2034, 4
          %s2045 = int_to_ptr.vmem [resolvable:$true] %s2044
          %2047 = dma.vmem_to_hbm [thread:$0]  %s2045, 128, %s2042, %s2031
        $region88: #{tpu_custom_call.1} parent=63 // pred_fallthru
          _
      $region64: #{tpu_custom_call.1} parent=5 // pred_fallthru
        _
      %p2048 = scmp.le.s32.totalorder 2, %s26
      // Predicated region
      $region89: #{tpu_custom_call.1} parent=5 // pred_check
        %p2049 = pneg %p2048
      $region90: #{tpu_custom_call.1} parent=5 // pred_check_branch
        %2051 = sbr.rel (%p2049) target = $region92
      $region91: #{tpu_custom_call.1} parent=5 // pred_region
        %s2052 = ssub.s32 %s26, 2
        // Predicated region
        $region93: #{tpu_custom_call.1} parent=91 // pred_check
          %p2053 = pneg %p328
        $region94: #{tpu_custom_call.1} parent=91 // pred_check_branch
          %2055 = sbr.rel (%p2053) target = $region96
        $region95: #{tpu_custom_call.1} parent=91 // pred_region
          %s2056 = sand.u32 %s313, 1
          %s2057 = scalar_lea.sflag [#allocation5], %s2056
          %s2058 = sand.u32 %s313, 1
          %s2059 = smul.addr %s2058, 8
          %s2060 = scalar_lea.vmem [#allocation9], %s2059
          %2061 = dma.done %s2057, 128
        $region96: #{tpu_custom_call.1} parent=91 // pred_fallthru
          _
      $region92: #{tpu_custom_call.1} parent=5 // pred_fallthru
        _
    $region6: #{tpu_custom_call.1} parent=1 // loop_footer
      %s30 = sadd.s32 1, %s26
    $region7: #{tpu_custom_call.1} parent=1 // loop_footer_branch
      %25 = sbr.rel target = $region3
    $region8: #{tpu_custom_call.1} parent=1 // loop_exit
      _
    %2062 = vsyncpa [#allocation4], 1
    %s2063 = scalar_lea.sflag [#allocation4], 1
    %2064 = vsyncpa %s2063, 1
    %2065 = vsyncpa [#allocation7], 1
    %s2066 = scalar_lea.sflag [#allocation7], 1
    %2067 = vsyncpa %s2066, 1
    %2068 = vsyncpa [#allocation5], 1
    %s2069 = scalar_lea.sflag [#allocation5], 1
    %2070 = vsyncpa %s2069, 1

// kernel: tpu_custom_call.1
$region0: #{tpu_custom_call.1}
  #allocation0 [shape = 'u32[]', space=smem, size = 0x4, offset = 0x4, fixed_abs, tag = 'smem constant byte address 0x4 - core index']
  #allocation1 [shape = 'u32[144,128]{1,0:T(1,128)}', space=vmem, size = 0x12000, scoped, tag = 'internal scratch']
  #allocation2 [shape = 'f32[8,128]{1,0:T(8,128)}', space=vmem, size = 0x1000, scoped, tag = 'scratch operand']
  %s0 = inlined_call_operand.vmem [shape: f32[2,8,128], index: 0, kind: input, shape index: {}]
  %s1 = inlined_call_operand.hbm [shape: bf16[128,1024], index: 1, kind: input, shape index: {}]
  %s2 = inlined_call_operand.vmem [shape: f32[1,1024], index: 2, kind: input, shape index: {}]
  %s3 = inlined_call_operand.hbm [shape: bf16[128,1024], index: 3, kind: input, shape index: {}]
  %s4 = inlined_call_operand.vmem [shape: f32[1,1024], index: 4, kind: input, shape index: {}]
  %s5 = inlined_call_operand.vmem [shape: f32[8,1], index: 5, kind: input, shape index: {}]
  %s6 = inlined_call_operand.vmem [shape: f32[8,1], index: 6, kind: input, shape index: {}]
  %s7 = inlined_call_operand.vmem [shape: bf16[8,8], index: 7, kind: input, shape index: {}]
  %s8 = inlined_call_operand.vmem [shape: f32[8,1], index: 8, kind: input, shape index: {}]
  %s9 = inlined_call_operand.hbm [shape: bf16[1024,128], index: 9, kind: input, shape index: {}]
  %s10 = inlined_call_operand.vmem [shape: f32[1,128], index: 10, kind: input, shape index: {}]
  %s11 = inlined_call_operand.hbm [shape: f32[2,8,128], index: 11, kind: output, shape index: {}]
  %s12 = sld [smem:[#allocation0]]
  $region97: #{tpu_custom_call.1} parent=0
    _
  %s14 = ssub.s32 1, %s12
  %s15 = scalar_select 0, %s14, %s12
  $region1: #{tpu_custom_call.1} parent=0
    #allocation3 [shape = 'u8[262144]{0}', space=vmem, size = 0x40000, scoped, tag = 'input window, operand 1']
    #allocation4 [shape = 's32[2]{0}', space=sflag, size = 0x8, scoped, tag = 'scoped memory for tpu_custom_call.1']
    #allocation5 [shape = 's32[2]{0}', space=sflag, size = 0x8, scoped, tag = 'scoped memory for tpu_custom_call.1']
    #allocation6 [shape = 'u8[262144]{0}', space=vmem, size = 0x40000, scoped, tag = 'input window, operand 3']
    #allocation7 [shape = 's32[2]{0}', space=sflag, size = 0x8, scoped, tag = 'scoped memory for tpu_custom_call.1']
    #allocation8 [shape = 'u8[262144]{0}', space=vmem, size = 0x40000, scoped, tag = 'input window, operand 9']
    #allocation9 [shape = 'u8[8192]{0}', space=vmem, size = 0x2000, scoped, tag = 'output window, operand 0']
    %16 = vsyncpa [#allocation4], 0
    %s17 = scalar_lea.sflag [#allocation4], 1
    %18 = vsyncpa %s17, 0
    %19 = vsyncpa [#allocation7], 0
    %s20 = scalar_lea.sflag [#allocation7], 1
    %21 = vsyncpa %s20, 0
    %22 = vsyncpa [#allocation5], 0
    %s23 = scalar_lea.sflag [#allocation5], 1
    %24 = vsyncpa %s23, 0
    loop: start=0, step=1, limit=6
    $region2: #{tpu_custom_call.1} parent=1 // loop_pre_header
      _
    $region3: #{tpu_custom_call.1} parent=1 // loop_header
      %s26 = sphi 0, %s30
      %p27 = scmp.ge.s32.totalorder %s26, 6
      %s33 = sphi 0, %s45
      %s34 = sphi 0, %s41
      %s35 = sphi 0, %s33
      %s36 = sphi 0, %s34
      %s37 = sphi 0, %s35
      %s38 = sphi 0, %s36
      %s48 = sphi 0, %s50
      %s51 = sphi 0, %s48
      %s52 = sphi 0, %s51
      %s68 = sphi 0, %s52
      %s74 = sphi 0, %s76
      %s77 = sphi 0, %s74
      %s78 = sphi 0, %s77
      %s94 = sphi 0, %s78
      %s100 = sphi 0, %s102
      %s103 = sphi 0, %s100
      %s104 = sphi 0, %s103
      %s120 = sphi 0, %s104
      %s126 = sphi 0, %s128
      %s129 = sphi 0, %s126
      %s130 = sphi 0, %s129
      %s146 = sphi 0, %s130
      %s152 = sphi 0, %s154
      %s155 = sphi 0, %s152
      %s156 = sphi 0, %s155
      %s172 = sphi 0, %s156
      %s176 = sphi 0, %s176
      %s178 = sphi 0, %s176
      %s179 = sphi 0, %s178
      %s193 = sphi 0, %s179
      %s197 = sphi 0, %s197
      %s199 = sphi 0, %s197
      %s200 = sphi 0, %s199
      %s214 = sphi 0, %s200
      %s218 = sphi 0, %s218
      %s220 = sphi 0, %s218
      %s221 = sphi 0, %s220
      %s235 = sphi 0, %s221
      %s239 = sphi 0, %s239
      %s241 = sphi 0, %s239
      %s242 = sphi 0, %s241
      %s256 = sphi 0, %s242
      %s262 = sphi 0, %s264
      %s265 = sphi 0, %s262
      %s266 = sphi 0, %s265
      %s282 = sphi 0, %s266
      %s286 = sphi 0, %s286
      %s288 = sphi 0, %s286
      %s289 = sphi 0, %s288
      %s303 = sphi 0, %s289
      %s309 = sphi 0, %s311
      %s312 = sphi 0, %s309
      %s313 = sphi 0, %s312
      %s329 = sphi 0, %s313
    $region4: #{tpu_custom_call.1} parent=1 // loop_header_branch
      %29 = sbr.rel (%p27) target = $region8
    $region5: #{tpu_custom_call.1} parent=1 // loop_body
      %s31 = ssub.s32 %s26, 1
      %s32 = ssub.s32 %s26, 2
      %s39 = sadd.s32 1, %s34
      %p40 = scmp.ge.s32.totalorder %s39, 2
      %s41 = scalar_select %p40, 0, %s39
      %s42 = sadd.s32 1, %s33
      %s43 = scalar_select %p40, %s42, %s33
      %p44 = scmp.ge.s32.totalorder %s43, 2
      %s45 = scalar_select %p44, 0, %s43
      %s46 = ssub.s32 %s33, %s45
      %p47 = scmp.eq.s32.totalorder %s46, 0
      %s49 = sadd.s32 %s48, 1
      %s50 = scalar_select %p47, %s48, %s49
      %p53 = pneg %p47
      %p54 = scmp.eq.s32.totalorder %s26, 3
      %p55 = por %p53, %p54
      %p56 = scmp.ne.s32.totalorder %s48, %s51
      %p57 = scmp.eq.s32.totalorder %s26, 0
      %p58 = por %p56, %p57
      %p59 = scmp.ne.s32.totalorder %s48, %s51
      %p60 = scmp.eq.s32.totalorder %s31, 3
      %p61 = por %p59, %p60
      %p62 = scmp.ne.s32.totalorder %s51, %s52
      %p63 = scmp.eq.s32.totalorder %s31, 0
      %p64 = por %p62, %p63
      %p65 = scmp.ne.s32.totalorder %s51, %s52
      %p66 = scmp.eq.s32.totalorder %s32, 3
      %p67 = por %p65, %p66
      %p69 = scmp.ne.s32.totalorder %s52, %s68
      %p70 = scmp.eq.s32.totalorder %s32, 0
      %p71 = por %p69, %p70
      %s72 = ssub.s32 %s34, %s41
      %p73 = scmp.eq.s32.totalorder %s72, 0
      %s75 = sadd.s32 %s74, 1
      %s76 = scalar_select %p73, %s74, %s75
      %p79 = pneg %p73
      %p80 = scmp.eq.s32.totalorder %s26, 3
      %p81 = por %p79, %p80
      %p82 = scmp.ne.s32.totalorder %s74, %s77
      %p83 = scmp.eq.s32.totalorder %s26, 0
      %p84 = por %p82, %p83
      %p85 = scmp.ne.s32.totalorder %s74, %s77
      %p86 = scmp.eq.s32.totalorder %s31, 3
      %p87 = por %p85, %p86
      %p88 = scmp.ne.s32.totalorder %s77, %s78
      %p89 = scmp.eq.s32.totalorder %s31, 0
      %p90 = por %p88, %p89
      %p91 = scmp.ne.s32.totalorder %s77, %s78
      %p92 = scmp.eq.s32.totalorder %s32, 3
      %p93 = por %p91, %p92
      %p95 = scmp.ne.s32.totalorder %s78, %s94
      %p96 = scmp.eq.s32.totalorder %s32, 0
      %p97 = por %p95, %p96
      %s98 = ssub.s32 %s34, %s41
      %p99 = scmp.eq.s32.totalorder %s98, 0
      %s101 = sadd.s32 %s100, 1
      %s102 = scalar_select %p99, %s100, %s101
      %p105 = pneg %p99
      %p106 = scmp.eq.s32.totalorder %s26, 3
      %p107 = por %p105, %p106
      %p108 = scmp.ne.s32.totalorder %s100, %s103
      %p109 = scmp.eq.s32.totalorder %s26, 0
      %p110 = por %p108, %p109
      %p111 = scmp.ne.s32.totalorder %s100, %s103
      %p112 = scmp.eq.s32.totalorder %s31, 3
      %p113 = por %p111, %p112
      %p114 = scmp.ne.s32.totalorder %s103, %s104
      %p115 = scmp.eq.s32.totalorder %s31, 0
      %p116 = por %p114, %p115
      %p117 = scmp.ne.s32.totalorder %s103, %s104
      %p118 = scmp.eq.s32.totalorder %s32, 3
      %p119 = por %p117, %p118
      %p121 = scmp.ne.s32.totalorder %s104, %s120
      %p122 = scmp.eq.s32.totalorder %s32, 0
      %p123 = por %p121, %p122
      %s124 = ssub.s32 %s34, %s41
      %p125 = scmp.eq.s32.totalorder %s124, 0
      %s127 = sadd.s32 %s126, 1
      %s128 = scalar_select %p125, %s126, %s127
      %p131 = pneg %p125
      %p132 = scmp.eq.s32.totalorder %s26, 3
      %p133 = por %p131, %p132
      %p134 = scmp.ne.s32.totalorder %s126, %s129
      %p135 = scmp.eq.s32.totalorder %s26, 0
      %p136 = por %p134, %p135
      %p137 = scmp.ne.s32.totalorder %s126, %s129
      %p138 = scmp.eq.s32.totalorder %s31, 3
      %p139 = por %p137, %p138
      %p140 = scmp.ne.s32.totalorder %s129, %s130
      %p141 = scmp.eq.s32.totalorder %s31, 0
      %p142 = por %p140, %p141
      %p143 = scmp.ne.s32.totalorder %s129, %s130
      %p144 = scmp.eq.s32.totalorder %s32, 3
      %p145 = por %p143, %p144
      %p147 = scmp.ne.s32.totalorder %s130, %s146
      %p148 = scmp.eq.s32.totalorder %s32, 0
      %p149 = por %p147, %p148
      %s150 = ssub.s32 %s34, %s41
      %p151 = scmp.eq.s32.totalorder %s150, 0
      %s153 = sadd.s32 %s152, 1
      %s154 = scalar_select %p151, %s152, %s153
      %p157 = pneg %p151
      %p158 = scmp.eq.s32.totalorder %s26, 3
      %p159 = por %p157, %p158
      %p160 = scmp.ne.s32.totalorder %s152, %s155
      %p161 = scmp.eq.s32.totalorder %s26, 0
      %p162 = por %p160, %p161
      %p163 = scmp.ne.s32.totalorder %s152, %s155
      %p164 = scmp.eq.s32.totalorder %s31, 3
      %p165 = por %p163, %p164
      %p166 = scmp.ne.s32.totalorder %s155, %s156
      %p167 = scmp.eq.s32.totalorder %s31, 0
      %p168 = por %p166, %p167
      %p169 = scmp.ne.s32.totalorder %s155, %s156
      %p170 = scmp.eq.s32.totalorder %s32, 3
      %p171 = por %p169, %p170
      %p173 = scmp.ne.s32.totalorder %s156, %s172
      %p174 = scmp.eq.s32.totalorder %s32, 0
      %p175 = por %p173, %p174
      %s177 = sadd.s32 %s176, 1
      %p180 = scmp.eq.s32.totalorder %s26, 3
      %p181 = scmp.ne.s32.totalorder %s176, %s178
      %p182 = scmp.eq.s32.totalorder %s26, 0
      %p183 = por %p181, %p182
      %p184 = scmp.ne.s32.totalorder %s176, %s178
      %p185 = scmp.eq.s32.totalorder %s31, 3
      %p186 = por %p184, %p185
      %p187 = scmp.ne.s32.totalorder %s178, %s179
      %p188 = scmp.eq.s32.totalorder %s31, 0
      %p189 = por %p187, %p188
      %p190 = scmp.ne.s32.totalorder %s178, %s179
      %p191 = scmp.eq.s32.totalorder %s32, 3
      %p192 = por %p190, %p191
      %p194 = scmp.ne.s32.totalorder %s179, %s193
      %p195 = scmp.eq.s32.totalorder %s32, 0
      %p196 = por %p194, %p195
      %s198 = sadd.s32 %s197, 1
      %p201 = scmp.eq.s32.totalorder %s26, 3
      %p202 = scmp.ne.s32.totalorder %s197, %s199
      %p203 = scmp.eq.s32.totalorder %s26, 0
      %p204 = por %p202, %p203
      %p205 = scmp.ne.s32.totalorder %s197, %s199
      %p206 = scmp.eq.s32.totalorder %s31, 3
      %p207 = por %p205, %p206
      %p208 = scmp.ne.s32.totalorder %s199, %s200
      %p209 = scmp.eq.s32.totalorder %s31, 0
      %p210 = por %p208, %p209
      %p211 = scmp.ne.s32.totalorder %s199, %s200
      %p212 = scmp.eq.s32.totalorder %s32, 3
      %p213 = por %p211, %p212
      %p215 = scmp.ne.s32.totalorder %s200, %s214
      %p216 = scmp.eq.s32.totalorder %s32, 0
      %p217 = por %p215, %p216
      %s219 = sadd.s32 %s218, 1
      %p222 = scmp.eq.s32.totalorder %s26, 3
      %p223 = scmp.ne.s32.totalorder %s218, %s220
      %p224 = scmp.eq.s32.totalorder %s26, 0
      %p225 = por %p223, %p224
      %p226 = scmp.ne.s32.totalorder %s218, %s220
      %p227 = scmp.eq.s32.totalorder %s31, 3
      %p228 = por %p226, %p227
      %p229 = scmp.ne.s32.totalorder %s220, %s221
      %p230 = scmp.eq.s32.totalorder %s31, 0
      %p231 = por %p229, %p230
      %p232 = scmp.ne.s32.totalorder %s220, %s221
      %p233 = scmp.eq.s32.totalorder %s32, 3
      %p234 = por %p232, %p233
      %p236 = scmp.ne.s32.totalorder %s221, %s235
      %p237 = scmp.eq.s32.totalorder %s32, 0
      %p238 = por %p236, %p237
      %s240 = sadd.s32 %s239, 1
      %p243 = scmp.eq.s32.totalorder %s26, 3
      %p244 = scmp.ne.s32.totalorder %s239, %s241
      %p245 = scmp.eq.s32.totalorder %s26, 0
      %p246 = por %p244, %p245
      %p247 = scmp.ne.s32.totalorder %s239, %s241
      %p248 = scmp.eq.s32.totalorder %s31, 3
      %p249 = por %p247, %p248
      %p250 = scmp.ne.s32.totalorder %s241, %s242
      %p251 = scmp.eq.s32.totalorder %s31, 0
      %p252 = por %p250, %p251
      %p253 = scmp.ne.s32.totalorder %s241, %s242
      %p254 = scmp.eq.s32.totalorder %s32, 3
      %p255 = por %p253, %p254
      %p257 = scmp.ne.s32.totalorder %s242, %s256
      %p258 = scmp.eq.s32.totalorder %s32, 0
      %p259 = por %p257, %p258
      %s260 = ssub.s32 %s34, %s41
      %p261 = scmp.eq.s32.totalorder %s260, 0
      %s263 = sadd.s32 %s262, 1
      %s264 = scalar_select %p261, %s262, %s263
      %p267 = pneg %p261
      %p268 = scmp.eq.s32.totalorder %s26, 3
      %p269 = por %p267, %p268
      %p270 = scmp.ne.s32.totalorder %s262, %s265
      %p271 = scmp.eq.s32.totalorder %s26, 0
      %p272 = por %p270, %p271
      %p273 = scmp.ne.s32.totalorder %s262, %s265
      %p274 = scmp.eq.s32.totalorder %s31, 3
      %p275 = por %p273, %p274
      %p276 = scmp.ne.s32.totalorder %s265, %s266
      %p277 = scmp.eq.s32.totalorder %s31, 0
      %p278 = por %p276, %p277
      %p279 = scmp.ne.s32.totalorder %s265, %s266
      %p280 = scmp.eq.s32.totalorder %s32, 3
      %p281 = por %p279, %p280
      %p283 = scmp.ne.s32.totalorder %s266, %s282
      %p284 = scmp.eq.s32.totalorder %s32, 0
      %p285 = por %p283, %p284
      %s287 = sadd.s32 %s286, 1
      %p290 = scmp.eq.s32.totalorder %s26, 3
      %p291 = scmp.ne.s32.totalorder %s286, %s288
      %p292 = scmp.eq.s32.totalorder %s26, 0
      %p293 = por %p291, %p292
      %p294 = scmp.ne.s32.totalorder %s286, %s288
      %p295 = scmp.eq.s32.totalorder %s31, 3
      %p296 = por %p294, %p295
      %p297 = scmp.ne.s32.totalorder %s288, %s289
      %p298 = scmp.eq.s32.totalorder %s31, 0
      %p299 = por %p297, %p298
      %p300 = scmp.ne.s32.totalorder %s288, %s289
      %p301 = scmp.eq.s32.totalorder %s32, 3
      %p302 = por %p300, %p301
      %p304 = scmp.ne.s32.totalorder %s289, %s303
      %p305 = scmp.eq.s32.totalorder %s32, 0
      %p306 = por %p304, %p305
      %s307 = ssub.s32 %s33, %s45
      %p308 = scmp.eq.s32.totalorder %s307, 0
      %s310 = sadd.s32 %s309, 1
      %s311 = scalar_select %p308, %s309, %s310
      %p314 = pneg %p308
      %p315 = scmp.eq.s32.totalorder %s26, 3
      %p316 = por %p314, %p315
      %p317 = scmp.ne.s32.totalorder %s309, %s312
      %p318 = scmp.eq.s32.totalorder %s26, 0
      %p319 = por %p317, %p318
      %p320 = scmp.ne.s32.totalorder %s309, %s312
      %p321 = scmp.eq.s32.totalorder %s31, 3
      %p322 = por %p320, %p321
      %p323 = scmp.ne.s32.totalorder %s312, %s313
      %p324 = scmp.eq.s32.totalorder %s31, 0
      %p325 = por %p323, %p324
      %p326 = scmp.ne.s32.totalorder %s312, %s313
      %p327 = scmp.eq.s32.totalorder %s32, 3
      %p328 = por %p326, %p327
      %p330 = scmp.ne.s32.totalorder %s313, %s329
      %p331 = scmp.eq.s32.totalorder %s32, 0
      %p332 = por %p330, %p331
      %p333 = scmp.le.s32.totalorder 1, %s26
      %p334 = scmp.lt.s32.totalorder %s26, 5
      %p335 = pnand %p333, %p334
      %p336 = pneg %p335
      // Predicated region
      $region9: #{tpu_custom_call.1} parent=5 // pred_check
        _
      $region10: #{tpu_custom_call.1} parent=5 // pred_check_branch
        %338 = sbr.rel (%p335) target = $region12
      $region11: #{tpu_custom_call.1} parent=5 // pred_region
        %s339 = ssub.s32 %s26, 1
        // Predicated region
        $region13: #{tpu_custom_call.1} parent=11 // pred_check
          %p340 = pneg %p189
        $region14: #{tpu_custom_call.1} parent=11 // pred_check_branch
          %342 = sbr.rel (%p340) target = $region16
        $region15: #{tpu_custom_call.1} parent=11 // pred_region
          _
        $region16: #{tpu_custom_call.1} parent=11 // pred_fallthru
          _
        // Predicated region
        $region17: #{tpu_custom_call.1} parent=11 // pred_check
          %p343 = pneg %p210
        $region18: #{tpu_custom_call.1} parent=11 // pred_check_branch
          %345 = sbr.rel (%p343) target = $region20
        $region19: #{tpu_custom_call.1} parent=11 // pred_region
          _
        $region20: #{tpu_custom_call.1} parent=11 // pred_fallthru
          _
        // Predicated region
        $region21: #{tpu_custom_call.1} parent=11 // pred_check
          %p346 = pneg %p231
        $region22: #{tpu_custom_call.1} parent=11 // pred_check_branch
          %348 = sbr.rel (%p346) target = $region24
        $region23: #{tpu_custom_call.1} parent=11 // pred_region
          _
        $region24: #{tpu_custom_call.1} parent=11 // pred_fallthru
          _
        // Predicated region
        $region25: #{tpu_custom_call.1} parent=11 // pred_check
          %p349 = pneg %p252
        $region26: #{tpu_custom_call.1} parent=11 // pred_check_branch
          %351 = sbr.rel (%p349) target = $region28
        $region27: #{tpu_custom_call.1} parent=11 // pred_region
          _
        $region28: #{tpu_custom_call.1} parent=11 // pred_fallthru
          _
        // Predicated region
        $region29: #{tpu_custom_call.1} parent=11 // pred_check
          %p352 = pneg %p299
        $region30: #{tpu_custom_call.1} parent=11 // pred_check_branch
          %354 = sbr.rel (%p352) target = $region32
        $region31: #{tpu_custom_call.1} parent=11 // pred_region
          _
        $region32: #{tpu_custom_call.1} parent=11 // pred_fallthru
          _
      $region12: #{tpu_custom_call.1} parent=5 // pred_fallthru
        _
      %p355 = scmp.lt.s32.totalorder %s26, 4
      // Predicated region
      $region33: #{tpu_custom_call.1} parent=5 // pred_check
        %p356 = pneg %p355
      $region34: #{tpu_custom_call.1} parent=5 // pred_check_branch
        %358 = sbr.rel (%p356) target = $region36
      $region35: #{tpu_custom_call.1} parent=5 // pred_region
        // Predicated region
        $region37: #{tpu_custom_call.1} parent=35 // pred_check
          %p359 = pneg %p58
        $region38: #{tpu_custom_call.1} parent=35 // pred_check_branch
          %361 = sbr.rel (%p359) target = $region40
        $region39: #{tpu_custom_call.1} parent=35 // pred_region
          %p362 = scmp.lt.s32.totalorder %s33, 1
          %s363 = scalar_select %p362, %s33, 1
          %s364 = smul.addr %s363, 8
          %s365 = scalar_lea.vmem %s0, %s364
        $region40: #{tpu_custom_call.1} parent=35 // pred_fallthru
          _
        // Predicated region
        $region41: #{tpu_custom_call.1} parent=35 // pred_check
          %p366 = pneg %p84
        $region42: #{tpu_custom_call.1} parent=35 // pred_check_branch
          %368 = sbr.rel (%p366) target = $region44
        $region43: #{tpu_custom_call.1} parent=35 // pred_region
          %s369 = sand.u32 %s74, 1
          %s370 = scalar_lea.sflag [#allocation4], %s369
          %s371 = sand.u32 %s74, 1
          %s372 = smul.addr %s371, 256
          %s373 = scalar_lea.vmem [#allocation3], %s372
          %s374 = smul.u32 4, %s34
          %s376 = ssub.s32 4096, 4096
          %377 = vsyncadd %s370, %s376
          %s378 = smul.addr %s374, 64
          %s379 = scalar_lea.hbm %s1, %s378
          %s380 = sshll.u32 %s373, 4
          %s381 = int_to_ptr.vmem [resolvable:$true] %s380
          %386 = dma.hbm_to_vmem [thread:$0]  %s379, 4096, %s381, %s370, 512, 256, 16
        $region44: #{tpu_custom_call.1} parent=35 // pred_fallthru
          _
        // Predicated region
        $region45: #{tpu_custom_call.1} parent=35 // pred_check
          %p387 = pneg %p110
        $region46: #{tpu_custom_call.1} parent=35 // pred_check_branch
          %389 = sbr.rel (%p387) target = $region48
        $region47: #{tpu_custom_call.1} parent=35 // pred_region
          %s390 = smul.u32 4, %s34
          %p391 = scmp.lt.s32.totalorder %s390, 7
          %s392 = scalar_select %p391, %s390, 7
          %s393 = scalar_lea.vmem %s2, %s392
          %s394 = smul.u32 4, %s34
        $region48: #{tpu_custom_call.1} parent=35 // pred_fallthru
          _
        // Predicated region
        $region49: #{tpu_custom_call.1} parent=35 // pred_check
          %p395 = pneg %p136
        $region50: #{tpu_custom_call.1} parent=35 // pred_check_branch
          %397 = sbr.rel (%p395) target = $region52
        $region51: #{tpu_custom_call.1} parent=35 // pred_region
          %s398 = sand.u32 %s26, 1
          %s399 = scalar_lea.sflag [#allocation7], %s398
          %s400 = sand.u32 %s126, 1
          %s401 = smul.addr %s400, 256
          %s402 = scalar_lea.vmem [#allocation6], %s401
          %s403 = smul.u32 4, %s34
          %s405 = ssub.s32 4096, 4096
          %406 = vsyncadd %s399, %s405
          %s407 = smul.addr %s403, 64
          %s408 = scalar_lea.hbm %s3, %s407
          %s409 = sshll.u32 %s402, 4
          %s410 = int_to_ptr.vmem [resolvable:$true] %s409
          %415 = dma.hbm_to_vmem [thread:$0]  %s408, 4096, %s410, %s399, 512, 256, 16
        $region52: #{tpu_custom_call.1} parent=35 // pred_fallthru
          _
        // Predicated region
        $region53: #{tpu_custom_call.1} parent=35 // pred_check
          %p416 = pneg %p162
        $region54: #{tpu_custom_call.1} parent=35 // pred_check_branch
          %418 = sbr.rel (%p416) target = $region56
        $region55: #{tpu_custom_call.1} parent=35 // pred_region
          %s419 = smul.u32 4, %s34
          %p420 = scmp.lt.s32.totalorder %s419, 7
          %s421 = scalar_select %p420, %s419, 7
          %s422 = scalar_lea.vmem %s4, %s421
          %s423 = smul.u32 4, %s34
        $region56: #{tpu_custom_call.1} parent=35 // pred_fallthru
          _
        // Predicated region
        $region57: #{tpu_custom_call.1} parent=35 // pred_check
          %p424 = pneg %p272
        $region58: #{tpu_custom_call.1} parent=35 // pred_check_branch
          %426 = sbr.rel (%p424) target = $region60
        $region59: #{tpu_custom_call.1} parent=35 // pred_region
          %s427 = sand.u32 %s26, 1
          %s428 = scalar_lea.sflag [#allocation7], %s427
          %s429 = sand.u32 %s262, 1
          %s430 = smul.addr %s429, 256
          %s431 = scalar_lea.vmem [#allocation8], %s430
          %s432 = smul.u32 64, %s34
          %s434 = ssub.s32 4096, 4096
          %435 = vsyncadd %s428, %s434
          %s436 = smul.addr %s432, 64
          %s437 = scalar_lea.hbm %s9, %s436
          %s438 = sshll.u32 %s431, 4
          %s439 = int_to_ptr.vmem [resolvable:$true] %s438
          %444 = dma.hbm_to_vmem [thread:$0]  %s437, 4096, %s439, %s428, 64, 64, 4
        $region60: #{tpu_custom_call.1} parent=35 // pred_fallthru
          _
      $region36: #{tpu_custom_call.1} parent=5 // pred_fallthru
        _
      %p445 = scmp.le.s32.totalorder 1, %s26
      %p446 = scmp.lt.s32.totalorder %s26, 5
      %p447 = pnand %p445, %p446
      %p448 = pneg %p447
      // Predicated region
      $region61: #{tpu_custom_call.1} parent=5 // pred_check
        _
      $region62: #{tpu_custom_call.1} parent=5 // pred_check_branch
        %450 = sbr.rel (%p447) target = $region64
      $region63: #{tpu_custom_call.1} parent=5 // pred_region
        %s451 = ssub.s32 %s26, 1
        %s452 = sand.u32 %s77, 1
        %s453 = scalar_lea.sflag [#allocation4], %s452
        %s454 = sand.u32 %s77, 1
        %s455 = smul.addr %s454, 256
        %s456 = scalar_lea.vmem [#allocation3], %s455
        // Predicated region
        $region65: #{tpu_custom_call.1} parent=63 // pred_check
          %p457 = pneg %p90
        $region66: #{tpu_custom_call.1} parent=63 // pred_check_branch
          %459 = sbr.rel (%p457) target = $region68
        $region67: #{tpu_custom_call.1} parent=63 // pred_region
          %460 = dma.done %s453, 4096
        $region68: #{tpu_custom_call.1} parent=63 // pred_fallthru
          _
        %s461 = sand.u32 %s31, 1
        %s462 = scalar_lea.sflag [#allocation7], %s461
        %s463 = sand.u32 %s129, 1
        %s464 = smul.addr %s463, 256
        %s465 = scalar_lea.vmem [#allocation6], %s464
        // Predicated region
        $region69: #{tpu_custom_call.1} parent=63 // pred_check
          %p466 = pneg %p142
        $region70: #{tpu_custom_call.1} parent=63 // pred_check_branch
          %468 = sbr.rel (%p466) target = $region72
        $region71: #{tpu_custom_call.1} parent=63 // pred_region
          %469 = dma.done %s462, 4096
        $region72: #{tpu_custom_call.1} parent=63 // pred_fallthru
          _
        %s470 = sand.u32 %s31, 1
        %s471 = scalar_lea.sflag [#allocation7], %s470
        %s472 = sand.u32 %s265, 1
        %s473 = smul.addr %s472, 256
        %s474 = scalar_lea.vmem [#allocation8], %s473
        // Predicated region
        $region73: #{tpu_custom_call.1} parent=63 // pred_check
          %p475 = pneg %p278
        $region74: #{tpu_custom_call.1} parent=63 // pred_check_branch
          %477 = sbr.rel (%p475) target = $region76
        $region75: #{tpu_custom_call.1} parent=63 // pred_region
          %478 = dma.done %s471, 4096
        $region76: #{tpu_custom_call.1} parent=63 // pred_fallthru
          _
        %p479 = scmp.lt.s32.totalorder %s35, 1
        %s480 = scalar_select %p479, %s35, 1
        %s481 = smul.addr %s480, 8
        %s482 = scalar_lea.vmem %s0, %s481
        %p483 = pneg %p64
        %p484 = pneg %p61
        %s485 = sand.u32 %s77, 1
        %s486 = scalar_lea.sflag [#allocation4], %s485
        %s487 = sand.u32 %s77, 1
        %s488 = smul.addr %s487, 256
        %s489 = scalar_lea.vmem [#allocation3], %s488
        %p490 = pneg %p90
        %p491 = pneg %p87
        %s492 = smul.u32 4, %s36
        %p493 = scmp.lt.s32.totalorder %s492, 7
        %s494 = scalar_select %p493, %s492, 7
        %s495 = scalar_lea.vmem %s2, %s494
        %p496 = pneg %p116
        %p497 = pneg %p113
        %s498 = sand.u32 %s31, 1
        %s499 = scalar_lea.sflag [#allocation7], %s498
        %s500 = sand.u32 %s129, 1
        %s501 = smul.addr %s500, 256
        %s502 = scalar_lea.vmem [#allocation6], %s501
        %p503 = pneg %p142
        %p504 = pneg %p139
        %s505 = smul.u32 4, %s36
        %p506 = scmp.lt.s32.totalorder %s505, 7
        %s507 = scalar_select %p506, %s505, 7
        %s508 = scalar_lea.vmem %s4, %s507
        %p509 = pneg %p168
        %p510 = pneg %p165
        %p511 = pneg %p189
        %p512 = pneg %p186
        %p513 = pneg %p210
        %p514 = pneg %p207
        %p515 = pneg %p231
        %p516 = pneg %p228
        %p517 = pneg %p252
        %p518 = pneg %p249
        %s519 = sand.u32 %s31, 1
        %s520 = scalar_lea.sflag [#allocation7], %s519
        %s521 = sand.u32 %s265, 1
        %s522 = smul.addr %s521, 256
        %s523 = scalar_lea.vmem [#allocation8], %s522
        %p524 = pneg %p278
        %p525 = pneg %p275
        %p526 = pneg %p299
        %p527 = pneg %p296
        %p528 = pneg %p325
        %p529 = pneg %p322
        %s530 = sand.u32 %s312, 1
        %s531 = scalar_lea.sflag [#allocation5], %s530
        %s532 = sand.u32 %s312, 1
        %s533 = smul.addr %s532, 8
        %s534 = scalar_lea.vmem [#allocation9], %s533
        %p535 = scmp.lt.s32.totalorder %s35, 1
        %s536 = scalar_select %p535, %s35, 1
        %s537 = smul.addr %s536, 8
        %s538 = scalar_lea.vmem %s0, %s537
        %s539 = smul.u32 4, %s36
        %s540 = smul.u32 4, %s36
        %p541 = scmp.lt.s32.totalorder %s540, 7
        %s542 = scalar_select %p541, %s540, 7
        %s543 = scalar_lea.vmem %s2, %s542
        %s544 = smul.u32 4, %s36
        %s545 = smul.u32 4, %s36
        %s546 = smul.u32 4, %s36
        %p547 = scmp.lt.s32.totalorder %s546, 7
        %s548 = scalar_select %p547, %s546, 7
        %s549 = scalar_lea.vmem %s4, %s548
        %s550 = smul.u32 4, %s36
        %s551 = smul.u32 64, %s36
        %p553 = scmp.eq.s32.totalorder %s36, 0
        // Predicated region
        $region77: #{tpu_custom_call.1} parent=63 // pred_check
          %p554 = pneg %p553
        $region78: #{tpu_custom_call.1} parent=63 // pred_check_branch
          %556 = sbr.rel (%p554) target = $region80
        $region79: #{tpu_custom_call.1} parent=63 // pred_region
          %557 = vst [vmem:[#allocation2] sm:$0xff] 0.0
        $region80: #{tpu_custom_call.1} parent=63 // pred_fallthru
          _
        %v558 = vld [vmem:[%s538] sm:$0xff]
        %v559 = vpack.c.bf16 %v558, %v558
        %v560 = vld [vmem:[%s456] sm:$0xff]
        %v561 = vld [vmem:[%s456 + $0x8] sm:$0xff]
        %v562 = vld [vmem:[%s456 + $0x10] sm:$0xff]
        %v563 = vld [vmem:[%s456 + $0x18] sm:$0xff]
        %v564 = vld [vmem:[%s456 + $0x20] sm:$0xff]
        %v565 = vld [vmem:[%s456 + $0x28] sm:$0xff]
        %v566 = vld [vmem:[%s456 + $0x30] sm:$0xff]
        %v567 = vld [vmem:[%s456 + $0x38] sm:$0xff]
        %v568 = vld [vmem:[%s456 + $0x40] sm:$0xff]
        %v569 = vld [vmem:[%s456 + $0x48] sm:$0xff]
        %v570 = vld [vmem:[%s456 + $0x50] sm:$0xff]
        %v571 = vld [vmem:[%s456 + $0x58] sm:$0xff]
        %v572 = vld [vmem:[%s456 + $0x60] sm:$0xff]
        %v573 = vld [vmem:[%s456 + $0x68] sm:$0xff]
        %v574 = vld [vmem:[%s456 + $0x70] sm:$0xff]
        %v575 = vld [vmem:[%s456 + $0x78] sm:$0xff]
        %v576 = vld [vmem:[%s456 + $0x80] sm:$0xff]
        %v577 = vld [vmem:[%s456 + $0x88] sm:$0xff]
        %v578 = vld [vmem:[%s456 + $0x90] sm:$0xff]
        %v579 = vld [vmem:[%s456 + $0x98] sm:$0xff]
        %v580 = vld [vmem:[%s456 + $0xa0] sm:$0xff]
        %v581 = vld [vmem:[%s456 + $0xa8] sm:$0xff]
        %v582 = vld [vmem:[%s456 + $0xb0] sm:$0xff]
        %v583 = vld [vmem:[%s456 + $0xb8] sm:$0xff]
        %v584 = vld [vmem:[%s456 + $0xc0] sm:$0xff]
        %v585 = vld [vmem:[%s456 + $0xc8] sm:$0xff]
        %v586 = vld [vmem:[%s456 + $0xd0] sm:$0xff]
        %v587 = vld [vmem:[%s456 + $0xd8] sm:$0xff]
        %v588 = vld [vmem:[%s456 + $0xe0] sm:$0xff]
        %v589 = vld [vmem:[%s456 + $0xe8] sm:$0xff]
        %v590 = vld [vmem:[%s456 + $0xf0] sm:$0xff]
        %v591 = vld [vmem:[%s456 + $0xf8] sm:$0xff]
        %v592 = vld [vmem:[%s543] sm:$0xf]
        %v594 = vlaneseq
        %v595 = vshrl.u32 %v594, 7
        %v596 = vsub.s32 0, %v595
        %v597 = vrot.slane %v592, %v596
        %v598 = vlaneseq
        %v599 = vshrl.u32 %v598, 7
        %v600 = vsub.s32 1, %v599
        %v601 = vrot.slane %v592, %v600
        %v602 = vlaneseq
        %v603 = vshrl.u32 %v602, 7
        %v604 = vsub.s32 2, %v603
        %v605 = vrot.slane %v592, %v604
        %v606 = vlaneseq
        %v607 = vshrl.u32 %v606, 7
        %v608 = vsub.s32 3, %v607
        %v609 = vrot.slane %v592, %v608
        %v646 = vunpack.c.l.b16 %v560
        %v647 = vunpack.c.h.b16 %v560
        %v648 = vunpack.c.l.b16 %v561
        %v649 = vunpack.c.h.b16 %v561
        %v650 = vunpack.c.l.b16 %v562
        %v651 = vunpack.c.h.b16 %v562
        %v652 = vunpack.c.l.b16 %v563
        %v653 = vunpack.c.h.b16 %v563
        %v654 = vunpack.c.l.b16 %v564
        %v655 = vunpack.c.h.b16 %v564
        %v656 = vunpack.c.l.b16 %v565
        %v657 = vunpack.c.h.b16 %v565
        %v658 = vunpack.c.l.b16 %v566
        %v659 = vunpack.c.h.b16 %v566
        %v660 = vunpack.c.l.b16 %v567
        %v661 = vunpack.c.h.b16 %v567
        %v662 = vunpack.c.l.b16 %v568
        %v663 = vunpack.c.h.b16 %v568
        %v664 = vunpack.c.l.b16 %v569
        %v665 = vunpack.c.h.b16 %v569
        %v666 = vunpack.c.l.b16 %v570
        %v667 = vunpack.c.h.b16 %v570
        %v668 = vunpack.c.l.b16 %v571
        %v669 = vunpack.c.h.b16 %v571
        %v670 = vunpack.c.l.b16 %v572
        %v671 = vunpack.c.h.b16 %v572
        %v672 = vunpack.c.l.b16 %v573
        %v673 = vunpack.c.h.b16 %v573
        %v674 = vunpack.c.l.b16 %v574
        %v675 = vunpack.c.h.b16 %v574
        %v676 = vunpack.c.l.b16 %v575
        %v677 = vunpack.c.h.b16 %v575
        %v678 = vunpack.c.l.b16 %v576
        %v679 = vunpack.c.h.b16 %v576
        %v680 = vunpack.c.l.b16 %v577
        %v681 = vunpack.c.h.b16 %v577
        %v682 = vunpack.c.l.b16 %v578
        %v683 = vunpack.c.h.b16 %v578
        %v684 = vunpack.c.l.b16 %v579
        %v685 = vunpack.c.h.b16 %v579
        %v686 = vunpack.c.l.b16 %v580
        %v687 = vunpack.c.h.b16 %v580
        %v688 = vunpack.c.l.b16 %v581
        %v689 = vunpack.c.h.b16 %v581
        %v690 = vunpack.c.l.b16 %v582
        %v691 = vunpack.c.h.b16 %v582
        %v692 = vunpack.c.l.b16 %v583
        %v693 = vunpack.c.h.b16 %v583
        %v694 = vunpack.c.l.b16 %v584
        %v695 = vunpack.c.h.b16 %v584
        %v696 = vunpack.c.l.b16 %v585
        %v697 = vunpack.c.h.b16 %v585
        %v698 = vunpack.c.l.b16 %v586
        %v699 = vunpack.c.h.b16 %v586
        %v700 = vunpack.c.l.b16 %v587
        %v701 = vunpack.c.h.b16 %v587
        %v702 = vunpack.c.l.b16 %v588
        %v703 = vunpack.c.h.b16 %v588
        %v704 = vunpack.c.l.b16 %v589
        %v705 = vunpack.c.h.b16 %v589
        %v706 = vunpack.c.l.b16 %v590
        %v707 = vunpack.c.h.b16 %v590
        %v708 = vunpack.c.l.b16 %v591
        %v709 = vunpack.c.h.b16 %v591
        %v710 = vpack.c.b16 %v650, %v646
        %v711 = vpack.c.b16 %v651, %v647
        %v712 = vpack.c.b16 %v652, %v648
        %v713 = vpack.c.b16 %v653, %v649
        %v714 = vpack.c.b16 %v658, %v654
        %v715 = vpack.c.b16 %v659, %v655
        %v716 = vpack.c.b16 %v660, %v656
        %v717 = vpack.c.b16 %v661, %v657
        %v718 = vpack.c.b16 %v666, %v662
        %v719 = vpack.c.b16 %v667, %v663
        %v720 = vpack.c.b16 %v668, %v664
        %v721 = vpack.c.b16 %v669, %v665
        %v722 = vpack.c.b16 %v674, %v670
        %v723 = vpack.c.b16 %v675, %v671
        %v724 = vpack.c.b16 %v676, %v672
        %v725 = vpack.c.b16 %v677, %v673
        %v726 = vpack.c.b16 %v682, %v678
        %v727 = vpack.c.b16 %v683, %v679
        %v728 = vpack.c.b16 %v684, %v680
        %v729 = vpack.c.b16 %v685, %v681
        %v730 = vpack.c.b16 %v690, %v686
        %v731 = vpack.c.b16 %v691, %v687
        %v732 = vpack.c.b16 %v692, %v688
        %v733 = vpack.c.b16 %v693, %v689
        %v734 = vpack.c.b16 %v698, %v694
        %v735 = vpack.c.b16 %v699, %v695
        %v736 = vpack.c.b16 %v700, %v696
        %v737 = vpack.c.b16 %v701, %v697
        %v738 = vpack.c.b16 %v706, %v702
        %v739 = vpack.c.b16 %v707, %v703
        %v740 = vpack.c.b16 %v708, %v704
        %v741 = vpack.c.b16 %v709, %v705
        %774 = vmatprep.subr.bf16.mxu0 %v711
        %775 = vmatpush1.bf16.msra.mxu0 %v710
        %776 = vmatprep.subr.bf16.mxu0 %v715
        %777 = vmatpush1.bf16.msra.mxu0 %v714
        %778 = vmatprep.subr.bf16.mxu0 %v719
        %779 = vmatpush1.bf16.msra.mxu0 %v718
        %780 = vmatprep.subr.bf16.mxu0 %v723
        %781 = vmatpush1.bf16.msra.mxu0 %v722
        %782 = vmatprep.subr.bf16.mxu0 %v727
        %783 = vmatpush1.bf16.msra.mxu0 %v726
        %784 = vmatprep.subr.bf16.mxu0 %v731
        %785 = vmatpush1.bf16.msra.mxu0 %v730
        %786 = vmatprep.subr.bf16.mxu0 %v735
        %787 = vmatpush1.bf16.msra.mxu0 %v734
        %788 = vmatprep.subr.bf16.mxu0 %v739
        %789 = vmatpush1.bf16.msra.mxu0 %v738
        %790 = vmatprep.subr.bf16.mxu0 0
        %791 = vmatpush1.bf16.msra.mxu0 0
        %792 = vmatprep.subr.bf16.mxu0 0
        %793 = vmatpush1.bf16.msra.mxu0 0
        %794 = vmatprep.subr.bf16.mxu0 0
        %795 = vmatpush1.bf16.msra.mxu0 0
        %796 = vmatprep.subr.bf16.mxu0 0
        %797 = vmatpush1.bf16.msra.mxu0 0
        %798 = vmatprep.subr.bf16.mxu0 0
        %799 = vmatpush1.bf16.msra.mxu0 0
        %800 = vmatprep.subr.bf16.mxu0 0
        %801 = vmatpush1.bf16.msra.mxu0 0
        %802 = vmatprep.subr.bf16.mxu0 0
        %803 = vmatpush1.bf16.msra.mxu0 0
        %804 = vmatprep.subr.bf16.mxu0 0
        %805 = vmatpush1.bf16.msra.mxu0 0
        %806 = vmatprep.mubr.bf16.mxu0 0
        %807 = vmatmul.mubr.bf16.gmra.mrb[0].mxu0 %v559
        %v808 = vpop.f32.mrb[0].mxu0
        %v809 = vadd.f32 %v597, %v808
        %v810 = vpop.f32.mrb[0].mxu0
        %v811 = vadd.f32 %v601, %v810
        %v812 = vpop.f32.mrb[0].mxu0
        %v813 = vpop.f32.mrb[0].mxu0
        %814 = vdwg.mxu0
        %815 = vmatprep.subr.bf16.mxu0 %v713
        %816 = vmatpush1.bf16.msra.mxu0 %v712
        %817 = vmatprep.subr.bf16.mxu0 %v717
        %818 = vmatpush1.bf16.msra.mxu0 %v716
        %819 = vmatprep.subr.bf16.mxu0 %v721
        %820 = vmatpush1.bf16.msra.mxu0 %v720
        %821 = vmatprep.subr.bf16.mxu0 %v725
        %822 = vmatpush1.bf16.msra.mxu0 %v724
        %823 = vmatprep.subr.bf16.mxu0 %v729
        %824 = vmatpush1.bf16.msra.mxu0 %v728
        %825 = vmatprep.subr.bf16.mxu0 %v733
        %826 = vmatpush1.bf16.msra.mxu0 %v732
        %827 = vmatprep.subr.bf16.mxu0 %v737
        %828 = vmatpush1.bf16.msra.mxu0 %v736
        %829 = vmatprep.subr.bf16.mxu0 %v741
        %830 = vmatpush1.bf16.msra.mxu0 %v740
        %831 = vmatprep.subr.bf16.mxu0 0
        %832 = vmatpush1.bf16.msra.mxu0 0
        %833 = vmatprep.subr.bf16.mxu0 0
        %834 = vmatpush1.bf16.msra.mxu0 0
        %835 = vmatprep.subr.bf16.mxu0 0
        %836 = vmatpush1.bf16.msra.mxu0 0
        %837 = vmatprep.subr.bf16.mxu0 0
        %838 = vmatpush1.bf16.msra.mxu0 0
        %839 = vmatprep.subr.bf16.mxu0 0
        %840 = vmatpush1.bf16.msra.mxu0 0
        %841 = vmatprep.subr.bf16.mxu0 0
        %842 = vmatpush1.bf16.msra.mxu0 0
        %843 = vmatprep.subr.bf16.mxu0 0
        %844 = vmatpush1.bf16.msra.mxu0 0
        %845 = vmatprep.subr.bf16.mxu0 0
        %846 = vmatpush1.bf16.msra.mxu0 0
        %847 = vmatprep.mubr.bf16.mxu0 0
        %848 = vmatmul.mubr.bf16.gmra.mrb[0].mxu0 %v559
        %v849 = vpop.f32.mrb[0].mxu0
        %v850 = vadd.f32 %v605, %v849
        %v851 = vpop.f32.mrb[0].mxu0
        %v852 = vadd.f32 %v609, %v851
        %v853 = vpop.f32.mrb[0].mxu0
        %v854 = vpop.f32.mrb[0].mxu0
        %855 = vdwg.mxu0
        %v856 = vmul.f32 %v809, 0.5
        %v857 = vmul.f32 %v811, 0.5
        %v858 = vmul.f32 %v850, 0.5
        %v859 = vmul.f32 %v852, 0.5
        %v860 = vmul.f32 %v809, 0.70710677
        %v861 = vmul.f32 %v811, 0.70710677
        %v862 = vmul.f32 %v850, 0.70710677
        %v863 = vmul.f32 %v852, 0.70710677
        %v864 = verf.f32.pop %v860
        %v865 = verf.f32.pop %v861
        %v866 = verf.f32.pop %v862
        %v867 = verf.f32.pop %v863
        %v868 = vadd.f32 %v864, 1.0
        %v869 = vadd.f32 %v865, 1.0
        %v870 = vadd.f32 %v866, 1.0
        %v871 = vadd.f32 %v867, 1.0
        %v872 = vmul.f32 %v856, %v868
        %v873 = vmul.f32 %v857, %v869
        %v874 = vmul.f32 %v858, %v870
        %v875 = vmul.f32 %v859, %v871
        %v876 = vld [vmem:[%s465] sm:$0xff]
        %v877 = vld [vmem:[%s465 + $0x8] sm:$0xff]
        %v878 = vld [vmem:[%s465 + $0x10] sm:$0xff]
        %v879 = vld [vmem:[%s465 + $0x18] sm:$0xff]
        %v880 = vld [vmem:[%s465 + $0x20] sm:$0xff]
        %v881 = vld [vmem:[%s465 + $0x28] sm:$0xff]
        %v882 = vld [vmem:[%s465 + $0x30] sm:$0xff]
        %v883 = vld [vmem:[%s465 + $0x38] sm:$0xff]
        %v884 = vld [vmem:[%s465 + $0x40] sm:$0xff]
        %v885 = vld [vmem:[%s465 + $0x48] sm:$0xff]
        %v886 = vld [vmem:[%s465 + $0x50] sm:$0xff]
        %v887 = vld [vmem:[%s465 + $0x58] sm:$0xff]
        %v888 = vld [vmem:[%s465 + $0x60] sm:$0xff]
        %v889 = vld [vmem:[%s465 + $0x68] sm:$0xff]
        %v890 = vld [vmem:[%s465 + $0x70] sm:$0xff]
        %v891 = vld [vmem:[%s465 + $0x78] sm:$0xff]
        %v892 = vld [vmem:[%s465 + $0x80] sm:$0xff]
        %v893 = vld [vmem:[%s465 + $0x88] sm:$0xff]
        %v894 = vld [vmem:[%s465 + $0x90] sm:$0xff]
        %v895 = vld [vmem:[%s465 + $0x98] sm:$0xff]
        %v896 = vld [vmem:[%s465 + $0xa0] sm:$0xff]
        %v897 = vld [vmem:[%s465 + $0xa8] sm:$0xff]
        %v898 = vld [vmem:[%s465 + $0xb0] sm:$0xff]
        %v899 = vld [vmem:[%s465 + $0xb8] sm:$0xff]
        %v900 = vld [vmem:[%s465 + $0xc0] sm:$0xff]
        %v901 = vld [vmem:[%s465 + $0xc8] sm:$0xff]
        %v902 = vld [vmem:[%s465 + $0xd0] sm:$0xff]
        %v903 = vld [vmem:[%s465 + $0xd8] sm:$0xff]
        %v904 = vld [vmem:[%s465 + $0xe0] sm:$0xff]
        %v905 = vld [vmem:[%s465 + $0xe8] sm:$0xff]
        %v906 = vld [vmem:[%s465 + $0xf0] sm:$0xff]
        %v907 = vld [vmem:[%s465 + $0xf8] sm:$0xff]
        %v908 = vld [vmem:[%s549] sm:$0xf]
        %v910 = vlaneseq
        %v911 = vshrl.u32 %v910, 7
        %v912 = vsub.s32 0, %v911
        %v913 = vrot.slane %v908, %v912
        %v914 = vlaneseq
        %v915 = vshrl.u32 %v914, 7
        %v916 = vsub.s32 1, %v915
        %v917 = vrot.slane %v908, %v916
        %v918 = vlaneseq
        %v919 = vshrl.u32 %v918, 7
        %v920 = vsub.s32 2, %v919
        %v921 = vrot.slane %v908, %v920
        %v922 = vlaneseq
        %v923 = vshrl.u32 %v922, 7
        %v924 = vsub.s32 3, %v923
        %v925 = vrot.slane %v908, %v924
        %v962 = vunpack.c.l.b16 %v876
        %v963 = vunpack.c.h.b16 %v876
        %v964 = vunpack.c.l.b16 %v877
        %v965 = vunpack.c.h.b16 %v877
        %v966 = vunpack.c.l.b16 %v878
        %v967 = vunpack.c.h.b16 %v878
        %v968 = vunpack.c.l.b16 %v879
        %v969 = vunpack.c.h.b16 %v879
        %v970 = vunpack.c.l.b16 %v880
        %v971 = vunpack.c.h.b16 %v880
        %v972 = vunpack.c.l.b16 %v881
        %v973 = vunpack.c.h.b16 %v881
        %v974 = vunpack.c.l.b16 %v882
        %v975 = vunpack.c.h.b16 %v882
        %v976 = vunpack.c.l.b16 %v883
        %v977 = vunpack.c.h.b16 %v883
        %v978 = vunpack.c.l.b16 %v884
        %v979 = vunpack.c.h.b16 %v884
        %v980 = vunpack.c.l.b16 %v885
        %v981 = vunpack.c.h.b16 %v885
        %v982 = vunpack.c.l.b16 %v886
        %v983 = vunpack.c.h.b16 %v886
        %v984 = vunpack.c.l.b16 %v887
        %v985 = vunpack.c.h.b16 %v887
        %v986 = vunpack.c.l.b16 %v888
        %v987 = vunpack.c.h.b16 %v888
        %v988 = vunpack.c.l.b16 %v889
        %v989 = vunpack.c.h.b16 %v889
        %v990 = vunpack.c.l.b16 %v890
        %v991 = vunpack.c.h.b16 %v890
        %v992 = vunpack.c.l.b16 %v891
        %v993 = vunpack.c.h.b16 %v891
        %v994 = vunpack.c.l.b16 %v892
        %v995 = vunpack.c.h.b16 %v892
        %v996 = vunpack.c.l.b16 %v893
        %v997 = vunpack.c.h.b16 %v893
        %v998 = vunpack.c.l.b16 %v894
        %v999 = vunpack.c.h.b16 %v894
        %v1000 = vunpack.c.l.b16 %v895
        %v1001 = vunpack.c.h.b16 %v895
        %v1002 = vunpack.c.l.b16 %v896
        %v1003 = vunpack.c.h.b16 %v896
        %v1004 = vunpack.c.l.b16 %v897
        %v1005 = vunpack.c.h.b16 %v897
        %v1006 = vunpack.c.l.b16 %v898
        %v1007 = vunpack.c.h.b16 %v898
        %v1008 = vunpack.c.l.b16 %v899
        %v1009 = vunpack.c.h.b16 %v899
        %v1010 = vunpack.c.l.b16 %v900
        %v1011 = vunpack.c.h.b16 %v900
        %v1012 = vunpack.c.l.b16 %v901
        %v1013 = vunpack.c.h.b16 %v901
        %v1014 = vunpack.c.l.b16 %v902
        %v1015 = vunpack.c.h.b16 %v902
        %v1016 = vunpack.c.l.b16 %v903
        %v1017 = vunpack.c.h.b16 %v903
        %v1018 = vunpack.c.l.b16 %v904
        %v1019 = vunpack.c.h.b16 %v904
        %v1020 = vunpack.c.l.b16 %v905
        %v1021 = vunpack.c.h.b16 %v905
        %v1022 = vunpack.c.l.b16 %v906
        %v1023 = vunpack.c.h.b16 %v906
        %v1024 = vunpack.c.l.b16 %v907
        %v1025 = vunpack.c.h.b16 %v907
        %v1026 = vpack.c.b16 %v966, %v962
        %v1027 = vpack.c.b16 %v967, %v963
        %v1028 = vpack.c.b16 %v968, %v964
        %v1029 = vpack.c.b16 %v969, %v965
        %v1030 = vpack.c.b16 %v974, %v970
        %v1031 = vpack.c.b16 %v975, %v971
        %v1032 = vpack.c.b16 %v976, %v972
        %v1033 = vpack.c.b16 %v977, %v973
        %v1034 = vpack.c.b16 %v982, %v978
        %v1035 = vpack.c.b16 %v983, %v979
        %v1036 = vpack.c.b16 %v984, %v980
        %v1037 = vpack.c.b16 %v985, %v981
        %v1038 = vpack.c.b16 %v990, %v986
        %v1039 = vpack.c.b16 %v991, %v987
        %v1040 = vpack.c.b16 %v992, %v988
        %v1041 = vpack.c.b16 %v993, %v989
        %v1042 = vpack.c.b16 %v998, %v994
        %v1043 = vpack.c.b16 %v999, %v995
        %v1044 = vpack.c.b16 %v1000, %v996
        %v1045 = vpack.c.b16 %v1001, %v997
        %v1046 = vpack.c.b16 %v1006, %v1002
        %v1047 = vpack.c.b16 %v1007, %v1003
        %v1048 = vpack.c.b16 %v1008, %v1004
        %v1049 = vpack.c.b16 %v1009, %v1005
        %v1050 = vpack.c.b16 %v1014, %v1010
        %v1051 = vpack.c.b16 %v1015, %v1011
        %v1052 = vpack.c.b16 %v1016, %v1012
        %v1053 = vpack.c.b16 %v1017, %v1013
        %v1054 = vpack.c.b16 %v1022, %v1018
        %v1055 = vpack.c.b16 %v1023, %v1019
        %v1056 = vpack.c.b16 %v1024, %v1020
        %v1057 = vpack.c.b16 %v1025, %v1021
        %1090 = vmatprep.subr.bf16.mxu0 %v1027
        %1091 = vmatpush1.bf16.msra.mxu0 %v1026
        %1092 = vmatprep.subr.bf16.mxu0 %v1031
        %1093 = vmatpush1.bf16.msra.mxu0 %v1030
        %1094 = vmatprep.subr.bf16.mxu0 %v1035
        %1095 = vmatpush1.bf16.msra.mxu0 %v1034
        %1096 = vmatprep.subr.bf16.mxu0 %v1039
        %1097 = vmatpush1.bf16.msra.mxu0 %v1038
        %1098 = vmatprep.subr.bf16.mxu0 %v1043
        %1099 = vmatpush1.bf16.msra.mxu0 %v1042
        %1100 = vmatprep.subr.bf16.mxu0 %v1047
        %1101 = vmatpush1.bf16.msra.mxu0 %v1046
        %1102 = vmatprep.subr.bf16.mxu0 %v1051
        %1103 = vmatpush1.bf16.msra.mxu0 %v1050
        %1104 = vmatprep.subr.bf16.mxu0 %v1055
        %1105 = vmatpush1.bf16.msra.mxu0 %v1054
        %1106 = vmatprep.subr.bf16.mxu0 0
        %1107 = vmatpush1.bf16.msra.mxu0 0
        %1108 = vmatprep.subr.bf16.mxu0 0
        %1109 = vmatpush1.bf16.msra.mxu0 0
        %1110 = vmatprep.subr.bf16.mxu0 0
        %1111 = vmatpush1.bf16.msra.mxu0 0
        %1112 = vmatprep.subr.bf16.mxu0 0
        %1113 = vmatpush1.bf16.msra.mxu0 0
        %1114 = vmatprep.subr.bf16.mxu0 0
        %1115 = vmatpush1.bf16.msra.mxu0 0
        %1116 = vmatprep.subr.bf16.mxu0 0
        %1117 = vmatpush1.bf16.msra.mxu0 0
        %1118 = vmatprep.subr.bf16.mxu0 0
        %1119 = vmatpush1.bf16.msra.mxu0 0
        %1120 = vmatprep.subr.bf16.mxu0 0
        %1121 = vmatpush1.bf16.msra.mxu0 0
        %1122 = vmatprep.mubr.bf16.mxu0 0
        %1123 = vmatmul.mubr.bf16.gmra.mrb[0].mxu0 %v559
        %v1124 = vpop.f32.mrb[0].mxu0
        %v1125 = vadd.f32 %v913, %v1124
        %v1126 = vpop.f32.mrb[0].mxu0
        %v1127 = vadd.f32 %v917, %v1126
        %v1128 = vpop.f32.mrb[0].mxu0
        %v1129 = vpop.f32.mrb[0].mxu0
        %1130 = vdwg.mxu0
        %1131 = vmatprep.subr.bf16.mxu0 %v1029
        %1132 = vmatpush1.bf16.msra.mxu0 %v1028
        %1133 = vmatprep.subr.bf16.mxu0 %v1033
        %1134 = vmatpush1.bf16.msra.mxu0 %v1032
        %1135 = vmatprep.subr.bf16.mxu0 %v1037
        %1136 = vmatpush1.bf16.msra.mxu0 %v1036
        %1137 = vmatprep.subr.bf16.mxu0 %v1041
        %1138 = vmatpush1.bf16.msra.mxu0 %v1040
        %1139 = vmatprep.subr.bf16.mxu0 %v1045
        %1140 = vmatpush1.bf16.msra.mxu0 %v1044
        %1141 = vmatprep.subr.bf16.mxu0 %v1049
        %1142 = vmatpush1.bf16.msra.mxu0 %v1048
        %1143 = vmatprep.subr.bf16.mxu0 %v1053
        %1144 = vmatpush1.bf16.msra.mxu0 %v1052
        %1145 = vmatprep.subr.bf16.mxu0 %v1057
        %1146 = vmatpush1.bf16.msra.mxu0 %v1056
        %1147 = vmatprep.subr.bf16.mxu0 0
        %1148 = vmatpush1.bf16.msra.mxu0 0
        %1149 = vmatprep.subr.bf16.mxu0 0
        %1150 = vmatpush1.bf16.msra.mxu0 0
        %1151 = vmatprep.subr.bf16.mxu0 0
        %1152 = vmatpush1.bf16.msra.mxu0 0
        %1153 = vmatprep.subr.bf16.mxu0 0
        %1154 = vmatpush1.bf16.msra.mxu0 0
        %1155 = vmatprep.subr.bf16.mxu0 0
        %1156 = vmatpush1.bf16.msra.mxu0 0
        %1157 = vmatprep.subr.bf16.mxu0 0
        %1158 = vmatpush1.bf16.msra.mxu0 0
        %1159 = vmatprep.subr.bf16.mxu0 0
        %1160 = vmatpush1.bf16.msra.mxu0 0
        %1161 = vmatprep.subr.bf16.mxu0 0
        %1162 = vmatpush1.bf16.msra.mxu0 0
        %1163 = vmatprep.mubr.bf16.mxu0 0
        %1164 = vmatmul.mubr.bf16.gmra.mrb[0].mxu0 %v559
        %v1165 = vpop.f32.mrb[0].mxu0
        %v1166 = vadd.f32 %v921, %v1165
        %v1167 = vpop.f32.mrb[0].mxu0
        %v1168 = vadd.f32 %v925, %v1167
        %v1169 = vpop.f32.mrb[0].mxu0
        %v1170 = vpop.f32.mrb[0].mxu0
        %1171 = vdwg.mxu0
        %v1172 = vmul.f32 %v1125, 0.5
        %v1173 = vmul.f32 %v1127, 0.5
        %v1174 = vmul.f32 %v1166, 0.5
        %v1175 = vmul.f32 %v1168, 0.5
        %v1176 = vmul.f32 %v1125, 0.70710677
        %v1177 = vmul.f32 %v1127, 0.70710677
        %v1178 = vmul.f32 %v1166, 0.70710677
        %v1179 = vmul.f32 %v1168, 0.70710677
        %v1180 = verf.f32.pop %v1176
        %v1181 = verf.f32.pop %v1177
        %v1182 = verf.f32.pop %v1178
        %v1183 = verf.f32.pop %v1179
        %v1184 = vadd.f32 %v1180, 1.0
        %v1185 = vadd.f32 %v1181, 1.0
        %v1186 = vadd.f32 %v1182, 1.0
        %v1187 = vadd.f32 %v1183, 1.0
        %v1188 = vmul.f32 %v1172, %v1184
        %v1189 = vmul.f32 %v1173, %v1185
        %v1190 = vmul.f32 %v1174, %v1186
        %v1191 = vmul.f32 %v1175, %v1187
        %vm1192 = vcmask 64512
        %v1194 = vsel %vm1192, 1.0, 0
        %1196 = vmatprep.subr.mxu0 %v1189
        %1197 = vmatpush1.msra.mxu0 %v1188
        %1198 = vmatprep.subr.mxu0 0.0
        %1199 = vmatpush1.msra.mxu0 0.0
        %1200 = vmatprep.subr.mxu0 0.0
        %1201 = vmatpush1.msra.mxu0 0.0
        %1202 = vmatprep.subr.mxu0 0.0
        %1203 = vmatpush1.msra.mxu0 0.0
        %1204 = vmatprep.subr.mxu0 0.0
        %1205 = vmatpush1.msra.mxu0 0.0
        %1206 = vmatprep.subr.mxu0 0.0
        %1207 = vmatpush1.msra.mxu0 0.0
        %1208 = vmatprep.subr.mxu0 0.0
        %1209 = vmatpush1.msra.mxu0 0.0
        %1210 = vmatprep.subr.mxu0 0.0
        %1211 = vmatpush1.msra.mxu0 0.0
        %1212 = vmatprep.subr.mxu0 0.0
        %1213 = vmatpush1.msra.mxu0 0.0
        %1214 = vmatprep.subr.mxu0 0.0
        %1215 = vmatpush1.msra.mxu0 0.0
        %1216 = vmatprep.subr.mxu0 0.0
        %1217 = vmatpush1.msra.mxu0 0.0
        %1218 = vmatprep.subr.mxu0 0.0
        %1219 = vmatpush1.msra.mxu0 0.0
        %1220 = vmatprep.subr.mxu0 0.0
        %1221 = vmatpush1.msra.mxu0 0.0
        %1222 = vmatprep.subr.mxu0 0.0
        %1223 = vmatpush1.msra.mxu0 0.0
        %1224 = vmatprep.subr.mxu0 0.0
        %1225 = vmatpush1.msra.mxu0 0.0
        %1226 = vmatprep.subr.mxu0 0.0
        %1227 = vmatpush1.msra.mxu0 0.0
        %1228 = vmatprep.subr.mxu0 0.0
        %1229 = vmatpush1.msra.mxu0 0.0
        %1230 = vmatprep.subr.mxu0 0.0
        %1231 = vmatpush1.msra.mxu0 0.0
        %1232 = vmatprep.subr.mxu0 0.0
        %1233 = vmatpush1.msra.mxu0 0.0
        %1234 = vmatprep.subr.mxu0 0.0
        %1235 = vmatpush1.msra.mxu0 0.0
        %1236 = vmatprep.subr.mxu0 0.0
        %1237 = vmatpush1.msra.mxu0 0.0
        %1238 = vmatprep.subr.mxu0 0.0
        %1239 = vmatpush1.msra.mxu0 0.0
        %1240 = vmatprep.subr.mxu0 0.0
        %1241 = vmatpush1.msra.mxu0 0.0
        %1242 = vmatprep.subr.mxu0 0.0
        %1243 = vmatpush1.msra.mxu0 0.0
        %1244 = vmatprep.subr.mxu0 0.0
        %1245 = vmatpush1.msra.mxu0 0.0
        %1246 = vmatprep.subr.mxu0 0.0
        %1247 = vmatpush1.msra.mxu0 0.0
        %1248 = vmatprep.subr.mxu0 0.0
        %1249 = vmatpush1.msra.mxu0 0.0
        %1250 = vmatprep.subr.mxu0 0.0
        %1251 = vmatpush1.msra.mxu0 0.0
        %1252 = vmatprep.subr.mxu0 0.0
        %1253 = vmatpush1.msra.mxu0 0.0
        %1254 = vmatprep.subr.mxu0 0.0
        %1255 = vmatpush1.msra.mxu0 0.0
        %1256 = vmatprep.subr.mxu0 0.0
        %1257 = vmatpush1.msra.mxu0 0.0
        %1258 = vmatprep.subr.mxu0 0.0
        %1259 = vmatpush1.msra.mxu0 0.0
        %1260 = vmatprep.mubr.f32.mxu0 0.0
        %1261 = vmatmul.mubr.f32.gmra.mrb[0].mxu0 %v1194
        %v1262 = vpop.f32.mrb[0].mxu0
        %v1263 = vadd.f32 0.0, %v1262
        %v1264 = vpop.f32.mrb[0].mxu0
        %v1265 = vadd.f32 0.0, %v1264
        %1266 = vdwg.mxu0
        %1267 = vmatprep.subr.mxu0 %v1191
        %1268 = vmatpush1.msra.mxu0 %v1190
        %1269 = vmatprep.subr.mxu0 0.0
        %1270 = vmatpush1.msra.mxu0 0.0
        %1271 = vmatprep.subr.mxu0 0.0
        %1272 = vmatpush1.msra.mxu0 0.0
        %1273 = vmatprep.subr.mxu0 0.0
        %1274 = vmatpush1.msra.mxu0 0.0
        %1275 = vmatprep.subr.mxu0 0.0
        %1276 = vmatpush1.msra.mxu0 0.0
        %1277 = vmatprep.subr.mxu0 0.0
        %1278 = vmatpush1.msra.mxu0 0.0
        %1279 = vmatprep.subr.mxu0 0.0
        %1280 = vmatpush1.msra.mxu0 0.0
        %1281 = vmatprep.subr.mxu0 0.0
        %1282 = vmatpush1.msra.mxu0 0.0
        %1283 = vmatprep.subr.mxu0 0.0
        %1284 = vmatpush1.msra.mxu0 0.0
        %1285 = vmatprep.subr.mxu0 0.0
        %1286 = vmatpush1.msra.mxu0 0.0
        %1287 = vmatprep.subr.mxu0 0.0
        %1288 = vmatpush1.msra.mxu0 0.0
        %1289 = vmatprep.subr.mxu0 0.0
        %1290 = vmatpush1.msra.mxu0 0.0
        %1291 = vmatprep.subr.mxu0 0.0
        %1292 = vmatpush1.msra.mxu0 0.0
        %1293 = vmatprep.subr.mxu0 0.0
        %1294 = vmatpush1.msra.mxu0 0.0
        %1295 = vmatprep.subr.mxu0 0.0
        %1296 = vmatpush1.msra.mxu0 0.0
        %1297 = vmatprep.subr.mxu0 0.0
        %1298 = vmatpush1.msra.mxu0 0.0
        %1299 = vmatprep.subr.mxu0 0.0
        %1300 = vmatpush1.msra.mxu0 0.0
        %1301 = vmatprep.subr.mxu0 0.0
        %1302 = vmatpush1.msra.mxu0 0.0
        %1303 = vmatprep.subr.mxu0 0.0
        %1304 = vmatpush1.msra.mxu0 0.0
        %1305 = vmatprep.subr.mxu0 0.0
        %1306 = vmatpush1.msra.mxu0 0.0
        %1307 = vmatprep.subr.mxu0 0.0
        %1308 = vmatpush1.msra.mxu0 0.0
        %1309 = vmatprep.subr.mxu0 0.0
        %1310 = vmatpush1.msra.mxu0 0.0
        %1311 = vmatprep.subr.mxu0 0.0
        %1312 = vmatpush1.msra.mxu0 0.0
        %1313 = vmatprep.subr.mxu0 0.0
        %1314 = vmatpush1.msra.mxu0 0.0
        %1315 = vmatprep.subr.mxu0 0.0
        %1316 = vmatpush1.msra.mxu0 0.0
        %1317 = vmatprep.subr.mxu0 0.0
        %1318 = vmatpush1.msra.mxu0 0.0
        %1319 = vmatprep.subr.mxu0 0.0
        %1320 = vmatpush1.msra.mxu0 0.0
        %1321 = vmatprep.subr.mxu0 0.0
        %1322 = vmatpush1.msra.mxu0 0.0
        %1323 = vmatprep.subr.mxu0 0.0
        %1324 = vmatpush1.msra.mxu0 0.0
        %1325 = vmatprep.subr.mxu0 0.0
        %1326 = vmatpush1.msra.mxu0 0.0
        %1327 = vmatprep.subr.mxu0 0.0
        %1328 = vmatpush1.msra.mxu0 0.0
        %1329 = vmatprep.subr.mxu0 0.0
        %1330 = vmatpush1.msra.mxu0 0.0
        %1331 = vmatprep.mubr.f32.mxu0 0.0
        %1332 = vmatmul.mubr.f32.gmra.mrb[0].mxu0 %v1194
        %v1333 = vpop.f32.mrb[0].mxu0
        %v1334 = vadd.f32 0.0, %v1333
        %v1335 = vpop.f32.mrb[0].mxu0
        %v1336 = vadd.f32 0.0, %v1335
        %1337 = vdwg.mxu0
        %v1338 = vmul.f32 %v1263, 0.125
        %v1339 = vmul.f32 %v1265, 0.125
        %v1340 = vmul.f32 %v1334, 0.125
        %v1341 = vmul.f32 %v1336, 0.125
        %v1342 = vlaneseq
        %v1343 = vshrl.u32 %v1342, 7
        %v1344 = vsub.s32 0, %v1343
        %v1345 = vrot.slane %v1338, %v1344
        %v1346 = vlaneseq
        %v1347 = vshrl.u32 %v1346, 7
        %v1348 = vsub.s32 0, %v1347
        %v1349 = vrot.slane %v1339, %v1348
        %v1350 = vlaneseq
        %v1351 = vshrl.u32 %v1350, 7
        %v1352 = vsub.s32 0, %v1351
        %v1353 = vrot.slane %v1340, %v1352
        %v1354 = vlaneseq
        %v1355 = vshrl.u32 %v1354, 7
        %v1356 = vsub.s32 0, %v1355
        %v1357 = vrot.slane %v1341, %v1356
        %v1358 = vsub.f32 %v1188, %v1345
        %v1359 = vsub.f32 %v1189, %v1349
        %v1360 = vsub.f32 %v1190, %v1353
        %v1361 = vsub.f32 %v1191, %v1357
        %v1362 = vmul.f32 %v1358, %v1358
        %v1363 = vmul.f32 %v1359, %v1359
        %v1364 = vmul.f32 %v1360, %v1360
        %v1365 = vmul.f32 %v1361, %v1361
        %1366 = vmatprep.subr.mxu0 %v1363
        %1367 = vmatpush1.msra.mxu0 %v1362
        %1368 = vmatprep.subr.mxu0 0.0
        %1369 = vmatpush1.msra.mxu0 0.0
        %1370 = vmatprep.subr.mxu0 0.0
        %1371 = vmatpush1.msra.mxu0 0.0
        %1372 = vmatprep.subr.mxu0 0.0
        %1373 = vmatpush1.msra.mxu0 0.0
        %1374 = vmatprep.subr.mxu0 0.0
        %1375 = vmatpush1.msra.mxu0 0.0
        %1376 = vmatprep.subr.mxu0 0.0
        %1377 = vmatpush1.msra.mxu0 0.0
        %1378 = vmatprep.subr.mxu0 0.0
        %1379 = vmatpush1.msra.mxu0 0.0
        %1380 = vmatprep.subr.mxu0 0.0
        %1381 = vmatpush1.msra.mxu0 0.0
        %1382 = vmatprep.subr.mxu0 0.0
        %1383 = vmatpush1.msra.mxu0 0.0
        %1384 = vmatprep.subr.mxu0 0.0
        %1385 = vmatpush1.msra.mxu0 0.0
        %1386 = vmatprep.subr.mxu0 0.0
        %1387 = vmatpush1.msra.mxu0 0.0
        %1388 = vmatprep.subr.mxu0 0.0
        %1389 = vmatpush1.msra.mxu0 0.0
        %1390 = vmatprep.subr.mxu0 0.0
        %1391 = vmatpush1.msra.mxu0 0.0
        %1392 = vmatprep.subr.mxu0 0.0
        %1393 = vmatpush1.msra.mxu0 0.0
        %1394 = vmatprep.subr.mxu0 0.0
        %1395 = vmatpush1.msra.mxu0 0.0
        %1396 = vmatprep.subr.mxu0 0.0
        %1397 = vmatpush1.msra.mxu0 0.0
        %1398 = vmatprep.subr.mxu0 0.0
        %1399 = vmatpush1.msra.mxu0 0.0
        %1400 = vmatprep.subr.mxu0 0.0
        %1401 = vmatpush1.msra.mxu0 0.0
        %1402 = vmatprep.subr.mxu0 0.0
        %1403 = vmatpush1.msra.mxu0 0.0
        %1404 = vmatprep.subr.mxu0 0.0
        %1405 = vmatpush1.msra.mxu0 0.0
        %1406 = vmatprep.subr.mxu0 0.0
        %1407 = vmatpush1.msra.mxu0 0.0
        %1408 = vmatprep.subr.mxu0 0.0
        %1409 = vmatpush1.msra.mxu0 0.0
        %1410 = vmatprep.subr.mxu0 0.0
        %1411 = vmatpush1.msra.mxu0 0.0
        %1412 = vmatprep.subr.mxu0 0.0
        %1413 = vmatpush1.msra.mxu0 0.0
        %1414 = vmatprep.subr.mxu0 0.0
        %1415 = vmatpush1.msra.mxu0 0.0
        %1416 = vmatprep.subr.mxu0 0.0
        %1417 = vmatpush1.msra.mxu0 0.0
        %1418 = vmatprep.subr.mxu0 0.0
        %1419 = vmatpush1.msra.mxu0 0.0
        %1420 = vmatprep.subr.mxu0 0.0
        %1421 = vmatpush1.msra.mxu0 0.0
        %1422 = vmatprep.subr.mxu0 0.0
        %1423 = vmatpush1.msra.mxu0 0.0
        %1424 = vmatprep.subr.mxu0 0.0
        %1425 = vmatpush1.msra.mxu0 0.0
        %1426 = vmatprep.subr.mxu0 0.0
        %1427 = vmatpush1.msra.mxu0 0.0
        %1428 = vmatprep.subr.mxu0 0.0
        %1429 = vmatpush1.msra.mxu0 0.0
        %1430 = vmatprep.mubr.f32.mxu0 0.0
        %1431 = vmatmul.mubr.f32.gmra.mrb[0].mxu0 %v1194
        %v1432 = vpop.f32.mrb[0].mxu0
        %v1433 = vadd.f32 0.0, %v1432
        %v1434 = vpop.f32.mrb[0].mxu0
        %v1435 = vadd.f32 0.0, %v1434
        %1436 = vdwg.mxu0
        %1437 = vmatprep.subr.mxu0 %v1365
        %1438 = vmatpush1.msra.mxu0 %v1364
        %1439 = vmatprep.subr.mxu0 0.0
        %1440 = vmatpush1.msra.mxu0 0.0
        %1441 = vmatprep.subr.mxu0 0.0
        %1442 = vmatpush1.msra.mxu0 0.0
        %1443 = vmatprep.subr.mxu0 0.0
        %1444 = vmatpush1.msra.mxu0 0.0
        %1445 = vmatprep.subr.mxu0 0.0
        %1446 = vmatpush1.msra.mxu0 0.0
        %1447 = vmatprep.subr.mxu0 0.0
        %1448 = vmatpush1.msra.mxu0 0.0
        %1449 = vmatprep.subr.mxu0 0.0
        %1450 = vmatpush1.msra.mxu0 0.0
        %1451 = vmatprep.subr.mxu0 0.0
        %1452 = vmatpush1.msra.mxu0 0.0
        %1453 = vmatprep.subr.mxu0 0.0
        %1454 = vmatpush1.msra.mxu0 0.0
        %1455 = vmatprep.subr.mxu0 0.0
        %1456 = vmatpush1.msra.mxu0 0.0
        %1457 = vmatprep.subr.mxu0 0.0
        %1458 = vmatpush1.msra.mxu0 0.0
        %1459 = vmatprep.subr.mxu0 0.0
        %1460 = vmatpush1.msra.mxu0 0.0
        %1461 = vmatprep.subr.mxu0 0.0
        %1462 = vmatpush1.msra.mxu0 0.0
        %1463 = vmatprep.subr.mxu0 0.0
        %1464 = vmatpush1.msra.mxu0 0.0
        %1465 = vmatprep.subr.mxu0 0.0
        %1466 = vmatpush1.msra.mxu0 0.0
        %1467 = vmatprep.subr.mxu0 0.0
        %1468 = vmatpush1.msra.mxu0 0.0
        %1469 = vmatprep.subr.mxu0 0.0
        %1470 = vmatpush1.msra.mxu0 0.0
        %1471 = vmatprep.subr.mxu0 0.0
        %1472 = vmatpush1.msra.mxu0 0.0
        %1473 = vmatprep.subr.mxu0 0.0
        %1474 = vmatpush1.msra.mxu0 0.0
        %1475 = vmatprep.subr.mxu0 0.0
        %1476 = vmatpush1.msra.mxu0 0.0
        %1477 = vmatprep.subr.mxu0 0.0
        %1478 = vmatpush1.msra.mxu0 0.0
        %1479 = vmatprep.subr.mxu0 0.0
        %1480 = vmatpush1.msra.mxu0 0.0
        %1481 = vmatprep.subr.mxu0 0.0
        %1482 = vmatpush1.msra.mxu0 0.0
        %1483 = vmatprep.subr.mxu0 0.0
        %1484 = vmatpush1.msra.mxu0 0.0
        %1485 = vmatprep.subr.mxu0 0.0
        %1486 = vmatpush1.msra.mxu0 0.0
        %1487 = vmatprep.subr.mxu0 0.0
        %1488 = vmatpush1.msra.mxu0 0.0
        %1489 = vmatprep.subr.mxu0 0.0
        %1490 = vmatpush1.msra.mxu0 0.0
        %1491 = vmatprep.subr.mxu0 0.0
        %1492 = vmatpush1.msra.mxu0 0.0
        %1493 = vmatprep.subr.mxu0 0.0
        %1494 = vmatpush1.msra.mxu0 0.0
        %1495 = vmatprep.subr.mxu0 0.0
        %1496 = vmatpush1.msra.mxu0 0.0
        %1497 = vmatprep.subr.mxu0 0.0
        %1498 = vmatpush1.msra.mxu0 0.0
        %1499 = vmatprep.subr.mxu0 0.0
        %1500 = vmatpush1.msra.mxu0 0.0
        %1501 = vmatprep.mubr.f32.mxu0 0.0
        %1502 = vmatmul.mubr.f32.gmra.mrb[0].mxu0 %v1194
        %v1503 = vpop.f32.mrb[0].mxu0
        %v1504 = vadd.f32 0.0, %v1503
        %v1505 = vpop.f32.mrb[0].mxu0
        %v1506 = vadd.f32 0.0, %v1505
        %1507 = vdwg.mxu0
        %v1508 = vmul.f32 %v1433, 0.125
        %v1509 = vmul.f32 %v1435, 0.125
        %v1510 = vmul.f32 %v1504, 0.125
        %v1511 = vmul.f32 %v1506, 0.125
        %v1512 = vadd.f32 %v1508, 1e-05
        %v1513 = vadd.f32 %v1509, 1e-05
        %v1514 = vadd.f32 %v1510, 1e-05
        %v1515 = vadd.f32 %v1511, 1e-05
        %v1516 = vrsqrt.pop %v1512
        %v1517 = vrsqrt.pop %v1513
        %v1518 = vrsqrt.pop %v1514
        %v1519 = vrsqrt.pop %v1515
        %v1520 = vlaneseq
        %v1521 = vshrl.u32 %v1520, 7
        %v1522 = vsub.s32 0, %v1521
        %v1523 = vrot.slane %v1516, %v1522
        %v1524 = vlaneseq
        %v1525 = vshrl.u32 %v1524, 7
        %v1526 = vsub.s32 0, %v1525
        %v1527 = vrot.slane %v1517, %v1526
        %v1528 = vlaneseq
        %v1529 = vshrl.u32 %v1528, 7
        %v1530 = vsub.s32 0, %v1529
        %v1531 = vrot.slane %v1518, %v1530
        %v1532 = vlaneseq
        %v1533 = vshrl.u32 %v1532, 7
        %v1534 = vsub.s32 0, %v1533
        %v1535 = vrot.slane %v1519, %v1534
        %v1536 = vmul.f32 %v1358, %v1523
        %v1537 = vmul.f32 %v1359, %v1527
        %v1538 = vmul.f32 %v1360, %v1531
        %v1539 = vmul.f32 %v1361, %v1535
        %v1540 = vld [vmem:[%s5] sm:$0xff]
        %1542 = vset.pattern.permute.xlu0 0
        %1543 = vperm.xlu0 %1542, %v1540
        %v1544 = vpop.permute.xlu0 %1543
        %v1546 = vmul.f32 %v1536, %v1544
        %v1547 = vmul.f32 %v1537, %v1544
        %v1548 = vmul.f32 %v1538, %v1544
        %v1549 = vmul.f32 %v1539, %v1544
        %v1550 = vld [vmem:[%s6] sm:$0xff]
        %1552 = vset.pattern.permute.xlu0 0
        %1553 = vperm.xlu0 %1552, %v1550
        %v1554 = vpop.permute.xlu0 %1553
        %v1556 = vadd.f32 %v1546, %v1554
        %v1557 = vadd.f32 %v1547, %v1554
        %v1558 = vadd.f32 %v1548, %v1554
        %v1559 = vadd.f32 %v1549, %v1554
        %v1560 = vld [vmem:[%s7] sm:$0xf]
        %v1561 = vpack.c.bf16 %v1556, %v1556
        %v1562 = vpack.c.bf16 %v1557, %v1557
        %v1563 = vpack.c.bf16 %v1558, %v1558
        %v1564 = vpack.c.bf16 %v1559, %v1559
        %v1565 = vld [vmem:[%s8] sm:$0xff]
        %1567 = vset.pattern.permute.xlu0 0
        %1568 = vperm.xlu0 %1567, %v1565
        %v1569 = vpop.permute.xlu0 %1568
        %v1572 = vsel %vm1192, %v1560, 0
        %vm1574 = vcmask 1043456
        %v1576 = vsel %vm1574, %v1561, 0
        %v1579 = vsel %vm1574, %v1562, 0
        %v1582 = vsel %vm1574, %v1563, 0
        %v1585 = vsel %vm1574, %v1564, 0
        %1587 = vmatprep.subr.bf16.mxu0 %v1579
        %1588 = vmatpush1.bf16.msra.mxu0 %v1576
        %1589 = vmatprep.subr.bf16.mxu0 0
        %1590 = vmatpush1.bf16.msra.mxu0 0
        %1591 = vmatprep.subr.bf16.mxu0 0
        %1592 = vmatpush1.bf16.msra.mxu0 0
        %1593 = vmatprep.subr.bf16.mxu0 0
        %1594 = vmatpush1.bf16.msra.mxu0 0
        %1595 = vmatprep.subr.bf16.mxu0 0
        %1596 = vmatpush1.bf16.msra.mxu0 0
        %1597 = vmatprep.subr.bf16.mxu0 0
        %1598 = vmatpush1.bf16.msra.mxu0 0
        %1599 = vmatprep.subr.bf16.mxu0 0
        %1600 = vmatpush1.bf16.msra.mxu0 0
        %1601 = vmatprep.subr.bf16.mxu0 0
        %1602 = vmatpush1.bf16.msra.mxu0 0
        %1603 = vmatprep.subr.bf16.mxu0 0
        %1604 = vmatpush1.bf16.msra.mxu0 0
        %1605 = vmatprep.subr.bf16.mxu0 0
        %1606 = vmatpush1.bf16.msra.mxu0 0
        %1607 = vmatprep.subr.bf16.mxu0 0
        %1608 = vmatpush1.bf16.msra.mxu0 0
        %1609 = vmatprep.subr.bf16.mxu0 0
        %1610 = vmatpush1.bf16.msra.mxu0 0
        %1611 = vmatprep.subr.bf16.mxu0 0
        %1612 = vmatpush1.bf16.msra.mxu0 0
        %1613 = vmatprep.subr.bf16.mxu0 0
        %1614 = vmatpush1.bf16.msra.mxu0 0
        %1615 = vmatprep.subr.bf16.mxu0 0
        %1616 = vmatpush1.bf16.msra.mxu0 0
        %1617 = vmatprep.subr.bf16.mxu0 0
        %1618 = vmatpush1.bf16.msra.mxu0 0
        %1619 = vmatprep.mubr.bf16.mxu0 0
        %1620 = vmatmul.mubr.bf16.gmra.mrb[0].mxu0 %v1572
        %v1621 = vpop.f32.mrb[0].mxu0
        %v1622 = vadd.f32 %v1569, %v1621
        %v1623 = vpop.f32.mrb[0].mxu0
        %v1624 = vadd.f32 %v1569, %v1623
        %v1625 = vpop.f32.mrb[0].mxu0
        %v1626 = vpop.f32.mrb[0].mxu0
        %1627 = vdwg.mxu0
        %1628 = vmatprep.subr.bf16.mxu0 %v1585
        %1629 = vmatpush1.bf16.msra.mxu0 %v1582
        %1630 = vmatprep.subr.bf16.mxu0 0
        %1631 = vmatpush1.bf16.msra.mxu0 0
        %1632 = vmatprep.subr.bf16.mxu0 0
        %1633 = vmatpush1.bf16.msra.mxu0 0
        %1634 = vmatprep.subr.bf16.mxu0 0
        %1635 = vmatpush1.bf16.msra.mxu0 0
        %1636 = vmatprep.subr.bf16.mxu0 0
        %1637 = vmatpush1.bf16.msra.mxu0 0
        %1638 = vmatprep.subr.bf16.mxu0 0
        %1639 = vmatpush1.bf16.msra.mxu0 0
        %1640 = vmatprep.subr.bf16.mxu0 0
        %1641 = vmatpush1.bf16.msra.mxu0 0
        %1642 = vmatprep.subr.bf16.mxu0 0
        %1643 = vmatpush1.bf16.msra.mxu0 0
        %1644 = vmatprep.subr.bf16.mxu0 0
        %1645 = vmatpush1.bf16.msra.mxu0 0
        %1646 = vmatprep.subr.bf16.mxu0 0
        %1647 = vmatpush1.bf16.msra.mxu0 0
        %1648 = vmatprep.subr.bf16.mxu0 0
        %1649 = vmatpush1.bf16.msra.mxu0 0
        %1650 = vmatprep.subr.bf16.mxu0 0
        %1651 = vmatpush1.bf16.msra.mxu0 0
        %1652 = vmatprep.subr.bf16.mxu0 0
        %1653 = vmatpush1.bf16.msra.mxu0 0
        %1654 = vmatprep.subr.bf16.mxu0 0
        %1655 = vmatpush1.bf16.msra.mxu0 0
        %1656 = vmatprep.subr.bf16.mxu0 0
        %1657 = vmatpush1.bf16.msra.mxu0 0
        %1658 = vmatprep.subr.bf16.mxu0 0
        %1659 = vmatpush1.bf16.msra.mxu0 0
        %1660 = vmatprep.mubr.bf16.mxu0 0
        %1661 = vmatmul.mubr.bf16.gmra.mrb[0].mxu0 %v1572
        %v1662 = vpop.f32.mrb[0].mxu0
        %v1663 = vadd.f32 %v1569, %v1662
        %v1664 = vpop.f32.mrb[0].mxu0
        %v1665 = vadd.f32 %v1569, %v1664
        %v1666 = vpop.f32.mrb[0].mxu0
        %v1667 = vpop.f32.mrb[0].mxu0
        %1668 = vdwg.mxu0
        %v1669 = vmul.f32 %v872, %v1622
        %v1670 = vmul.f32 %v873, %v1624
        %v1671 = vmul.f32 %v874, %v1663
        %v1672 = vmul.f32 %v875, %v1665
        %v1673 = vld [vmem:[#allocation2] sm:$0xff]
        %v1674 = vpack.c.bf16 %v1669, %v1669
        %v1675 = vpack.c.bf16 %v1670, %v1670
        %v1676 = vpack.c.bf16 %v1671, %v1671
        %v1677 = vpack.c.bf16 %v1672, %v1672
        %v1678 = vld [vmem:[%s474] sm:$0xf]
        %v1679 = vld [vmem:[%s474 + $0x4] sm:$0xf]
        %v1680 = vld [vmem:[%s474 + $0x8] sm:$0xf]
        %v1681 = vld [vmem:[%s474 + $0xc] sm:$0xf]
        %v1682 = vld [vmem:[%s474 + $0x10] sm:$0xf]
        %v1683 = vld [vmem:[%s474 + $0x14] sm:$0xf]
        %v1684 = vld [vmem:[%s474 + $0x18] sm:$0xf]
        %v1685 = vld [vmem:[%s474 + $0x1c] sm:$0xf]
        %v1686 = vld [vmem:[%s474 + $0x20] sm:$0xf]
        %v1687 = vld [vmem:[%s474 + $0x24] sm:$0xf]
        %v1688 = vld [vmem:[%s474 + $0x28] sm:$0xf]
        %v1689 = vld [vmem:[%s474 + $0x2c] sm:$0xf]
        %v1690 = vld [vmem:[%s474 + $0x30] sm:$0xf]
        %v1691 = vld [vmem:[%s474 + $0x34] sm:$0xf]
        %v1692 = vld [vmem:[%s474 + $0x38] sm:$0xf]
        %v1693 = vld [vmem:[%s474 + $0x3c] sm:$0xf]
        %v1694 = vld [vmem:[%s474 + $0x40] sm:$0xf]
        %v1695 = vld [vmem:[%s474 + $0x44] sm:$0xf]
        %v1696 = vld [vmem:[%s474 + $0x48] sm:$0xf]
        %v1697 = vld [vmem:[%s474 + $0x4c] sm:$0xf]
        %v1698 = vld [vmem:[%s474 + $0x50] sm:$0xf]
        %v1699 = vld [vmem:[%s474 + $0x54] sm:$0xf]
        %v1700 = vld [vmem:[%s474 + $0x58] sm:$0xf]
        %v1701 = vld [vmem:[%s474 + $0x5c] sm:$0xf]
        %v1702 = vld [vmem:[%s474 + $0x60] sm:$0xf]
        %v1703 = vld [vmem:[%s474 + $0x64] sm:$0xf]
        %v1704 = vld [vmem:[%s474 + $0x68] sm:$0xf]
        %v1705 = vld [vmem:[%s474 + $0x6c] sm:$0xf]
        %v1706 = vld [vmem:[%s474 + $0x70] sm:$0xf]
        %v1707 = vld [vmem:[%s474 + $0x74] sm:$0xf]
        %v1708 = vld [vmem:[%s474 + $0x78] sm:$0xf]
        %v1709 = vld [vmem:[%s474 + $0x7c] sm:$0xf]
        %v1710 = vld [vmem:[%s474 + $0x80] sm:$0xf]
        %v1711 = vld [vmem:[%s474 + $0x84] sm:$0xf]
        %v1712 = vld [vmem:[%s474 + $0x88] sm:$0xf]
        %v1713 = vld [vmem:[%s474 + $0x8c] sm:$0xf]
        %v1714 = vld [vmem:[%s474 + $0x90] sm:$0xf]
        %v1715 = vld [vmem:[%s474 + $0x94] sm:$0xf]
        %v1716 = vld [vmem:[%s474 + $0x98] sm:$0xf]
        %v1717 = vld [vmem:[%s474 + $0x9c] sm:$0xf]
        %v1718 = vld [vmem:[%s474 + $0xa0] sm:$0xf]
        %v1719 = vld [vmem:[%s474 + $0xa4] sm:$0xf]
        %v1720 = vld [vmem:[%s474 + $0xa8] sm:$0xf]
        %v1721 = vld [vmem:[%s474 + $0xac] sm:$0xf]
        %v1722 = vld [vmem:[%s474 + $0xb0] sm:$0xf]
        %v1723 = vld [vmem:[%s474 + $0xb4] sm:$0xf]
        %v1724 = vld [vmem:[%s474 + $0xb8] sm:$0xf]
        %v1725 = vld [vmem:[%s474 + $0xbc] sm:$0xf]
        %v1726 = vld [vmem:[%s474 + $0xc0] sm:$0xf]
        %v1727 = vld [vmem:[%s474 + $0xc4] sm:$0xf]
        %v1728 = vld [vmem:[%s474 + $0xc8] sm:$0xf]
        %v1729 = vld [vmem:[%s474 + $0xcc] sm:$0xf]
        %v1730 = vld [vmem:[%s474 + $0xd0] sm:$0xf]
        %v1731 = vld [vmem:[%s474 + $0xd4] sm:$0xf]
        %v1732 = vld [vmem:[%s474 + $0xd8] sm:$0xf]
        %v1733 = vld [vmem:[%s474 + $0xdc] sm:$0xf]
        %v1734 = vld [vmem:[%s474 + $0xe0] sm:$0xf]
        %v1735 = vld [vmem:[%s474 + $0xe4] sm:$0xf]
        %v1736 = vld [vmem:[%s474 + $0xe8] sm:$0xf]
        %v1737 = vld [vmem:[%s474 + $0xec] sm:$0xf]
        %v1738 = vld [vmem:[%s474 + $0xf0] sm:$0xf]
        %v1739 = vld [vmem:[%s474 + $0xf4] sm:$0xf]
        %v1740 = vld [vmem:[%s474 + $0xf8] sm:$0xf]
        %v1741 = vld [vmem:[%s474 + $0xfc] sm:$0xf]
        %v1806 = vunpack.c.l.b16 %v1678
        %v1807 = vunpack.c.l.b16 %v1679
        %v1808 = vunpack.c.l.b16 %v1680
        %v1809 = vunpack.c.l.b16 %v1681
        %v1810 = vunpack.c.l.b16 %v1682
        %v1811 = vunpack.c.l.b16 %v1683
        %v1812 = vunpack.c.l.b16 %v1684
        %v1813 = vunpack.c.l.b16 %v1685
        %v1814 = vunpack.c.l.b16 %v1686
        %v1815 = vunpack.c.l.b16 %v1687
        %v1816 = vunpack.c.l.b16 %v1688
        %v1817 = vunpack.c.l.b16 %v1689
        %v1818 = vunpack.c.l.b16 %v1690
        %v1819 = vunpack.c.l.b16 %v1691
        %v1820 = vunpack.c.l.b16 %v1692
        %v1821 = vunpack.c.l.b16 %v1693
        %v1822 = vunpack.c.l.b16 %v1694
        %v1823 = vunpack.c.l.b16 %v1695
        %v1824 = vunpack.c.l.b16 %v1696
        %v1825 = vunpack.c.l.b16 %v1697
        %v1826 = vunpack.c.l.b16 %v1698
        %v1827 = vunpack.c.l.b16 %v1699
        %v1828 = vunpack.c.l.b16 %v1700
        %v1829 = vunpack.c.l.b16 %v1701
        %v1830 = vunpack.c.l.b16 %v1702
        %v1831 = vunpack.c.l.b16 %v1703
        %v1832 = vunpack.c.l.b16 %v1704
        %v1833 = vunpack.c.l.b16 %v1705
        %v1834 = vunpack.c.l.b16 %v1706
        %v1835 = vunpack.c.l.b16 %v1707
        %v1836 = vunpack.c.l.b16 %v1708
        %v1837 = vunpack.c.l.b16 %v1709
        %v1838 = vunpack.c.l.b16 %v1710
        %v1839 = vunpack.c.l.b16 %v1711
        %v1840 = vunpack.c.l.b16 %v1712
        %v1841 = vunpack.c.l.b16 %v1713
        %v1842 = vunpack.c.l.b16 %v1714
        %v1843 = vunpack.c.l.b16 %v1715
        %v1844 = vunpack.c.l.b16 %v1716
        %v1845 = vunpack.c.l.b16 %v1717
        %v1846 = vunpack.c.l.b16 %v1718
        %v1847 = vunpack.c.l.b16 %v1719
        %v1848 = vunpack.c.l.b16 %v1720
        %v1849 = vunpack.c.l.b16 %v1721
        %v1850 = vunpack.c.l.b16 %v1722
        %v1851 = vunpack.c.l.b16 %v1723
        %v1852 = vunpack.c.l.b16 %v1724
        %v1853 = vunpack.c.l.b16 %v1725
        %v1854 = vunpack.c.l.b16 %v1726
        %v1855 = vunpack.c.l.b16 %v1727
        %v1856 = vunpack.c.l.b16 %v1728
        %v1857 = vunpack.c.l.b16 %v1729
        %v1858 = vunpack.c.l.b16 %v1730
        %v1859 = vunpack.c.l.b16 %v1731
        %v1860 = vunpack.c.l.b16 %v1732
        %v1861 = vunpack.c.l.b16 %v1733
        %v1862 = vunpack.c.l.b16 %v1734
        %v1863 = vunpack.c.l.b16 %v1735
        %v1864 = vunpack.c.l.b16 %v1736
        %v1865 = vunpack.c.l.b16 %v1737
        %v1866 = vunpack.c.l.b16 %v1738
        %v1867 = vunpack.c.l.b16 %v1739
        %v1868 = vunpack.c.l.b16 %v1740
        %v1869 = vunpack.c.l.b16 %v1741
        %v1870 = vpack.c.b16 %v1807, %v1806
        %v1871 = vpack.c.b16 %v1809, %v1808
        %v1872 = vpack.c.b16 %v1811, %v1810
        %v1873 = vpack.c.b16 %v1813, %v1812
        %v1874 = vpack.c.b16 %v1815, %v1814
        %v1875 = vpack.c.b16 %v1817, %v1816
        %v1876 = vpack.c.b16 %v1819, %v1818
        %v1877 = vpack.c.b16 %v1821, %v1820
        %v1878 = vpack.c.b16 %v1823, %v1822
        %v1879 = vpack.c.b16 %v1825, %v1824
        %v1880 = vpack.c.b16 %v1827, %v1826
        %v1881 = vpack.c.b16 %v1829, %v1828
        %v1882 = vpack.c.b16 %v1831, %v1830
        %v1883 = vpack.c.b16 %v1833, %v1832
        %v1884 = vpack.c.b16 %v1835, %v1834
        %v1885 = vpack.c.b16 %v1837, %v1836
        %v1886 = vpack.c.b16 %v1839, %v1838
        %v1887 = vpack.c.b16 %v1841, %v1840
        %v1888 = vpack.c.b16 %v1843, %v1842
        %v1889 = vpack.c.b16 %v1845, %v1844
        %v1890 = vpack.c.b16 %v1847, %v1846
        %v1891 = vpack.c.b16 %v1849, %v1848
        %v1892 = vpack.c.b16 %v1851, %v1850
        %v1893 = vpack.c.b16 %v1853, %v1852
        %v1894 = vpack.c.b16 %v1855, %v1854
        %v1895 = vpack.c.b16 %v1857, %v1856
        %v1896 = vpack.c.b16 %v1859, %v1858
        %v1897 = vpack.c.b16 %v1861, %v1860
        %v1898 = vpack.c.b16 %v1863, %v1862
        %v1899 = vpack.c.b16 %v1865, %v1864
        %v1900 = vpack.c.b16 %v1867, %v1866
        %v1901 = vpack.c.b16 %v1869, %v1868
        %1934 = vmatprep.subr.bf16.mxu0 0
        %1935 = vmatpush1.bf16.msra.mxu0 %v1870
        %1936 = vmatprep.subr.bf16.mxu0 0
        %1937 = vmatpush1.bf16.msra.mxu0 %v1871
        %1938 = vmatprep.subr.bf16.mxu0 0
        %1939 = vmatpush1.bf16.msra.mxu0 %v1872
        %1940 = vmatprep.subr.bf16.mxu0 0
        %1941 = vmatpush1.bf16.msra.mxu0 %v1873
        %1942 = vmatprep.subr.bf16.mxu0 0
        %1943 = vmatpush1.bf16.msra.mxu0 %v1874
        %1944 = vmatprep.subr.bf16.mxu0 0
        %1945 = vmatpush1.bf16.msra.mxu0 %v1875
        %1946 = vmatprep.subr.bf16.mxu0 0
        %1947 = vmatpush1.bf16.msra.mxu0 %v1876
        %1948 = vmatprep.subr.bf16.mxu0 0
        %1949 = vmatpush1.bf16.msra.mxu0 %v1877
        %1950 = vmatprep.subr.bf16.mxu0 0
        %1951 = vmatpush1.bf16.msra.mxu0 %v1878
        %1952 = vmatprep.subr.bf16.mxu0 0
        %1953 = vmatpush1.bf16.msra.mxu0 %v1879
        %1954 = vmatprep.subr.bf16.mxu0 0
        %1955 = vmatpush1.bf16.msra.mxu0 %v1880
        %1956 = vmatprep.subr.bf16.mxu0 0
        %1957 = vmatpush1.bf16.msra.mxu0 %v1881
        %1958 = vmatprep.subr.bf16.mxu0 0
        %1959 = vmatpush1.bf16.msra.mxu0 %v1882
        %1960 = vmatprep.subr.bf16.mxu0 0
        %1961 = vmatpush1.bf16.msra.mxu0 %v1883
        %1962 = vmatprep.subr.bf16.mxu0 0
        %1963 = vmatpush1.bf16.msra.mxu0 %v1884
        %1964 = vmatprep.subr.bf16.mxu0 0
        %1965 = vmatpush1.bf16.msra.mxu0 %v1885
        %1966 = vmatprep.mubr.bf16.mxu0 %v1675
        %1967 = vmatmul.mubr.bf16.gmra.mrb[0].mxu0 %v1674
        %v1968 = vpop.f32.mrb[0].mxu0
        %v1969 = vadd.f32 0.0, %v1968
        %v1970 = vpop.f32.mrb[0].mxu0
        %v1971 = vpop.f32.mrb[0].mxu0
        %v1972 = vpop.f32.mrb[0].mxu0
        %1973 = vdwg.mxu0
        %1974 = vmatprep.subr.bf16.mxu0 0
        %1975 = vmatpush1.bf16.msra.mxu0 %v1886
        %1976 = vmatprep.subr.bf16.mxu0 0
        %1977 = vmatpush1.bf16.msra.mxu0 %v1887
        %1978 = vmatprep.subr.bf16.mxu0 0
        %1979 = vmatpush1.bf16.msra.mxu0 %v1888
        %1980 = vmatprep.subr.bf16.mxu0 0
        %1981 = vmatpush1.bf16.msra.mxu0 %v1889
        %1982 = vmatprep.subr.bf16.mxu0 0
        %1983 = vmatpush1.bf16.msra.mxu0 %v1890
        %1984 = vmatprep.subr.bf16.mxu0 0
        %1985 = vmatpush1.bf16.msra.mxu0 %v1891
        %1986 = vmatprep.subr.bf16.mxu0 0
        %1987 = vmatpush1.bf16.msra.mxu0 %v1892
        %1988 = vmatprep.subr.bf16.mxu0 0
        %1989 = vmatpush1.bf16.msra.mxu0 %v1893
        %1990 = vmatprep.subr.bf16.mxu0 0
        %1991 = vmatpush1.bf16.msra.mxu0 %v1894
        %1992 = vmatprep.subr.bf16.mxu0 0
        %1993 = vmatpush1.bf16.msra.mxu0 %v1895
        %1994 = vmatprep.subr.bf16.mxu0 0
        %1995 = vmatpush1.bf16.msra.mxu0 %v1896
        %1996 = vmatprep.subr.bf16.mxu0 0
        %1997 = vmatpush1.bf16.msra.mxu0 %v1897
        %1998 = vmatprep.subr.bf16.mxu0 0
        %1999 = vmatpush1.bf16.msra.mxu0 %v1898
        %2000 = vmatprep.subr.bf16.mxu0 0
        %2001 = vmatpush1.bf16.msra.mxu0 %v1899
        %2002 = vmatprep.subr.bf16.mxu0 0
        %2003 = vmatpush1.bf16.msra.mxu0 %v1900
        %2004 = vmatprep.subr.bf16.mxu0 0
        %2005 = vmatpush1.bf16.msra.mxu0 %v1901
        %2006 = vmatprep.mubr.bf16.mxu0 %v1677
        %2007 = vmatmul.mubr.bf16.gmra.mrb[0].mxu0 %v1676
        %v2008 = vpop.f32.mrb[0].mxu0
        %v2009 = vadd.f32 %v1969, %v2008
        %v2010 = vpop.f32.mrb[0].mxu0
        %v2011 = vpop.f32.mrb[0].mxu0
        %v2012 = vpop.f32.mrb[0].mxu0
        %2013 = vdwg.mxu0
        %v2014 = vadd.f32 %v1673, %v2009
        %2015 = vst [vmem:[#allocation2] sm:$0xff] %v2014
        %p2016 = scmp.eq.s32.totalorder %s36, 1
        // Predicated region
        $region81: #{tpu_custom_call.1} parent=63 // pred_check
          %p2017 = pneg %p2016
        $region82: #{tpu_custom_call.1} parent=63 // pred_check_branch
          %2019 = sbr.rel (%p2017) target = $region84
        $region83: #{tpu_custom_call.1} parent=63 // pred_region
          %v2020 = vld [vmem:[#allocation2] sm:$0xff]
          %v2021 = vld [vmem:[%s10] sm:$0x1]
          %v2023 = vlaneseq
          %v2024 = vshrl.u32 %v2023, 7
          %v2025 = vsub.s32 0, %v2024
          %v2026 = vrot.slane %v2021, %v2025
          %v2028 = vadd.f32 %v2020, %v2026
          %2029 = vst [vmem:[%s534] sm:$0xff] %v2028
        $region84: #{tpu_custom_call.1} parent=63 // pred_fallthru
          _
        %s2030 = sand.u32 %s312, 1
        %s2031 = scalar_lea.sflag [#allocation5], %s2030
        %s2032 = sand.u32 %s312, 1
        %s2033 = smul.addr %s2032, 8
        %s2034 = scalar_lea.vmem [#allocation9], %s2033
        // Predicated region
        $region85: #{tpu_custom_call.1} parent=63 // pred_check
          %p2035 = pneg %p322
        $region86: #{tpu_custom_call.1} parent=63 // pred_check_branch
          %2037 = sbr.rel (%p2035) target = $region88
        $region87: #{tpu_custom_call.1} parent=63 // pred_region
          %s2039 = ssub.s32 128, 128
          %2040 = vsyncadd %s2031, %s2039
          %s2041 = smul.addr %s35, 128
          %s2042 = scalar_lea.hbm %s11, %s2041
          %s2044 = sshll.u32 %s2034, 4
          %s2045 = int_to_ptr.vmem [resolvable:$true] %s2044
          %2047 = dma.vmem_to_hbm [thread:$0]  %s2045, 128, %s2042, %s2031
        $region88: #{tpu_custom_call.1} parent=63 // pred_fallthru
          _
      $region64: #{tpu_custom_call.1} parent=5 // pred_fallthru
        _
      %p2048 = scmp.le.s32.totalorder 2, %s26
      // Predicated region
      $region89: #{tpu_custom_call.1} parent=5 // pred_check
        %p2049 = pneg %p2048
      $region90: #{tpu_custom_call.1} parent=5 // pred_check_branch
        %2051 = sbr.rel (%p2049) target = $region92
      $region91: #{tpu_custom_call.1} parent=5 // pred_region
        %s2052 = ssub.s32 %s26, 2
        // Predicated region
        $region93: #{tpu_custom_call.1} parent=91 // pred_check
          %p2053 = pneg %p328
        $region94: #{tpu_custom_call.1} parent=91 // pred_check_branch
          %2055 = sbr.rel (%p2053) target = $region96
        $region95: #{tpu_custom_call.1} parent=91 // pred_region
          %s2056 = sand.u32 %s313, 1
          %s2057 = scalar_lea.sflag [#allocation5], %s2056
          %s2058 = sand.u32 %s313, 1
          %s2059 = smul.addr %s2058, 8
          %s2060 = scalar_lea.vmem [#allocation9], %s2059
          %2061 = dma.done %s2057, 128
        $region96: #{tpu_custom_call.1} parent=91 // pred_fallthru
          _
      $region92: #{tpu_custom_call.1} parent=5 // pred_fallthru
        _
    $region6: #{tpu_custom_call.1} parent=1 // loop_footer
      %s30 = sadd.s32 1, %s26
    $region7: #{tpu_custom_call.1} parent=1 // loop_footer_branch
      %25 = sbr.rel target = $region3
    $region8: #{tpu_custom_call.1} parent=1 // loop_exit
      _
    %2062 = vsyncpa [#allocation4], 1
    %s2063 = scalar_lea.sflag [#allocation4], 1
    %2064 = vsyncpa %s2063, 1
    %2065 = vsyncpa [#allocation7], 1
    %s2066 = scalar_lea.sflag [#allocation7], 1
    %2067 = vsyncpa %s2066, 1
    %2068 = vsyncpa [#allocation5], 1
    %s2069 = scalar_lea.sflag [#allocation5], 1
    %2070 = vsyncpa %s2069, 1

</llo_original>
